<compile_context>
chip_gen: v7x
topology: tpu7x:2x2x1
jax: 0.10.0
libtpu: 0.0.40
codegen_flags: <defaults>
</compile_context>

<pallas_src>
import functools

import jax
import jax.numpy as jnp
from jax import lax
from jax.experimental import pallas as pl
from jax.experimental.pallas import tpu as pltpu
import numpy as np

EPS = 1e-5


# ----------------------------------------------------------------------------
# Fused Bottleneck kernel (one (batch, H-tile) grid step)
# ----------------------------------------------------------------------------
def _bottleneck_kernel(x_ref, w1_ref, b1_ref, w2_ref, b2_ref, w3_ref, b3_ref,
                       o_ref, *, img_h, img_w, tile_h, compute_dtype):
    """Shapes seen by the kernel:

    x_ref : (1, H+2, W+2, Cin)  zero-padded NHWC image (revisited across ht)
    w1_ref: (Cin, C1)       b1_ref: (1, C1)
    w2_ref: (9*C1, C1)      b2_ref: (1, C1)   K ordered as (ky, kx, cin)
    w3_ref: (C1, C3)        b3_ref: (1, C3)
    o_ref : (1, tile_h, W, C3)
    """
    f32 = jnp.float32
    c_in = x_ref.shape[-1]
    c1 = w1_ref.shape[-1]
    c3 = w3_ref.shape[-1]
    th, W = tile_h, img_w

    ht = pl.program_id(1)
    # First padded-row of this tile's (th+2)-row halo slab.
    row0 = pl.multiple_of(ht * th, th)

    # ---- conv1 (1x1) + bias + ReLU over the halo slab -----------------------
    x_slab = x_ref[0, pl.ds(row0, th + 2)]                       # (th+2, W+2, Cin)
    acc1 = jnp.dot(x_slab.reshape((th + 2) * (W + 2), c_in), w1_ref[...],
                   preferred_element_type=f32)
    y1 = jnp.maximum(acc1 + b1_ref[...], 0.0).reshape(th + 2, W + 2, c1)

    # A 1x1 conv of a zero-padding pixel yields relu(bias), not zero, so mask
    # the rows/cols of y1 that correspond to x's zero padding.
    grow = lax.broadcasted_iota(jnp.int32, (th + 2, W + 2, c1), 0) + row0
    gcol = lax.broadcasted_iota(jnp.int32, (th + 2, W + 2, c1), 1)
    valid = (grow >= 1) & (grow <= img_h) & (gcol >= 1) & (gcol <= W)
    out1 = jnp.where(valid, y1, 0.0).astype(compute_dtype)       # (th+2, W+2, c1)

    # ---- conv2 (3x3): fold all 9 taps into the matmul K dim (im2col in VMEM)
    cols = jnp.concatenate(
        [out1[:, 0:W], out1[:, 1:W + 1], out1[:, 2:W + 2]], axis=-1)   # (th+2, W, 3*c1)
    patches = jnp.concatenate(
        [cols[0:th], cols[1:th + 1], cols[2:th + 2]], axis=-1)         # (th, W, 9*c1)
    acc2 = jnp.dot(patches.reshape(th * W, 9 * c1), w2_ref[...],
                   preferred_element_type=f32)
    out2 = jnp.maximum(acc2 + b2_ref[...], 0.0).astype(compute_dtype)  # (th*W, c1)

    # ---- conv3 (1x1) + bias + residual add + ReLU (f32 epilogue) ------------
    acc3 = jnp.dot(out2, w3_ref[...], preferred_element_type=f32)
    identity = x_slab[1:th + 1, 1:W + 1, :].astype(f32).reshape(th * W, c3)
    y3 = jnp.maximum(acc3 + b3_ref[...] + identity, 0.0)
    o_ref[...] = y3.reshape(1, th, W, c3).astype(o_ref.dtype)


# ----------------------------------------------------------------------------
# Parameter folding (BN -> conv weights + bias), tile choice, wrapper
# ----------------------------------------------------------------------------
def _fold_params(params, compute_dtype):
    """Fold BatchNorm (inference) into conv weights; cast weights to bf16."""
    def fold(w, bn, scale_shape):
        gamma, beta, mean, var = bn
        scale = gamma * lax.rsqrt(var + EPS)
        bias = beta - mean * scale
        wf = (w * scale.reshape(scale_shape)).astype(compute_dtype)
        return wf, bias.reshape(1, -1).astype(jnp.float32)

    w1, b1 = fold(params["w1"], params["bn1"], (1, -1))
    w2, b2 = fold(params["w2"], params["bn2"], (1, 1, 1, -1))   # HWIO (3,3,C1,C1)
    w3, b3 = fold(params["w3"], params["bn3"], (1, -1))
    return w1, b1, w2, b2, w3, b3


def _pick_tile_h(H, W, target_rows=512):
    """Largest divisor of H whose (tile_h * W) row count stays near target."""
    best = 1
    for th in range(1, H + 1):
        if H % th == 0 and th * W <= max(target_rows, W):
            best = th
    return best


@functools.partial(jax.jit, static_argnames=("tile_h", "compute_dtype", "out_dtype"))
def bottleneck_forward(x_nchw, params, *, tile_h=None,
                       compute_dtype=jnp.bfloat16, out_dtype=jnp.bfloat16):
    w1, b1, w2hwio, b2, w3, b3 = _fold_params(params, compute_dtype)
    N, c_in, H, W = x_nchw.shape
    c1 = w1.shape[-1]
    c3 = w3.shape[-1]
    assert c_in == c3, "residual add requires in_channels == expansion*out_channels"

    if tile_h is None:
        tile_h = _pick_tile_h(H, W)
    assert H % tile_h == 0, f"tile_h={tile_h} must divide H={H}"
    n_ht = H // tile_h

    # NCHW -> NHWC, cast to bf16, zero-pad H and W by 1 for the 3x3 halo.
    x = jnp.transpose(x_nchw, (0, 2, 3, 1)).astype(compute_dtype)
    x_pad = jnp.pad(x, ((0, 0), (1, 1), (1, 1), (0, 0)))

    # conv2 weights with the 9 taps folded into the matmul K dim: (ky,kx,cin).
    w2k = w2hwio.reshape(9 * c1, c1)

    kernel = functools.partial(_bottleneck_kernel, img_h=H, img_w=W,
                               tile_h=tile_h, compute_dtype=compute_dtype)

    flops = 2 * N * H * W * (c_in * c1 + 9 * c1 * c1 + c1 * c3)
    bytes_accessed = (x_pad.size * x_pad.dtype.itemsize
                      + N * H * W * c3 * jnp.dtype(out_dtype).itemsize
                      + (w1.size + w2k.size + w3.size) * jnp.dtype(compute_dtype).itemsize
                      + (b1.size + b2.size + b3.size) * 4)

    grid_spec = pltpu.PrefetchScalarGridSpec(
        num_scalar_prefetch=0,
        grid=(N, n_ht),
        in_specs=[
            # Full padded image per batch element; revisited across the H-tile
            # axis, so it is DMA'd into VMEM once per n.
            pl.BlockSpec((1, H + 2, W + 2, c_in), lambda n, h: (n, 0, 0, 0)),
            pl.BlockSpec((c_in, c1), lambda n, h: (0, 0)),
            pl.BlockSpec((1, c1), lambda n, h: (0, 0)),
            pl.BlockSpec((9 * c1, c1), lambda n, h: (0, 0)),
            pl.BlockSpec((1, c1), lambda n, h: (0, 0)),
            pl.BlockSpec((c1, c3), lambda n, h: (0, 0)),
            pl.BlockSpec((1, c3), lambda n, h: (0, 0)),
        ],
        out_specs=pl.BlockSpec((1, tile_h, W, c3), lambda n, h: (n, h, 0, 0)),
    )

    out_nhwc = pl.pallas_call(
        kernel,
        out_shape=jax.ShapeDtypeStruct((N, H, W, c3), out_dtype),
        grid_spec=grid_spec,
        compiler_params=pltpu.CompilerParams(
            dimension_semantics=("parallel", "parallel"),
            # Explicit budget: ~8 MiB actually used at the largest ResNet-50
            # stage; 32 MiB leaves headroom and stays well under v7x's 64 MiB.
            vmem_limit_bytes=32 * 1024 * 1024,
        ),
        cost_estimate=pl.CostEstimate(flops=int(flops), transcendentals=0,
                                      bytes_accessed=int(bytes_accessed)),
    )(x_pad, w1, b1, w2k, b2, w3, b3)

    return jnp.transpose(out_nhwc, (0, 3, 1, 2))   # back to NCHW


# ----------------------------------------------------------------------------
# Deterministic parameters + pure-JAX reference (same bf16-staged numerics)
# ----------------------------------------------------------------------------
def make_params(key, in_channels, out_channels, expansion=4):
    c1 = out_channels
    c3 = out_channels * expansion
    ks = jax.random.split(key, 6)

    def bn_params(k, c):
        k1, k2, k3, k4 = jax.random.split(k, 4)
        gamma = jax.random.uniform(k1, (c,), jnp.float32, 0.5, 1.5)
        beta = 0.1 * jax.random.normal(k2, (c,), jnp.float32)
        mean = 0.1 * jax.random.normal(k3, (c,), jnp.float32)
        var = jax.random.uniform(k4, (c,), jnp.float32, 0.5, 1.5)
        return gamma, beta, mean, var

    return {
        "w1": 0.1 * jax.random.normal(ks[0], (in_channels, c1), jnp.float32),
        "bn1": bn_params(ks[1], c1),
        # conv2 weights in HWIO layout: (ky, kx, cin, cout)
        "w2": 0.1 * jax.random.normal(ks[2], (3, 3, c1, c1), jnp.float32),
        "bn2": bn_params(ks[3], c1),
        "w3": 0.1 * jax.random.normal(ks[4], (c1, c3), jnp.float32),
        "bn3": bn_params(ks[5], c3),
    }


def bottleneck_reference(x_nchw, params, *, compute_dtype=jnp.bfloat16,
                         out_dtype=jnp.bfloat16):
    """lax.conv reference reproducing the kernel's staged bf16 casts."""
    f32 = jnp.float32
    w1, b1, w2, b2, w3, b3 = _fold_params(params, compute_dtype)
    c_in = x_nchw.shape[1]
    c1 = w1.shape[-1]
    c3 = w3.shape[-1]
    dn = ("NHWC", "HWIO", "NHWC")

    x = jnp.transpose(x_nchw, (0, 2, 3, 1)).astype(compute_dtype)

    y = lax.conv_general_dilated(x.astype(f32),
                                 w1.reshape(1, 1, c_in, c1).astype(f32),
                                 (1, 1), "VALID", dimension_numbers=dn)
    y = jnp.maximum(y + b1.reshape(1, 1, 1, c1), 0.0).astype(compute_dtype)

    y = lax.conv_general_dilated(y.astype(f32), w2.astype(f32), (1, 1),
                                 [(1, 1), (1, 1)], dimension_numbers=dn)
    y = jnp.maximum(y + b2.reshape(1, 1, 1, c1), 0.0).astype(compute_dtype)

    y = lax.conv_general_dilated(y.astype(f32),
                                 w3.reshape(1, 1, c1, c3).astype(f32),
                                 (1, 1), "VALID", dimension_numbers=dn)
    y = jnp.maximum(y + b3.reshape(1, 1, 1, c3) + x.astype(f32), 0.0)
    return jnp.transpose(y.astype(out_dtype), (0, 3, 1, 2))


if __name__ == "__main__":
    key = jax.random.PRNGKey(0)
    k_x, k_p = jax.random.split(key)

    # Small but MXU/lane-friendly shapes: batch=2, out_channels=32 ->
    # in_channels = 32*4 = 128, spatial 16x16, H-tile of 8 -> grid (2, 2).
    N, out_channels, H, W = 2, 32, 16, 16
    in_channels = out_channels * 4
    x = jax.random.normal(k_x, (N, in_channels, H, W), jnp.float32)
    params = make_params(k_p, in_channels, out_channels)

    out = bottleneck_forward(x, params, tile_h=8)
    out = jax.block_until_ready(out)
    assert out.shape == (N, in_channels, H, W)

    ref = jax.block_until_ready(bottleneck_reference(x, params))
    np.testing.assert_allclose(np.asarray(out.astype(jnp.float32)),
                               np.asarray(ref.astype(jnp.float32)),
                               rtol=2e-2, atol=2e-2)
    print("KERNEL_OK")
</pallas_src>

<mosaic_0001>
module attributes {stable_mosaic.version = 11 : i64} {
  func.func @_bottleneck_kernel(%arg0: i32, %arg1: i32, %arg2: memref<1x18x18x128xbf16, #tpu.memory_space<vmem>>, %arg3: memref<128x32xbf16, #tpu.memory_space<vmem>>, %arg4: memref<1x32xf32, #tpu.memory_space<vmem>>, %arg5: memref<288x32xbf16, #tpu.memory_space<vmem>>, %arg6: memref<1x32xf32, #tpu.memory_space<vmem>>, %arg7: memref<32x128xbf16, #tpu.memory_space<vmem>>, %arg8: memref<1x128xf32, #tpu.memory_space<vmem>>, %arg9: memref<1x8x16x128xbf16, #tpu.memory_space<vmem>>) attributes {dimension_semantics = [#tpu.dimension_semantics<parallel>, #tpu.dimension_semantics<parallel>], iteration_bounds = array<i64: 2, 2>, scalar_prefetch = 0 : i64, scratch_operands = 0 : i64, tpu.core_type = #tpu.core_type<tc>, window_params = [{transform_indices = @transform_0, window_bounds = array<i64: 1, 18, 18, 128>}, {pipeline_mode = #tpu.pipeline_mode<synchronous>, transform_indices = @transform_1, window_bounds = array<i64: 128, 32>}, {pipeline_mode = #tpu.pipeline_mode<synchronous>, transform_indices = @transform_2, window_bounds = array<i64: 1, 32>}, {pipeline_mode = #tpu.pipeline_mode<synchronous>, transform_indices = @transform_3, window_bounds = array<i64: 288, 32>}, {pipeline_mode = #tpu.pipeline_mode<synchronous>, transform_indices = @transform_4, window_bounds = array<i64: 1, 32>}, {pipeline_mode = #tpu.pipeline_mode<synchronous>, transform_indices = @transform_5, window_bounds = array<i64: 32, 128>}, {pipeline_mode = #tpu.pipeline_mode<synchronous>, transform_indices = @transform_6, window_bounds = array<i64: 1, 128>}, {transform_indices = @transform_7, window_bounds = array<i64: 1, 8, 16, 128>}]} {
    %c8_i32 = arith.constant 8 : i32
    %0 = arith.muli %arg1, %c8_i32 : i32
    %1 = tpu.assume_multiple %0, 8 : i32
    %c0 = arith.constant 0 : index
    %2 = arith.index_cast %1 : i32 to index
    %c0_0 = arith.constant 0 : index
    %c0_1 = arith.constant 0 : index
    %3 = vector.load %arg2[%c0, %2, %c0_0, %c0_1] : memref<1x18x18x128xbf16, #tpu.memory_space<vmem>>, vector<1x10x18x128xbf16>
    %4 = vector.shape_cast %3 : vector<1x10x18x128xbf16> to vector<10x18x128xbf16>
    %5 = vector.shape_cast %4 : vector<10x18x128xbf16> to vector<180x128xbf16>
    %c0_2 = arith.constant 0 : index
    %c0_3 = arith.constant 0 : index
    %6 = vector.load %arg3[%c0_2, %c0_3] : memref<128x32xbf16, #tpu.memory_space<vmem>>, vector<128x32xbf16>
    %cst = arith.constant dense<0.000000e+00> : vector<180x32xf32>
    %7 = tpu.matmul %5, %6, %cst {dimension_numbers = #tpu.dot_dimension_numbers<[1], [0], [0], [1], [0, 0, 1, 1], [], []>} : vector<180x128xbf16>, vector<128x32xbf16>, vector<180x32xf32> -> vector<180x32xf32>
    %c0_4 = arith.constant 0 : index
    %c0_5 = arith.constant 0 : index
    %8 = vector.load %arg4[%c0_4, %c0_5] : memref<1x32xf32, #tpu.memory_space<vmem>>, vector<1x32xf32>
    %9 = vector.broadcast %8 : vector<1x32xf32> to vector<180x32xf32>
    %10 = arith.addf %7, %9 : vector<180x32xf32>
    %cst_6 = arith.constant 0.000000e+00 : f32
    %11 = vector.broadcast %cst_6 : f32 to vector<180x32xf32>
    %12 = arith.maximumf %10, %11 : vector<180x32xf32>
    %13 = vector.shape_cast %12 : vector<180x32xf32> to vector<10x18x32xf32>
    %14 = tpu.iota {dimensions = array<i32: 0>} : vector<10x18x32xi32>
    %15 = vector.broadcast %1 : i32 to vector<10x18x32xi32>
    %16 = arith.addi %14, %15 : vector<10x18x32xi32>
    %17 = tpu.iota {dimensions = array<i32: 1>} : vector<10x18x32xi32>
    %c1_i32 = arith.constant 1 : i32
    %18 = vector.broadcast %c1_i32 : i32 to vector<10x18x32xi32>
    %19 = arith.cmpi sge, %16, %18 : vector<10x18x32xi32>
    %c16_i32 = arith.constant 16 : i32
    %20 = vector.broadcast %c16_i32 : i32 to vector<10x18x32xi32>
    %21 = arith.cmpi sle, %16, %20 : vector<10x18x32xi32>
    %22 = arith.andi %19, %21 : vector<10x18x32xi1>
    %c1_i32_7 = arith.constant 1 : i32
    %23 = vector.broadcast %c1_i32_7 : i32 to vector<10x18x32xi32>
    %24 = arith.cmpi sge, %17, %23 : vector<10x18x32xi32>
    %25 = arith.andi %22, %24 : vector<10x18x32xi1>
    %c16_i32_8 = arith.constant 16 : i32
    %26 = vector.broadcast %c16_i32_8 : i32 to vector<10x18x32xi32>
    %27 = arith.cmpi sle, %17, %26 : vector<10x18x32xi32>
    %28 = arith.andi %25, %27 : vector<10x18x32xi1>
    %cst_9 = arith.constant 0.000000e+00 : f32
    %29 = vector.broadcast %cst_9 : f32 to vector<10x18x32xf32>
    %30 = arith.select %28, %13, %29 : vector<10x18x32xi1>, vector<10x18x32xf32>
    %31 = arith.truncf %30 : vector<10x18x32xf32> to vector<10x18x32xbf16>
    %32 = vector.extract_strided_slice %31 {offsets = [0, 0, 0], sizes = [10, 16, 32], strides = [1, 1, 1]} : vector<10x18x32xbf16> to vector<10x16x32xbf16>
    %33 = vector.extract_strided_slice %31 {offsets = [0, 1, 0], sizes = [10, 16, 32], strides = [1, 1, 1]} : vector<10x18x32xbf16> to vector<10x16x32xbf16>
    %34 = vector.extract_strided_slice %31 {offsets = [0, 2, 0], sizes = [10, 16, 32], strides = [1, 1, 1]} : vector<10x18x32xbf16> to vector<10x16x32xbf16>
    %35 = tpu.concatenate %32, %33, %34 in 2 : vector<10x16x32xbf16>, vector<10x16x32xbf16>, vector<10x16x32xbf16> -> vector<10x16x96xbf16>
    %36 = vector.extract_strided_slice %35 {offsets = [0, 0, 0], sizes = [8, 16, 96], strides = [1, 1, 1]} : vector<10x16x96xbf16> to vector<8x16x96xbf16>
    %37 = vector.extract_strided_slice %35 {offsets = [1, 0, 0], sizes = [8, 16, 96], strides = [1, 1, 1]} : vector<10x16x96xbf16> to vector<8x16x96xbf16>
    %38 = vector.extract_strided_slice %35 {offsets = [2, 0, 0], sizes = [8, 16, 96], strides = [1, 1, 1]} : vector<10x16x96xbf16> to vector<8x16x96xbf16>
    %39 = tpu.concatenate %36, %37, %38 in 2 : vector<8x16x96xbf16>, vector<8x16x96xbf16>, vector<8x16x96xbf16> -> vector<8x16x288xbf16>
    %40 = vector.shape_cast %39 : vector<8x16x288xbf16> to vector<128x288xbf16>
    %c0_10 = arith.constant 0 : index
    %c0_11 = arith.constant 0 : index
    %41 = vector.load %arg5[%c0_10, %c0_11] : memref<288x32xbf16, #tpu.memory_space<vmem>>, vector<288x32xbf16>
    %cst_12 = arith.constant dense<0.000000e+00> : vector<128x32xf32>
    %42 = tpu.matmul %40, %41, %cst_12 {dimension_numbers = #tpu.dot_dimension_numbers<[1], [0], [0], [1], [0, 0, 1, 1], [], []>} : vector<128x288xbf16>, vector<288x32xbf16>, vector<128x32xf32> -> vector<128x32xf32>
    %c0_13 = arith.constant 0 : index
    %c0_14 = arith.constant 0 : index
    %43 = vector.load %arg6[%c0_13, %c0_14] : memref<1x32xf32, #tpu.memory_space<vmem>>, vector<1x32xf32>
    %44 = vector.broadcast %43 : vector<1x32xf32> to vector<128x32xf32>
    %45 = arith.addf %42, %44 : vector<128x32xf32>
    %cst_15 = arith.constant 0.000000e+00 : f32
    %46 = vector.broadcast %cst_15 : f32 to vector<128x32xf32>
    %47 = arith.maximumf %45, %46 : vector<128x32xf32>
    %48 = arith.truncf %47 : vector<128x32xf32> to vector<128x32xbf16>
    %c0_16 = arith.constant 0 : index
    %c0_17 = arith.constant 0 : index
    %49 = vector.load %arg7[%c0_16, %c0_17] : memref<32x128xbf16, #tpu.memory_space<vmem>>, vector<32x128xbf16>
    %cst_18 = arith.constant dense<0.000000e+00> : vector<128x128xf32>
    %50 = tpu.matmul %48, %49, %cst_18 {dimension_numbers = #tpu.dot_dimension_numbers<[1], [0], [0], [1], [0, 0, 1, 1], [], []>} : vector<128x32xbf16>, vector<32x128xbf16>, vector<128x128xf32> -> vector<128x128xf32>
    %51 = vector.extract_strided_slice %4 {offsets = [1, 1, 0], sizes = [8, 16, 128], strides = [1, 1, 1]} : vector<10x18x128xbf16> to vector<8x16x128xbf16>
    %52 = arith.extf %51 : vector<8x16x128xbf16> to vector<8x16x128xf32>
    %53 = vector.shape_cast %52 : vector<8x16x128xf32> to vector<128x128xf32>
    %c0_19 = arith.constant 0 : index
    %c0_20 = arith.constant 0 : index
    %54 = vector.load %arg8[%c0_19, %c0_20] : memref<1x128xf32, #tpu.memory_space<vmem>>, vector<1x128xf32>
    %55 = vector.broadcast %54 : vector<1x128xf32> to vector<128x128xf32>
    %56 = arith.addf %50, %55 : vector<128x128xf32>
    %57 = arith.addf %56, %53 : vector<128x128xf32>
    %cst_21 = arith.constant 0.000000e+00 : f32
    %58 = vector.broadcast %cst_21 : f32 to vector<128x128xf32>
    %59 = arith.maximumf %57, %58 : vector<128x128xf32>
    %60 = vector.shape_cast %59 : vector<128x128xf32> to vector<1x8x16x128xf32>
    %61 = arith.truncf %60 : vector<1x8x16x128xf32> to vector<1x8x16x128xbf16>
    %c0_22 = arith.constant 0 : index
    %c0_23 = arith.constant 0 : index
    %c0_24 = arith.constant 0 : index
    %c0_25 = arith.constant 0 : index
    %62 = vector.load %arg9[%c0_22, %c0_23, %c0_24, %c0_25] : memref<1x8x16x128xbf16, #tpu.memory_space<vmem>>, vector<1x8x16x128xbf16>
    tpu.vector_store %arg9[%c0_22, %c0_23, %c0_24, %c0_25], %61 {strides = array<i32>} : memref<1x8x16x128xbf16, #tpu.memory_space<vmem>>, vector<1x8x16x128xbf16>,
    return
  }
  func.func @transform_0(%arg0: i32, %arg1: i32) -> (i32, i32, i32, i32) {
    %c0_i32 = arith.constant 0 : i32
    %c0_i32_0 = arith.constant 0 : i32
    %c0_i32_1 = arith.constant 0 : i32
    %c0_i32_2 = arith.constant 0 : i32
    return %arg0, %c0_i32, %c0_i32_0, %c0_i32_1 : i32, i32, i32, i32
  }
  func.func @transform_1(%arg0: i32, %arg1: i32) -> (i32, i32) {
    %c0_i32 = arith.constant 0 : i32
    %c0_i32_0 = arith.constant 0 : i32
    %c0_i32_1 = arith.constant 0 : i32
    return %c0_i32, %c0_i32_0 : i32, i32
  }
  func.func @transform_2(%arg0: i32, %arg1: i32) -> (i32, i32) {
    %c0_i32 = arith.constant 0 : i32
    %c0_i32_0 = arith.constant 0 : i32
    %c0_i32_1 = arith.constant 0 : i32
    return %c0_i32, %c0_i32_0 : i32, i32
  }
  func.func @transform_3(%arg0: i32, %arg1: i32) -> (i32, i32) {
    %c0_i32 = arith.constant 0 : i32
    %c0_i32_0 = arith.constant 0 : i32
    %c0_i32_1 = arith.constant 0 : i32
    return %c0_i32, %c0_i32_0 : i32, i32
  }
  func.func @transform_4(%arg0: i32, %arg1: i32) -> (i32, i32) {
    %c0_i32 = arith.constant 0 : i32
    %c0_i32_0 = arith.constant 0 : i32
    %c0_i32_1 = arith.constant 0 : i32
    return %c0_i32, %c0_i32_0 : i32, i32
  }
  func.func @transform_5(%arg0: i32, %arg1: i32) -> (i32, i32) {
    %c0_i32 = arith.constant 0 : i32
    %c0_i32_0 = arith.constant 0 : i32
    %c0_i32_1 = arith.constant 0 : i32
    return %c0_i32, %c0_i32_0 : i32, i32
  }
  func.func @transform_6(%arg0: i32, %arg1: i32) -> (i32, i32) {
    %c0_i32 = arith.constant 0 : i32
    %c0_i32_0 = arith.constant 0 : i32
    %c0_i32_1 = arith.constant 0 : i32
    return %c0_i32, %c0_i32_0 : i32, i32
  }
  func.func @transform_7(%arg0: i32, %arg1: i32) -> (i32, i32, i32, i32) {
    %c0_i32 = arith.constant 0 : i32
    %c0_i32_0 = arith.constant 0 : i32
    %c0_i32_1 = arith.constant 0 : i32
    return %arg0, %arg1, %c0_i32, %c0_i32_0 : i32, i32, i32, i32
  }
}

</mosaic_0001>

<llo_original>
// kernel: bottleneck_forward.1
$region0: #{bottleneck_forward.1}
  #allocation0 [shape = 'u32[]', space=smem, size = 0x4, offset = 0x4, fixed_abs, tag = 'smem constant byte address 0x4 - core index']
  #allocation1 [shape = 'u32[144,128]{1,0:T(1,128)}', space=vmem, size = 0x12000, scoped, tag = 'internal scratch']
  %s0 = inlined_call_operand.vmem [shape: bf16[2,18,18,128], index: 0, kind: input, shape index: {}]
  %s1 = inlined_call_operand.vmem [shape: bf16[128,32], index: 1, kind: input, shape index: {}]
  %s2 = inlined_call_operand.vmem [shape: f32[1,32], index: 2, kind: input, shape index: {}]
  %s3 = inlined_call_operand.vmem [shape: bf16[288,32], index: 3, kind: input, shape index: {}]
  %s4 = inlined_call_operand.vmem [shape: f32[1,32], index: 4, kind: input, shape index: {}]
  %s5 = inlined_call_operand.vmem [shape: bf16[32,128], index: 5, kind: input, shape index: {}]
  %s6 = inlined_call_operand.vmem [shape: f32[1,128], index: 6, kind: input, shape index: {}]
  %s7 = inlined_call_operand.hbm [shape: bf16[2,16,16,128], index: 7, kind: output, shape index: {}]
  %s8 = sld [smem:[#allocation0]]
  $region61: #{bottleneck_forward.1} parent=0
    _
  %s10 = ssub.s32 1, %s8
  %s11 = scalar_select 0, %s10, %s8
  $region1: #{bottleneck_forward.1} parent=0
    #allocation2 [shape = 'u8[65536]{0}', space=vmem, size = 0x10000, scoped, tag = 'output window, operand 0']
    #allocation3 [shape = 's32[2]{0}', space=sflag, size = 0x8, scoped, tag = 'scoped memory for bottleneck_forward.1']
    %12 = vsyncpa [#allocation3], 0
    %s13 = scalar_lea.sflag [#allocation3], 1
    %14 = vsyncpa %s13, 0
    loop: start=0, step=1, limit=6
    $region2: #{bottleneck_forward.1} parent=1 // loop_pre_header
      _
    $region3: #{bottleneck_forward.1} parent=1 // loop_header
      %s16 = sphi 0, %s20
      %p17 = scmp.ge.s32.totalorder %s16, 6
      %s23 = sphi 0, %s35
      %s24 = sphi 0, %s31
      %s25 = sphi 0, %s23
      %s26 = sphi 0, %s24
      %s27 = sphi 0, %s25
      %s28 = sphi 0, %s26
      %s38 = sphi 0, %s40
      %s41 = sphi 0, %s38
      %s42 = sphi 0, %s41
      %s58 = sphi 0, %s42
      %s62 = sphi 0, %s62
      %s64 = sphi 0, %s62
      %s65 = sphi 0, %s64
      %s79 = sphi 0, %s65
      %s83 = sphi 0, %s83
      %s85 = sphi 0, %s83
      %s86 = sphi 0, %s85
      %s100 = sphi 0, %s86
      %s104 = sphi 0, %s104
      %s106 = sphi 0, %s104
      %s107 = sphi 0, %s106
      %s121 = sphi 0, %s107
      %s125 = sphi 0, %s125
      %s127 = sphi 0, %s125
      %s128 = sphi 0, %s127
      %s142 = sphi 0, %s128
      %s146 = sphi 0, %s146
      %s148 = sphi 0, %s146
      %s149 = sphi 0, %s148
      %s163 = sphi 0, %s149
      %s167 = sphi 0, %s167
      %s169 = sphi 0, %s167
      %s170 = sphi 0, %s169
      %s184 = sphi 0, %s170
      %s192 = sphi 0, %s194
      %s195 = sphi 0, %s192
      %s196 = sphi 0, %s195
      %s212 = sphi 0, %s196
    $region4: #{bottleneck_forward.1} parent=1 // loop_header_branch
      %19 = sbr.rel (%p17) target = $region8
    $region5: #{bottleneck_forward.1} parent=1 // loop_body
      %s21 = ssub.s32 %s16, 1
      %s22 = ssub.s32 %s16, 2
      %s29 = sadd.s32 1, %s24
      %p30 = scmp.ge.s32.totalorder %s29, 2
      %s31 = scalar_select %p30, 0, %s29
      %s32 = sadd.s32 1, %s23
      %s33 = scalar_select %p30, %s32, %s23
      %p34 = scmp.ge.s32.totalorder %s33, 2
      %s35 = scalar_select %p34, 0, %s33
      %s36 = ssub.s32 %s23, %s35
      %p37 = scmp.eq.s32.totalorder %s36, 0
      %s39 = sadd.s32 %s38, 1
      %s40 = scalar_select %p37, %s38, %s39
      %p43 = pneg %p37
      %p44 = scmp.eq.s32.totalorder %s16, 3
      %p45 = por %p43, %p44
      %p46 = scmp.ne.s32.totalorder %s38, %s41
      %p47 = scmp.eq.s32.totalorder %s16, 0
      %p48 = por %p46, %p47
      %p49 = scmp.ne.s32.totalorder %s38, %s41
      %p50 = scmp.eq.s32.totalorder %s21, 3
      %p51 = por %p49, %p50
      %p52 = scmp.ne.s32.totalorder %s41, %s42
      %p53 = scmp.eq.s32.totalorder %s21, 0
      %p54 = por %p52, %p53
      %p55 = scmp.ne.s32.totalorder %s41, %s42
      %p56 = scmp.eq.s32.totalorder %s22, 3
      %p57 = por %p55, %p56
      %p59 = scmp.ne.s32.totalorder %s42, %s58
      %p60 = scmp.eq.s32.totalorder %s22, 0
      %p61 = por %p59, %p60
      %s63 = sadd.s32 %s62, 1
      %p66 = scmp.eq.s32.totalorder %s16, 3
      %p67 = scmp.ne.s32.totalorder %s62, %s64
      %p68 = scmp.eq.s32.totalorder %s16, 0
      %p69 = por %p67, %p68
      %p70 = scmp.ne.s32.totalorder %s62, %s64
      %p71 = scmp.eq.s32.totalorder %s21, 3
      %p72 = por %p70, %p71
      %p73 = scmp.ne.s32.totalorder %s64, %s65
      %p74 = scmp.eq.s32.totalorder %s21, 0
      %p75 = por %p73, %p74
      %p76 = scmp.ne.s32.totalorder %s64, %s65
      %p77 = scmp.eq.s32.totalorder %s22, 3
      %p78 = por %p76, %p77
      %p80 = scmp.ne.s32.totalorder %s65, %s79
      %p81 = scmp.eq.s32.totalorder %s22, 0
      %p82 = por %p80, %p81
      %s84 = sadd.s32 %s83, 1
      %p87 = scmp.eq.s32.totalorder %s16, 3
      %p88 = scmp.ne.s32.totalorder %s83, %s85
      %p89 = scmp.eq.s32.totalorder %s16, 0
      %p90 = por %p88, %p89
      %p91 = scmp.ne.s32.totalorder %s83, %s85
      %p92 = scmp.eq.s32.totalorder %s21, 3
      %p93 = por %p91, %p92
      %p94 = scmp.ne.s32.totalorder %s85, %s86
      %p95 = scmp.eq.s32.totalorder %s21, 0
      %p96 = por %p94, %p95
      %p97 = scmp.ne.s32.totalorder %s85, %s86
      %p98 = scmp.eq.s32.totalorder %s22, 3
      %p99 = por %p97, %p98
      %p101 = scmp.ne.s32.totalorder %s86, %s100
      %p102 = scmp.eq.s32.totalorder %s22, 0
      %p103 = por %p101, %p102
      %s105 = sadd.s32 %s104, 1
      %p108 = scmp.eq.s32.totalorder %s16, 3
      %p109 = scmp.ne.s32.totalorder %s104, %s106
      %p110 = scmp.eq.s32.totalorder %s16, 0
      %p111 = por %p109, %p110
      %p112 = scmp.ne.s32.totalorder %s104, %s106
      %p113 = scmp.eq.s32.totalorder %s21, 3
      %p114 = por %p112, %p113
      %p115 = scmp.ne.s32.totalorder %s106, %s107
      %p116 = scmp.eq.s32.totalorder %s21, 0
      %p117 = por %p115, %p116
      %p118 = scmp.ne.s32.totalorder %s106, %s107
      %p119 = scmp.eq.s32.totalorder %s22, 3
      %p120 = por %p118, %p119
      %p122 = scmp.ne.s32.totalorder %s107, %s121
      %p123 = scmp.eq.s32.totalorder %s22, 0
      %p124 = por %p122, %p123
      %s126 = sadd.s32 %s125, 1
      %p129 = scmp.eq.s32.totalorder %s16, 3
      %p130 = scmp.ne.s32.totalorder %s125, %s127
      %p131 = scmp.eq.s32.totalorder %s16, 0
      %p132 = por %p130, %p131
      %p133 = scmp.ne.s32.totalorder %s125, %s127
      %p134 = scmp.eq.s32.totalorder %s21, 3
      %p135 = por %p133, %p134
      %p136 = scmp.ne.s32.totalorder %s127, %s128
      %p137 = scmp.eq.s32.totalorder %s21, 0
      %p138 = por %p136, %p137
      %p139 = scmp.ne.s32.totalorder %s127, %s128
      %p140 = scmp.eq.s32.totalorder %s22, 3
      %p141 = por %p139, %p140
      %p143 = scmp.ne.s32.totalorder %s128, %s142
      %p144 = scmp.eq.s32.totalorder %s22, 0
      %p145 = por %p143, %p144
      %s147 = sadd.s32 %s146, 1
      %p150 = scmp.eq.s32.totalorder %s16, 3
      %p151 = scmp.ne.s32.totalorder %s146, %s148
      %p152 = scmp.eq.s32.totalorder %s16, 0
      %p153 = por %p151, %p152
      %p154 = scmp.ne.s32.totalorder %s146, %s148
      %p155 = scmp.eq.s32.totalorder %s21, 3
      %p156 = por %p154, %p155
      %p157 = scmp.ne.s32.totalorder %s148, %s149
      %p158 = scmp.eq.s32.totalorder %s21, 0
      %p159 = por %p157, %p158
      %p160 = scmp.ne.s32.totalorder %s148, %s149
      %p161 = scmp.eq.s32.totalorder %s22, 3
      %p162 = por %p160, %p161
      %p164 = scmp.ne.s32.totalorder %s149, %s163
      %p165 = scmp.eq.s32.totalorder %s22, 0
      %p166 = por %p164, %p165
      %s168 = sadd.s32 %s167, 1
      %p171 = scmp.eq.s32.totalorder %s16, 3
      %p172 = scmp.ne.s32.totalorder %s167, %s169
      %p173 = scmp.eq.s32.totalorder %s16, 0
      %p174 = por %p172, %p173
      %p175 = scmp.ne.s32.totalorder %s167, %s169
      %p176 = scmp.eq.s32.totalorder %s21, 3
      %p177 = por %p175, %p176
      %p178 = scmp.ne.s32.totalorder %s169, %s170
      %p179 = scmp.eq.s32.totalorder %s21, 0
      %p180 = por %p178, %p179
      %p181 = scmp.ne.s32.totalorder %s169, %s170
      %p182 = scmp.eq.s32.totalorder %s22, 3
      %p183 = por %p181, %p182
      %p185 = scmp.ne.s32.totalorder %s170, %s184
      %p186 = scmp.eq.s32.totalorder %s22, 0
      %p187 = por %p185, %p186
      %s188 = ssub.s32 %s23, %s35
      %s189 = ssub.s32 %s24, %s31
      %s190 = sor.u32 %s188, %s189
      %p191 = scmp.eq.s32.totalorder %s190, 0
      %s193 = sadd.s32 %s192, 1
      %s194 = scalar_select %p191, %s192, %s193
      %p197 = pneg %p191
      %p198 = scmp.eq.s32.totalorder %s16, 3
      %p199 = por %p197, %p198
      %p200 = scmp.ne.s32.totalorder %s192, %s195
      %p201 = scmp.eq.s32.totalorder %s16, 0
      %p202 = por %p200, %p201
      %p203 = scmp.ne.s32.totalorder %s192, %s195
      %p204 = scmp.eq.s32.totalorder %s21, 3
      %p205 = por %p203, %p204
      %p206 = scmp.ne.s32.totalorder %s195, %s196
      %p207 = scmp.eq.s32.totalorder %s21, 0
      %p208 = por %p206, %p207
      %p209 = scmp.ne.s32.totalorder %s195, %s196
      %p210 = scmp.eq.s32.totalorder %s22, 3
      %p211 = por %p209, %p210
      %p213 = scmp.ne.s32.totalorder %s196, %s212
      %p214 = scmp.eq.s32.totalorder %s22, 0
      %p215 = por %p213, %p214
      %p216 = scmp.le.s32.totalorder 1, %s16
      %p217 = scmp.lt.s32.totalorder %s16, 5
      %p218 = pnand %p216, %p217
      %p219 = pneg %p218
      // Predicated region
      $region9: #{bottleneck_forward.1} parent=5 // pred_check
        _
      $region10: #{bottleneck_forward.1} parent=5 // pred_check_branch
        %221 = sbr.rel (%p218) target = $region12
      $region11: #{bottleneck_forward.1} parent=5 // pred_region
        %s222 = ssub.s32 %s16, 1
        // Predicated region
        $region13: #{bottleneck_forward.1} parent=11 // pred_check
          %p223 = pneg %p75
        $region14: #{bottleneck_forward.1} parent=11 // pred_check_branch
          %225 = sbr.rel (%p223) target = $region16
        $region15: #{bottleneck_forward.1} parent=11 // pred_region
          _
        $region16: #{bottleneck_forward.1} parent=11 // pred_fallthru
          _
        // Predicated region
        $region17: #{bottleneck_forward.1} parent=11 // pred_check
          %p226 = pneg %p96
        $region18: #{bottleneck_forward.1} parent=11 // pred_check_branch
          %228 = sbr.rel (%p226) target = $region20
        $region19: #{bottleneck_forward.1} parent=11 // pred_region
          _
        $region20: #{bottleneck_forward.1} parent=11 // pred_fallthru
          _
        // Predicated region
        $region21: #{bottleneck_forward.1} parent=11 // pred_check
          %p229 = pneg %p117
        $region22: #{bottleneck_forward.1} parent=11 // pred_check_branch
          %231 = sbr.rel (%p229) target = $region24
        $region23: #{bottleneck_forward.1} parent=11 // pred_region
          _
        $region24: #{bottleneck_forward.1} parent=11 // pred_fallthru
          _
        // Predicated region
        $region25: #{bottleneck_forward.1} parent=11 // pred_check
          %p232 = pneg %p138
        $region26: #{bottleneck_forward.1} parent=11 // pred_check_branch
          %234 = sbr.rel (%p232) target = $region28
        $region27: #{bottleneck_forward.1} parent=11 // pred_region
          _
        $region28: #{bottleneck_forward.1} parent=11 // pred_fallthru
          _
        // Predicated region
        $region29: #{bottleneck_forward.1} parent=11 // pred_check
          %p235 = pneg %p159
        $region30: #{bottleneck_forward.1} parent=11 // pred_check_branch
          %237 = sbr.rel (%p235) target = $region32
        $region31: #{bottleneck_forward.1} parent=11 // pred_region
          _
        $region32: #{bottleneck_forward.1} parent=11 // pred_fallthru
          _
        // Predicated region
        $region33: #{bottleneck_forward.1} parent=11 // pred_check
          %p238 = pneg %p180
        $region34: #{bottleneck_forward.1} parent=11 // pred_check_branch
          %240 = sbr.rel (%p238) target = $region36
        $region35: #{bottleneck_forward.1} parent=11 // pred_region
          _
        $region36: #{bottleneck_forward.1} parent=11 // pred_fallthru
          _
      $region12: #{bottleneck_forward.1} parent=5 // pred_fallthru
        _
      %p241 = scmp.lt.s32.totalorder %s16, 4
      // Predicated region
      $region37: #{bottleneck_forward.1} parent=5 // pred_check
        %p242 = pneg %p241
      $region38: #{bottleneck_forward.1} parent=5 // pred_check_branch
        %244 = sbr.rel (%p242) target = $region40
      $region39: #{bottleneck_forward.1} parent=5 // pred_region
        // Predicated region
        $region41: #{bottleneck_forward.1} parent=39 // pred_check
          %p245 = pneg %p48
        $region42: #{bottleneck_forward.1} parent=39 // pred_check_branch
          %247 = sbr.rel (%p245) target = $region44
        $region43: #{bottleneck_forward.1} parent=39 // pred_region
          %p248 = scmp.lt.s32.totalorder %s23, 1
          %s249 = scalar_select %p248, %s23, 1
          %s250 = smul.addr %s249, 54
          %s251 = smul.addr %s250, 4
          %s252 = scalar_lea.vmem %s0, %s251
        $region44: #{bottleneck_forward.1} parent=39 // pred_fallthru
          _
      $region40: #{bottleneck_forward.1} parent=5 // pred_fallthru
        _
      %p253 = scmp.le.s32.totalorder 1, %s16
      %p254 = scmp.lt.s32.totalorder %s16, 5
      %p255 = pnand %p253, %p254
      %p256 = pneg %p255
      // Predicated region
      $region45: #{bottleneck_forward.1} parent=5 // pred_check
        _
      $region46: #{bottleneck_forward.1} parent=5 // pred_check_branch
        %258 = sbr.rel (%p255) target = $region48
      $region47: #{bottleneck_forward.1} parent=5 // pred_region
        %s259 = ssub.s32 %s16, 1
        %p260 = scmp.lt.s32.totalorder %s25, 1
        %s261 = scalar_select %p260, %s25, 1
        %s262 = smul.addr %s261, 54
        %s263 = smul.addr %s262, 4
        %s264 = scalar_lea.vmem %s0, %s263
        %p265 = pneg %p54
        %p266 = pneg %p51
        %p267 = pneg %p75
        %p268 = pneg %p72
        %p269 = pneg %p96
        %p270 = pneg %p93
        %p271 = pneg %p117
        %p272 = pneg %p114
        %p273 = pneg %p138
        %p274 = pneg %p135
        %p275 = pneg %p159
        %p276 = pneg %p156
        %p277 = pneg %p180
        %p278 = pneg %p177
        %p279 = pneg %p208
        %p280 = pneg %p205
        %s281 = sand.u32 %s195, 1
        %s282 = scalar_lea.sflag [#allocation3], %s281
        %s283 = sand.u32 %s195, 1
        %s284 = smul.addr %s283, 64
        %s285 = scalar_lea.vmem [#allocation2], %s284
        %p286 = scmp.lt.s32.totalorder %s25, 1
        %s287 = scalar_select %p286, %s25, 1
        %s288 = smul.addr %s287, 54
        %s289 = smul.addr %s288, 4
        %s290 = scalar_lea.vmem %s0, %s289
        %s291 = smul.u32 8, %s26
        %s293 = smul.u32 %s26, 8
        %s294 = smul.u32 %s293, 3
        %s295 = smul.addr %s294, 4
        %s296 = scalar_lea.vmem %s290, %s295
        %v297 = vld [vmem:[%s296] sm:$0xf]
        %v298 = vld [vmem:[%s296 + $0x4] sm:$0xf]
        %v299 = vld [vmem:[%s296 + $0x8] sm:$0x1]
        %v300 = vld [vmem:[%s296 + $0xc] sm:$0xf]
        %v301 = vld [vmem:[%s296 + $0x10] sm:$0xf]
        %v302 = vld [vmem:[%s296 + $0x14] sm:$0x1]
        %v303 = vld [vmem:[%s296 + $0x18] sm:$0xf]
        %v304 = vld [vmem:[%s296 + $0x1c] sm:$0xf]
        %v305 = vld [vmem:[%s296 + $0x20] sm:$0x1]
        %v306 = vld [vmem:[%s296 + $0x24] sm:$0xf]
        %v307 = vld [vmem:[%s296 + $0x28] sm:$0xf]
        %v308 = vld [vmem:[%s296 + $0x2c] sm:$0x1]
        %v309 = vld [vmem:[%s296 + $0x30] sm:$0xf]
        %v310 = vld [vmem:[%s296 + $0x34] sm:$0xf]
        %v311 = vld [vmem:[%s296 + $0x38] sm:$0x1]
        %v312 = vld [vmem:[%s296 + $0x3c] sm:$0xf]
        %v313 = vld [vmem:[%s296 + $0x40] sm:$0xf]
        %v314 = vld [vmem:[%s296 + $0x44] sm:$0x1]
        %v315 = vld [vmem:[%s296 + $0x48] sm:$0xf]
        %v316 = vld [vmem:[%s296 + $0x4c] sm:$0xf]
        %v317 = vld [vmem:[%s296 + $0x50] sm:$0x1]
        %v318 = vld [vmem:[%s296 + $0x54] sm:$0xf]
        %v319 = vld [vmem:[%s296 + $0x58] sm:$0xf]
        %v320 = vld [vmem:[%s296 + $0x5c] sm:$0x1]
        %v321 = vld [vmem:[%s296 + $0x60] sm:$0xf]
        %v322 = vld [vmem:[%s296 + $0x64] sm:$0xf]
        %v323 = vld [vmem:[%s296 + $0x68] sm:$0x1]
        %v324 = vld [vmem:[%s296 + $0x6c] sm:$0xf]
        %v325 = vld [vmem:[%s296 + $0x70] sm:$0xf]
        %v326 = vld [vmem:[%s296 + $0x74] sm:$0x1]
        %v358 = vunpack.c.l.s4 1966171168
        %v359 = vunpack.c.0.s8 %v358
        %v360 = vlaneseq
        %v361 = vshrl.u32 %v360, 7
        %v362 = vsub.s32 %v359, %v361
        %v363 = vrot.slane %v297, %v362
        %v364 = vcombine.high %v363, %v363
        %v366 = vunpack.c.l.s4 1966171168
        %v367 = vunpack.c.0.s8 %v366
        %v368 = vlaneseq
        %v369 = vshrl.u32 %v368, 7
        %v370 = vsub.s32 %v367, %v369
        %v371 = vrot.slane %v363, %v370
        %v373 = vunpack.c.l.s4 1966171168
        %v374 = vunpack.c.0.s8 %v373
        %v375 = vlaneseq
        %v376 = vshrl.u32 %v375, 7
        %v377 = vsub.s32 %v374, %v376
        %v378 = vrot.slane %v364, %v377
        %v379 = vcombine.high %v371, %v371
        %v380 = vcombine.high %v378, %v378
        %v382 = vunpack.c.l.s4 1966171168
        %v383 = vunpack.c.0.s8 %v382
        %v384 = vlaneseq
        %v385 = vshrl.u32 %v384, 7
        %v386 = vsub.s32 %v383, %v385
        %v387 = vrot.slane %v298, %v386
        %v388 = vcombine.high %v387, %v387
        %v390 = vunpack.c.l.s4 1966171168
        %v391 = vunpack.c.0.s8 %v390
        %v392 = vlaneseq
        %v393 = vshrl.u32 %v392, 7
        %v394 = vsub.s32 %v391, %v393
        %v395 = vrot.slane %v387, %v394
        %v397 = vunpack.c.l.s4 1966171168
        %v398 = vunpack.c.0.s8 %v397
        %v399 = vlaneseq
        %v400 = vshrl.u32 %v399, 7
        %v401 = vsub.s32 %v398, %v400
        %v402 = vrot.slane %v388, %v401
        %v403 = vcombine.high %v395, %v395
        %v404 = vcombine.high %v402, %v402
        %v406 = vunpack.c.l.s4 1966171168
        %v407 = vunpack.c.0.s8 %v406
        %v408 = vlaneseq
        %v409 = vshrl.u32 %v408, 7
        %v410 = vsub.s32 %v407, %v409
        %v411 = vrot.slane %v299, %v410
        %v413 = vunpack.c.l.s4 1966171168
        %v414 = vunpack.c.0.s8 %v413
        %v415 = vlaneseq
        %v416 = vshrl.u32 %v415, 7
        %v417 = vsub.s32 %v414, %v416
        %v418 = vrot.slane %v411, %v417
        %v420 = vunpack.c.l.s4 1966171168
        %v421 = vunpack.c.0.s8 %v420
        %v422 = vlaneseq
        %v423 = vshrl.u32 %v422, 7
        %v424 = vsub.s32 %v421, %v423
        %v425 = vrot.slane %v300, %v424
        %v426 = vcombine.high %v425, %v425
        %v428 = vunpack.c.l.s4 1966171168
        %v429 = vunpack.c.0.s8 %v428
        %v430 = vlaneseq
        %v431 = vshrl.u32 %v430, 7
        %v432 = vsub.s32 %v429, %v431
        %v433 = vrot.slane %v425, %v432
        %v435 = vunpack.c.l.s4 1966171168
        %v436 = vunpack.c.0.s8 %v435
        %v437 = vlaneseq
        %v438 = vshrl.u32 %v437, 7
        %v439 = vsub.s32 %v436, %v438
        %v440 = vrot.slane %v426, %v439
        %v441 = vcombine.high %v433, %v433
        %v442 = vcombine.high %v440, %v440
        %v444 = vunpack.c.l.s4 1966171168
        %v445 = vunpack.c.0.s8 %v444
        %v446 = vlaneseq
        %v447 = vshrl.u32 %v446, 7
        %v448 = vsub.s32 %v445, %v447
        %v449 = vrot.slane %v301, %v448
        %v450 = vcombine.high %v449, %v449
        %v452 = vunpack.c.l.s4 1966171168
        %v453 = vunpack.c.0.s8 %v452
        %v454 = vlaneseq
        %v455 = vshrl.u32 %v454, 7
        %v456 = vsub.s32 %v453, %v455
        %v457 = vrot.slane %v449, %v456
        %v459 = vunpack.c.l.s4 1966171168
        %v460 = vunpack.c.0.s8 %v459
        %v461 = vlaneseq
        %v462 = vshrl.u32 %v461, 7
        %v463 = vsub.s32 %v460, %v462
        %v464 = vrot.slane %v450, %v463
        %v465 = vcombine.high %v457, %v457
        %v466 = vcombine.high %v464, %v464
        %v468 = vunpack.c.l.s4 1966171168
        %v469 = vunpack.c.0.s8 %v468
        %v470 = vlaneseq
        %v471 = vshrl.u32 %v470, 7
        %v472 = vsub.s32 %v469, %v471
        %v473 = vrot.slane %v302, %v472
        %v475 = vunpack.c.l.s4 1966171168
        %v476 = vunpack.c.0.s8 %v475
        %v477 = vlaneseq
        %v478 = vshrl.u32 %v477, 7
        %v479 = vsub.s32 %v476, %v478
        %v480 = vrot.slane %v473, %v479
        %v482 = vunpack.c.l.s4 1966171168
        %v483 = vunpack.c.0.s8 %v482
        %v484 = vlaneseq
        %v485 = vshrl.u32 %v484, 7
        %v486 = vsub.s32 %v483, %v485
        %v487 = vrot.slane %v303, %v486
        %v488 = vcombine.high %v487, %v487
        %v490 = vunpack.c.l.s4 1966171168
        %v491 = vunpack.c.0.s8 %v490
        %v492 = vlaneseq
        %v493 = vshrl.u32 %v492, 7
        %v494 = vsub.s32 %v491, %v493
        %v495 = vrot.slane %v487, %v494
        %v497 = vunpack.c.l.s4 1966171168
        %v498 = vunpack.c.0.s8 %v497
        %v499 = vlaneseq
        %v500 = vshrl.u32 %v499, 7
        %v501 = vsub.s32 %v498, %v500
        %v502 = vrot.slane %v488, %v501
        %v503 = vcombine.high %v495, %v495
        %v504 = vcombine.high %v502, %v502
        %v506 = vunpack.c.l.s4 1966171168
        %v507 = vunpack.c.0.s8 %v506
        %v508 = vlaneseq
        %v509 = vshrl.u32 %v508, 7
        %v510 = vsub.s32 %v507, %v509
        %v511 = vrot.slane %v304, %v510
        %v512 = vcombine.high %v511, %v511
        %v514 = vunpack.c.l.s4 1966171168
        %v515 = vunpack.c.0.s8 %v514
        %v516 = vlaneseq
        %v517 = vshrl.u32 %v516, 7
        %v518 = vsub.s32 %v515, %v517
        %v519 = vrot.slane %v511, %v518
        %v521 = vunpack.c.l.s4 1966171168
        %v522 = vunpack.c.0.s8 %v521
        %v523 = vlaneseq
        %v524 = vshrl.u32 %v523, 7
        %v525 = vsub.s32 %v522, %v524
        %v526 = vrot.slane %v512, %v525
        %v527 = vcombine.high %v519, %v519
        %v528 = vcombine.high %v526, %v526
        %v530 = vunpack.c.l.s4 1966171168
        %v531 = vunpack.c.0.s8 %v530
        %v532 = vlaneseq
        %v533 = vshrl.u32 %v532, 7
        %v534 = vsub.s32 %v531, %v533
        %v535 = vrot.slane %v305, %v534
        %v537 = vunpack.c.l.s4 1966171168
        %v538 = vunpack.c.0.s8 %v537
        %v539 = vlaneseq
        %v540 = vshrl.u32 %v539, 7
        %v541 = vsub.s32 %v538, %v540
        %v542 = vrot.slane %v535, %v541
        %v544 = vunpack.c.l.s4 1966171168
        %v545 = vunpack.c.0.s8 %v544
        %v546 = vlaneseq
        %v547 = vshrl.u32 %v546, 7
        %v548 = vsub.s32 %v545, %v547
        %v549 = vrot.slane %v306, %v548
        %v550 = vcombine.high %v549, %v549
        %v552 = vunpack.c.l.s4 1966171168
        %v553 = vunpack.c.0.s8 %v552
        %v554 = vlaneseq
        %v555 = vshrl.u32 %v554, 7
        %v556 = vsub.s32 %v553, %v555
        %v557 = vrot.slane %v549, %v556
        %v559 = vunpack.c.l.s4 1966171168
        %v560 = vunpack.c.0.s8 %v559
        %v561 = vlaneseq
        %v562 = vshrl.u32 %v561, 7
        %v563 = vsub.s32 %v560, %v562
        %v564 = vrot.slane %v550, %v563
        %v565 = vcombine.high %v557, %v557
        %v566 = vcombine.high %v564, %v564
        %v568 = vunpack.c.l.s4 1966171168
        %v569 = vunpack.c.0.s8 %v568
        %v570 = vlaneseq
        %v571 = vshrl.u32 %v570, 7
        %v572 = vsub.s32 %v569, %v571
        %v573 = vrot.slane %v307, %v572
        %v574 = vcombine.high %v573, %v573
        %v576 = vunpack.c.l.s4 1966171168
        %v577 = vunpack.c.0.s8 %v576
        %v578 = vlaneseq
        %v579 = vshrl.u32 %v578, 7
        %v580 = vsub.s32 %v577, %v579
        %v581 = vrot.slane %v573, %v580
        %v583 = vunpack.c.l.s4 1966171168
        %v584 = vunpack.c.0.s8 %v583
        %v585 = vlaneseq
        %v586 = vshrl.u32 %v585, 7
        %v587 = vsub.s32 %v584, %v586
        %v588 = vrot.slane %v574, %v587
        %v589 = vcombine.high %v581, %v581
        %v590 = vcombine.high %v588, %v588
        %v592 = vunpack.c.l.s4 1966171168
        %v593 = vunpack.c.0.s8 %v592
        %v594 = vlaneseq
        %v595 = vshrl.u32 %v594, 7
        %v596 = vsub.s32 %v593, %v595
        %v597 = vrot.slane %v308, %v596
        %v599 = vunpack.c.l.s4 1966171168
        %v600 = vunpack.c.0.s8 %v599
        %v601 = vlaneseq
        %v602 = vshrl.u32 %v601, 7
        %v603 = vsub.s32 %v600, %v602
        %v604 = vrot.slane %v597, %v603
        %v606 = vunpack.c.l.s4 1966171168
        %v607 = vunpack.c.0.s8 %v606
        %v608 = vlaneseq
        %v609 = vshrl.u32 %v608, 7
        %v610 = vsub.s32 %v607, %v609
        %v611 = vrot.slane %v309, %v610
        %v612 = vcombine.high %v611, %v611
        %v614 = vunpack.c.l.s4 1966171168
        %v615 = vunpack.c.0.s8 %v614
        %v616 = vlaneseq
        %v617 = vshrl.u32 %v616, 7
        %v618 = vsub.s32 %v615, %v617
        %v619 = vrot.slane %v611, %v618
        %v621 = vunpack.c.l.s4 1966171168
        %v622 = vunpack.c.0.s8 %v621
        %v623 = vlaneseq
        %v624 = vshrl.u32 %v623, 7
        %v625 = vsub.s32 %v622, %v624
        %v626 = vrot.slane %v612, %v625
        %v627 = vcombine.high %v619, %v619
        %v628 = vcombine.high %v626, %v626
        %v630 = vunpack.c.l.s4 1966171168
        %v631 = vunpack.c.0.s8 %v630
        %v632 = vlaneseq
        %v633 = vshrl.u32 %v632, 7
        %v634 = vsub.s32 %v631, %v633
        %v635 = vrot.slane %v310, %v634
        %v636 = vcombine.high %v635, %v635
        %v638 = vunpack.c.l.s4 1966171168
        %v639 = vunpack.c.0.s8 %v638
        %v640 = vlaneseq
        %v641 = vshrl.u32 %v640, 7
        %v642 = vsub.s32 %v639, %v641
        %v643 = vrot.slane %v635, %v642
        %v645 = vunpack.c.l.s4 1966171168
        %v646 = vunpack.c.0.s8 %v645
        %v647 = vlaneseq
        %v648 = vshrl.u32 %v647, 7
        %v649 = vsub.s32 %v646, %v648
        %v650 = vrot.slane %v636, %v649
        %v651 = vcombine.high %v643, %v643
        %v652 = vcombine.high %v650, %v650
        %v654 = vunpack.c.l.s4 1966171168
        %v655 = vunpack.c.0.s8 %v654
        %v656 = vlaneseq
        %v657 = vshrl.u32 %v656, 7
        %v658 = vsub.s32 %v655, %v657
        %v659 = vrot.slane %v311, %v658
        %v661 = vunpack.c.l.s4 1966171168
        %v662 = vunpack.c.0.s8 %v661
        %v663 = vlaneseq
        %v664 = vshrl.u32 %v663, 7
        %v665 = vsub.s32 %v662, %v664
        %v666 = vrot.slane %v659, %v665
        %v668 = vunpack.c.l.s4 1966171168
        %v669 = vunpack.c.0.s8 %v668
        %v670 = vlaneseq
        %v671 = vshrl.u32 %v670, 7
        %v672 = vsub.s32 %v669, %v671
        %v673 = vrot.slane %v312, %v672
        %v674 = vcombine.high %v673, %v673
        %v676 = vunpack.c.l.s4 1966171168
        %v677 = vunpack.c.0.s8 %v676
        %v678 = vlaneseq
        %v679 = vshrl.u32 %v678, 7
        %v680 = vsub.s32 %v677, %v679
        %v681 = vrot.slane %v673, %v680
        %v683 = vunpack.c.l.s4 1966171168
        %v684 = vunpack.c.0.s8 %v683
        %v685 = vlaneseq
        %v686 = vshrl.u32 %v685, 7
        %v687 = vsub.s32 %v684, %v686
        %v688 = vrot.slane %v674, %v687
        %v689 = vcombine.high %v681, %v681
        %v690 = vcombine.high %v688, %v688
        %v692 = vunpack.c.l.s4 1966171168
        %v693 = vunpack.c.0.s8 %v692
        %v694 = vlaneseq
        %v695 = vshrl.u32 %v694, 7
        %v696 = vsub.s32 %v693, %v695
        %v697 = vrot.slane %v313, %v696
        %v698 = vcombine.high %v697, %v697
        %v700 = vunpack.c.l.s4 1966171168
        %v701 = vunpack.c.0.s8 %v700
        %v702 = vlaneseq
        %v703 = vshrl.u32 %v702, 7
        %v704 = vsub.s32 %v701, %v703
        %v705 = vrot.slane %v697, %v704
        %v707 = vunpack.c.l.s4 1966171168
        %v708 = vunpack.c.0.s8 %v707
        %v709 = vlaneseq
        %v710 = vshrl.u32 %v709, 7
        %v711 = vsub.s32 %v708, %v710
        %v712 = vrot.slane %v698, %v711
        %v713 = vcombine.high %v705, %v705
        %v714 = vcombine.high %v712, %v712
        %v716 = vunpack.c.l.s4 1966171168
        %v717 = vunpack.c.0.s8 %v716
        %v718 = vlaneseq
        %v719 = vshrl.u32 %v718, 7
        %v720 = vsub.s32 %v717, %v719
        %v721 = vrot.slane %v314, %v720
        %v723 = vunpack.c.l.s4 1966171168
        %v724 = vunpack.c.0.s8 %v723
        %v725 = vlaneseq
        %v726 = vshrl.u32 %v725, 7
        %v727 = vsub.s32 %v724, %v726
        %v728 = vrot.slane %v721, %v727
        %v730 = vunpack.c.l.s4 1966171168
        %v731 = vunpack.c.0.s8 %v730
        %v732 = vlaneseq
        %v733 = vshrl.u32 %v732, 7
        %v734 = vsub.s32 %v731, %v733
        %v735 = vrot.slane %v315, %v734
        %v736 = vcombine.high %v735, %v735
        %v738 = vunpack.c.l.s4 1966171168
        %v739 = vunpack.c.0.s8 %v738
        %v740 = vlaneseq
        %v741 = vshrl.u32 %v740, 7
        %v742 = vsub.s32 %v739, %v741
        %v743 = vrot.slane %v735, %v742
        %v745 = vunpack.c.l.s4 1966171168
        %v746 = vunpack.c.0.s8 %v745
        %v747 = vlaneseq
        %v748 = vshrl.u32 %v747, 7
        %v749 = vsub.s32 %v746, %v748
        %v750 = vrot.slane %v736, %v749
        %v751 = vcombine.high %v743, %v743
        %v752 = vcombine.high %v750, %v750
        %v754 = vunpack.c.l.s4 1966171168
        %v755 = vunpack.c.0.s8 %v754
        %v756 = vlaneseq
        %v757 = vshrl.u32 %v756, 7
        %v758 = vsub.s32 %v755, %v757
        %v759 = vrot.slane %v316, %v758
        %v760 = vcombine.high %v759, %v759
        %v762 = vunpack.c.l.s4 1966171168
        %v763 = vunpack.c.0.s8 %v762
        %v764 = vlaneseq
        %v765 = vshrl.u32 %v764, 7
        %v766 = vsub.s32 %v763, %v765
        %v767 = vrot.slane %v759, %v766
        %v769 = vunpack.c.l.s4 1966171168
        %v770 = vunpack.c.0.s8 %v769
        %v771 = vlaneseq
        %v772 = vshrl.u32 %v771, 7
        %v773 = vsub.s32 %v770, %v772
        %v774 = vrot.slane %v760, %v773
        %v775 = vcombine.high %v767, %v767
        %v776 = vcombine.high %v774, %v774
        %v778 = vunpack.c.l.s4 1966171168
        %v779 = vunpack.c.0.s8 %v778
        %v780 = vlaneseq
        %v781 = vshrl.u32 %v780, 7
        %v782 = vsub.s32 %v779, %v781
        %v783 = vrot.slane %v317, %v782
        %v785 = vunpack.c.l.s4 1966171168
        %v786 = vunpack.c.0.s8 %v785
        %v787 = vlaneseq
        %v788 = vshrl.u32 %v787, 7
        %v789 = vsub.s32 %v786, %v788
        %v790 = vrot.slane %v783, %v789
        %v792 = vunpack.c.l.s4 1966171168
        %v793 = vunpack.c.0.s8 %v792
        %v794 = vlaneseq
        %v795 = vshrl.u32 %v794, 7
        %v796 = vsub.s32 %v793, %v795
        %v797 = vrot.slane %v318, %v796
        %v798 = vcombine.high %v797, %v797
        %v800 = vunpack.c.l.s4 1966171168
        %v801 = vunpack.c.0.s8 %v800
        %v802 = vlaneseq
        %v803 = vshrl.u32 %v802, 7
        %v804 = vsub.s32 %v801, %v803
        %v805 = vrot.slane %v797, %v804
        %v807 = vunpack.c.l.s4 1966171168
        %v808 = vunpack.c.0.s8 %v807
        %v809 = vlaneseq
        %v810 = vshrl.u32 %v809, 7
        %v811 = vsub.s32 %v808, %v810
        %v812 = vrot.slane %v798, %v811
        %v813 = vcombine.high %v805, %v805
        %v814 = vcombine.high %v812, %v812
        %v816 = vunpack.c.l.s4 1966171168
        %v817 = vunpack.c.0.s8 %v816
        %v818 = vlaneseq
        %v819 = vshrl.u32 %v818, 7
        %v820 = vsub.s32 %v817, %v819
        %v821 = vrot.slane %v319, %v820
        %v822 = vcombine.high %v821, %v821
        %v824 = vunpack.c.l.s4 1966171168
        %v825 = vunpack.c.0.s8 %v824
        %v826 = vlaneseq
        %v827 = vshrl.u32 %v826, 7
        %v828 = vsub.s32 %v825, %v827
        %v829 = vrot.slane %v821, %v828
        %v831 = vunpack.c.l.s4 1966171168
        %v832 = vunpack.c.0.s8 %v831
        %v833 = vlaneseq
        %v834 = vshrl.u32 %v833, 7
        %v835 = vsub.s32 %v832, %v834
        %v836 = vrot.slane %v822, %v835
        %v837 = vcombine.high %v829, %v829
        %v838 = vcombine.high %v836, %v836
        %v840 = vunpack.c.l.s4 1966171168
        %v841 = vunpack.c.0.s8 %v840
        %v842 = vlaneseq
        %v843 = vshrl.u32 %v842, 7
        %v844 = vsub.s32 %v841, %v843
        %v845 = vrot.slane %v320, %v844
        %v847 = vunpack.c.l.s4 1966171168
        %v848 = vunpack.c.0.s8 %v847
        %v849 = vlaneseq
        %v850 = vshrl.u32 %v849, 7
        %v851 = vsub.s32 %v848, %v850
        %v852 = vrot.slane %v845, %v851
        %v854 = vunpack.c.l.s4 1966171168
        %v855 = vunpack.c.0.s8 %v854
        %v856 = vlaneseq
        %v857 = vshrl.u32 %v856, 7
        %v858 = vsub.s32 %v855, %v857
        %v859 = vrot.slane %v321, %v858
        %v860 = vcombine.high %v859, %v859
        %v862 = vunpack.c.l.s4 1966171168
        %v863 = vunpack.c.0.s8 %v862
        %v864 = vlaneseq
        %v865 = vshrl.u32 %v864, 7
        %v866 = vsub.s32 %v863, %v865
        %v867 = vrot.slane %v859, %v866
        %v869 = vunpack.c.l.s4 1966171168
        %v870 = vunpack.c.0.s8 %v869
        %v871 = vlaneseq
        %v872 = vshrl.u32 %v871, 7
        %v873 = vsub.s32 %v870, %v872
        %v874 = vrot.slane %v860, %v873
        %v875 = vcombine.high %v867, %v867
        %v876 = vcombine.high %v874, %v874
        %v878 = vunpack.c.l.s4 1966171168
        %v879 = vunpack.c.0.s8 %v878
        %v880 = vlaneseq
        %v881 = vshrl.u32 %v880, 7
        %v882 = vsub.s32 %v879, %v881
        %v883 = vrot.slane %v322, %v882
        %v884 = vcombine.high %v883, %v883
        %v886 = vunpack.c.l.s4 1966171168
        %v887 = vunpack.c.0.s8 %v886
        %v888 = vlaneseq
        %v889 = vshrl.u32 %v888, 7
        %v890 = vsub.s32 %v887, %v889
        %v891 = vrot.slane %v883, %v890
        %v893 = vunpack.c.l.s4 1966171168
        %v894 = vunpack.c.0.s8 %v893
        %v895 = vlaneseq
        %v896 = vshrl.u32 %v895, 7
        %v897 = vsub.s32 %v894, %v896
        %v898 = vrot.slane %v884, %v897
        %v899 = vcombine.high %v891, %v891
        %v900 = vcombine.high %v898, %v898
        %v902 = vunpack.c.l.s4 1966171168
        %v903 = vunpack.c.0.s8 %v902
        %v904 = vlaneseq
        %v905 = vshrl.u32 %v904, 7
        %v906 = vsub.s32 %v903, %v905
        %v907 = vrot.slane %v323, %v906
        %v909 = vunpack.c.l.s4 1966171168
        %v910 = vunpack.c.0.s8 %v909
        %v911 = vlaneseq
        %v912 = vshrl.u32 %v911, 7
        %v913 = vsub.s32 %v910, %v912
        %v914 = vrot.slane %v907, %v913
        %v916 = vunpack.c.l.s4 1966171168
        %v917 = vunpack.c.0.s8 %v916
        %v918 = vlaneseq
        %v919 = vshrl.u32 %v918, 7
        %v920 = vsub.s32 %v917, %v919
        %v921 = vrot.slane %v324, %v920
        %v922 = vcombine.high %v921, %v921
        %v924 = vunpack.c.l.s4 1966171168
        %v925 = vunpack.c.0.s8 %v924
        %v926 = vlaneseq
        %v927 = vshrl.u32 %v926, 7
        %v928 = vsub.s32 %v925, %v927
        %v929 = vrot.slane %v921, %v928
        %v931 = vunpack.c.l.s4 1966171168
        %v932 = vunpack.c.0.s8 %v931
        %v933 = vlaneseq
        %v934 = vshrl.u32 %v933, 7
        %v935 = vsub.s32 %v932, %v934
        %v936 = vrot.slane %v922, %v935
        %v937 = vcombine.high %v929, %v929
        %v938 = vcombine.high %v936, %v936
        %v940 = vunpack.c.l.s4 1966171168
        %v941 = vunpack.c.0.s8 %v940
        %v942 = vlaneseq
        %v943 = vshrl.u32 %v942, 7
        %v944 = vsub.s32 %v941, %v943
        %v945 = vrot.slane %v325, %v944
        %v946 = vcombine.high %v945, %v945
        %v948 = vunpack.c.l.s4 1966171168
        %v949 = vunpack.c.0.s8 %v948
        %v950 = vlaneseq
        %v951 = vshrl.u32 %v950, 7
        %v952 = vsub.s32 %v949, %v951
        %v953 = vrot.slane %v945, %v952
        %v955 = vunpack.c.l.s4 1966171168
        %v956 = vunpack.c.0.s8 %v955
        %v957 = vlaneseq
        %v958 = vshrl.u32 %v957, 7
        %v959 = vsub.s32 %v956, %v958
        %v960 = vrot.slane %v946, %v959
        %v961 = vcombine.high %v953, %v953
        %v962 = vcombine.high %v960, %v960
        %v964 = vunpack.c.l.s4 1966171168
        %v965 = vunpack.c.0.s8 %v964
        %v966 = vlaneseq
        %v967 = vshrl.u32 %v966, 7
        %v968 = vsub.s32 %v965, %v967
        %v969 = vrot.slane %v326, %v968
        %v971 = vunpack.c.l.s4 1966171168
        %v972 = vunpack.c.0.s8 %v971
        %v973 = vlaneseq
        %v974 = vshrl.u32 %v973, 7
        %v975 = vsub.s32 %v972, %v974
        %v976 = vrot.slane %v969, %v975
        %v977 = vld [vmem:[%s1] sm:$0xf]
        %v978 = vld [vmem:[%s1 + $0x4] sm:$0xf]
        %v979 = vld [vmem:[%s1 + $0x8] sm:$0xf]
        %v980 = vld [vmem:[%s1 + $0xc] sm:$0xf]
        %v981 = vld [vmem:[%s1 + $0x10] sm:$0xf]
        %v982 = vld [vmem:[%s1 + $0x14] sm:$0xf]
        %v983 = vld [vmem:[%s1 + $0x18] sm:$0xf]
        %v984 = vld [vmem:[%s1 + $0x1c] sm:$0xf]
        %v985 = vld [vmem:[%s1 + $0x20] sm:$0xf]
        %v986 = vld [vmem:[%s1 + $0x24] sm:$0xf]
        %v987 = vld [vmem:[%s1 + $0x28] sm:$0xf]
        %v988 = vld [vmem:[%s1 + $0x2c] sm:$0xf]
        %v989 = vld [vmem:[%s1 + $0x30] sm:$0xf]
        %v990 = vld [vmem:[%s1 + $0x34] sm:$0xf]
        %v991 = vld [vmem:[%s1 + $0x38] sm:$0xf]
        %v992 = vld [vmem:[%s1 + $0x3c] sm:$0xf]
        %v993 = vld [vmem:[%s2] sm:$0x1]
        %v995 = vlaneseq
        %v996 = vshrl.u32 %v995, 7
        %v997 = vsub.s32 0, %v996
        %v998 = vrot.slane %v993, %v997
        %v1000 = vcombine.low %v371, %v378
        %v1001 = vcombine.low %v379, %v380
        %v1002 = vcombine.low %v395, %v402
        %v1003 = vcombine.low %v403, %v404
        %v1005 = vunpack.c.l.s4 1966171168
        %v1006 = vunpack.c.0.s8 %v1005
        %v1007 = vlaneseq
        %v1008 = vshrl.u32 %v1007, 7
        %v1009 = vsub.s32 %v1006, %v1008
        %v1010 = vrot.slane %v1000, %v1009
        %v1012 = vunpack.c.l.s4 1966171168
        %v1013 = vunpack.c.0.s8 %v1012
        %v1014 = vlaneseq
        %v1015 = vshrl.u32 %v1014, 7
        %v1016 = vsub.s32 %v1013, %v1015
        %v1017 = vrot.slane %v1001, %v1016
        %v1019 = vunpack.c.l.s4 1966171168
        %v1020 = vunpack.c.0.s8 %v1019
        %v1021 = vlaneseq
        %v1022 = vshrl.u32 %v1021, 7
        %v1023 = vsub.s32 %v1020, %v1022
        %v1024 = vrot.slane %v1002, %v1023
        %v1026 = vunpack.c.l.s4 1966171168
        %v1027 = vunpack.c.0.s8 %v1026
        %v1028 = vlaneseq
        %v1029 = vshrl.u32 %v1028, 7
        %v1030 = vsub.s32 %v1027, %v1029
        %v1031 = vrot.slane %v1003, %v1030
        %v1032 = vcombine.low %v1010, %v1017
        %v1033 = vcombine.low %v1024, %v1031
        %v1035 = vunpack.c.l.s4 1966171168
        %v1036 = vunpack.c.0.s8 %v1035
        %v1037 = vlaneseq
        %v1038 = vshrl.u32 %v1037, 7
        %v1039 = vsub.s32 %v1036, %v1038
        %v1040 = vrot.slane %v1032, %v1039
        %v1042 = vunpack.c.l.s4 1966171168
        %v1043 = vunpack.c.0.s8 %v1042
        %v1044 = vlaneseq
        %v1045 = vshrl.u32 %v1044, 7
        %v1046 = vsub.s32 %v1043, %v1045
        %v1047 = vrot.slane %v1033, %v1046
        %v1048 = vcombine.low %v1040, %v1047
        %v1049 = vcombine.low %v418, %v433
        %v1050 = vcombine.low %v440, %v441
        %v1051 = vcombine.low %v442, %v457
        %v1052 = vcombine.low %v464, %v465
        %v1054 = vunpack.c.l.s4 1966171168
        %v1055 = vunpack.c.0.s8 %v1054
        %v1056 = vlaneseq
        %v1057 = vshrl.u32 %v1056, 7
        %v1058 = vsub.s32 %v1055, %v1057
        %v1059 = vrot.slane %v1049, %v1058
        %v1061 = vunpack.c.l.s4 1966171168
        %v1062 = vunpack.c.0.s8 %v1061
        %v1063 = vlaneseq
        %v1064 = vshrl.u32 %v1063, 7
        %v1065 = vsub.s32 %v1062, %v1064
        %v1066 = vrot.slane %v1050, %v1065
        %v1068 = vunpack.c.l.s4 1966171168
        %v1069 = vunpack.c.0.s8 %v1068
        %v1070 = vlaneseq
        %v1071 = vshrl.u32 %v1070, 7
        %v1072 = vsub.s32 %v1069, %v1071
        %v1073 = vrot.slane %v1051, %v1072
        %v1075 = vunpack.c.l.s4 1966171168
        %v1076 = vunpack.c.0.s8 %v1075
        %v1077 = vlaneseq
        %v1078 = vshrl.u32 %v1077, 7
        %v1079 = vsub.s32 %v1076, %v1078
        %v1080 = vrot.slane %v1052, %v1079
        %v1081 = vcombine.low %v1059, %v1066
        %v1082 = vcombine.low %v1073, %v1080
        %v1084 = vunpack.c.l.s4 1966171168
        %v1085 = vunpack.c.0.s8 %v1084
        %v1086 = vlaneseq
        %v1087 = vshrl.u32 %v1086, 7
        %v1088 = vsub.s32 %v1085, %v1087
        %v1089 = vrot.slane %v1081, %v1088
        %v1091 = vunpack.c.l.s4 1966171168
        %v1092 = vunpack.c.0.s8 %v1091
        %v1093 = vlaneseq
        %v1094 = vshrl.u32 %v1093, 7
        %v1095 = vsub.s32 %v1092, %v1094
        %v1096 = vrot.slane %v1082, %v1095
        %v1097 = vcombine.low %v1089, %v1096
        %v1098 = vcombine.low %v466, %v480
        %v1099 = vcombine.low %v495, %v502
        %v1100 = vcombine.low %v503, %v504
        %v1101 = vcombine.low %v519, %v526
        %v1103 = vunpack.c.l.s4 1966171168
        %v1104 = vunpack.c.0.s8 %v1103
        %v1105 = vlaneseq
        %v1106 = vshrl.u32 %v1105, 7
        %v1107 = vsub.s32 %v1104, %v1106
        %v1108 = vrot.slane %v1098, %v1107
        %v1110 = vunpack.c.l.s4 1966171168
        %v1111 = vunpack.c.0.s8 %v1110
        %v1112 = vlaneseq
        %v1113 = vshrl.u32 %v1112, 7
        %v1114 = vsub.s32 %v1111, %v1113
        %v1115 = vrot.slane %v1099, %v1114
        %v1117 = vunpack.c.l.s4 1966171168
        %v1118 = vunpack.c.0.s8 %v1117
        %v1119 = vlaneseq
        %v1120 = vshrl.u32 %v1119, 7
        %v1121 = vsub.s32 %v1118, %v1120
        %v1122 = vrot.slane %v1100, %v1121
        %v1124 = vunpack.c.l.s4 1966171168
        %v1125 = vunpack.c.0.s8 %v1124
        %v1126 = vlaneseq
        %v1127 = vshrl.u32 %v1126, 7
        %v1128 = vsub.s32 %v1125, %v1127
        %v1129 = vrot.slane %v1101, %v1128
        %v1130 = vcombine.low %v1108, %v1115
        %v1131 = vcombine.low %v1122, %v1129
        %v1133 = vunpack.c.l.s4 1966171168
        %v1134 = vunpack.c.0.s8 %v1133
        %v1135 = vlaneseq
        %v1136 = vshrl.u32 %v1135, 7
        %v1137 = vsub.s32 %v1134, %v1136
        %v1138 = vrot.slane %v1130, %v1137
        %v1140 = vunpack.c.l.s4 1966171168
        %v1141 = vunpack.c.0.s8 %v1140
        %v1142 = vlaneseq
        %v1143 = vshrl.u32 %v1142, 7
        %v1144 = vsub.s32 %v1141, %v1143
        %v1145 = vrot.slane %v1131, %v1144
        %v1146 = vcombine.low %v1138, %v1145
        %v1147 = vcombine.low %v527, %v528
        %v1148 = vcombine.low %v542, %v557
        %v1149 = vcombine.low %v564, %v565
        %v1150 = vcombine.low %v566, %v581
        %v1152 = vunpack.c.l.s4 1966171168
        %v1153 = vunpack.c.0.s8 %v1152
        %v1154 = vlaneseq
        %v1155 = vshrl.u32 %v1154, 7
        %v1156 = vsub.s32 %v1153, %v1155
        %v1157 = vrot.slane %v1147, %v1156
        %v1159 = vunpack.c.l.s4 1966171168
        %v1160 = vunpack.c.0.s8 %v1159
        %v1161 = vlaneseq
        %v1162 = vshrl.u32 %v1161, 7
        %v1163 = vsub.s32 %v1160, %v1162
        %v1164 = vrot.slane %v1148, %v1163
        %v1166 = vunpack.c.l.s4 1966171168
        %v1167 = vunpack.c.0.s8 %v1166
        %v1168 = vlaneseq
        %v1169 = vshrl.u32 %v1168, 7
        %v1170 = vsub.s32 %v1167, %v1169
        %v1171 = vrot.slane %v1149, %v1170
        %v1173 = vunpack.c.l.s4 1966171168
        %v1174 = vunpack.c.0.s8 %v1173
        %v1175 = vlaneseq
        %v1176 = vshrl.u32 %v1175, 7
        %v1177 = vsub.s32 %v1174, %v1176
        %v1178 = vrot.slane %v1150, %v1177
        %v1179 = vcombine.low %v1157, %v1164
        %v1180 = vcombine.low %v1171, %v1178
        %v1182 = vunpack.c.l.s4 1966171168
        %v1183 = vunpack.c.0.s8 %v1182
        %v1184 = vlaneseq
        %v1185 = vshrl.u32 %v1184, 7
        %v1186 = vsub.s32 %v1183, %v1185
        %v1187 = vrot.slane %v1179, %v1186
        %v1189 = vunpack.c.l.s4 1966171168
        %v1190 = vunpack.c.0.s8 %v1189
        %v1191 = vlaneseq
        %v1192 = vshrl.u32 %v1191, 7
        %v1193 = vsub.s32 %v1190, %v1192
        %v1194 = vrot.slane %v1180, %v1193
        %v1195 = vcombine.low %v1187, %v1194
        %v1196 = vcombine.low %v588, %v589
        %v1197 = vcombine.low %v590, %v604
        %v1198 = vcombine.low %v619, %v626
        %v1199 = vcombine.low %v627, %v628
        %v1201 = vunpack.c.l.s4 1966171168
        %v1202 = vunpack.c.0.s8 %v1201
        %v1203 = vlaneseq
        %v1204 = vshrl.u32 %v1203, 7
        %v1205 = vsub.s32 %v1202, %v1204
        %v1206 = vrot.slane %v1196, %v1205
        %v1208 = vunpack.c.l.s4 1966171168
        %v1209 = vunpack.c.0.s8 %v1208
        %v1210 = vlaneseq
        %v1211 = vshrl.u32 %v1210, 7
        %v1212 = vsub.s32 %v1209, %v1211
        %v1213 = vrot.slane %v1197, %v1212
        %v1215 = vunpack.c.l.s4 1966171168
        %v1216 = vunpack.c.0.s8 %v1215
        %v1217 = vlaneseq
        %v1218 = vshrl.u32 %v1217, 7
        %v1219 = vsub.s32 %v1216, %v1218
        %v1220 = vrot.slane %v1198, %v1219
        %v1222 = vunpack.c.l.s4 1966171168
        %v1223 = vunpack.c.0.s8 %v1222
        %v1224 = vlaneseq
        %v1225 = vshrl.u32 %v1224, 7
        %v1226 = vsub.s32 %v1223, %v1225
        %v1227 = vrot.slane %v1199, %v1226
        %v1228 = vcombine.low %v1206, %v1213
        %v1229 = vcombine.low %v1220, %v1227
        %v1231 = vunpack.c.l.s4 1966171168
        %v1232 = vunpack.c.0.s8 %v1231
        %v1233 = vlaneseq
        %v1234 = vshrl.u32 %v1233, 7
        %v1235 = vsub.s32 %v1232, %v1234
        %v1236 = vrot.slane %v1228, %v1235
        %v1238 = vunpack.c.l.s4 1966171168
        %v1239 = vunpack.c.0.s8 %v1238
        %v1240 = vlaneseq
        %v1241 = vshrl.u32 %v1240, 7
        %v1242 = vsub.s32 %v1239, %v1241
        %v1243 = vrot.slane %v1229, %v1242
        %v1244 = vcombine.low %v1236, %v1243
        %v1245 = vcombine.low %v643, %v650
        %v1246 = vcombine.low %v651, %v652
        %v1247 = vcombine.low %v666, %v681
        %v1248 = vcombine.low %v688, %v689
        %v1250 = vunpack.c.l.s4 1966171168
        %v1251 = vunpack.c.0.s8 %v1250
        %v1252 = vlaneseq
        %v1253 = vshrl.u32 %v1252, 7
        %v1254 = vsub.s32 %v1251, %v1253
        %v1255 = vrot.slane %v1245, %v1254
        %v1257 = vunpack.c.l.s4 1966171168
        %v1258 = vunpack.c.0.s8 %v1257
        %v1259 = vlaneseq
        %v1260 = vshrl.u32 %v1259, 7
        %v1261 = vsub.s32 %v1258, %v1260
        %v1262 = vrot.slane %v1246, %v1261
        %v1264 = vunpack.c.l.s4 1966171168
        %v1265 = vunpack.c.0.s8 %v1264
        %v1266 = vlaneseq
        %v1267 = vshrl.u32 %v1266, 7
        %v1268 = vsub.s32 %v1265, %v1267
        %v1269 = vrot.slane %v1247, %v1268
        %v1271 = vunpack.c.l.s4 1966171168
        %v1272 = vunpack.c.0.s8 %v1271
        %v1273 = vlaneseq
        %v1274 = vshrl.u32 %v1273, 7
        %v1275 = vsub.s32 %v1272, %v1274
        %v1276 = vrot.slane %v1248, %v1275
        %v1277 = vcombine.low %v1255, %v1262
        %v1278 = vcombine.low %v1269, %v1276
        %v1280 = vunpack.c.l.s4 1966171168
        %v1281 = vunpack.c.0.s8 %v1280
        %v1282 = vlaneseq
        %v1283 = vshrl.u32 %v1282, 7
        %v1284 = vsub.s32 %v1281, %v1283
        %v1285 = vrot.slane %v1277, %v1284
        %v1287 = vunpack.c.l.s4 1966171168
        %v1288 = vunpack.c.0.s8 %v1287
        %v1289 = vlaneseq
        %v1290 = vshrl.u32 %v1289, 7
        %v1291 = vsub.s32 %v1288, %v1290
        %v1292 = vrot.slane %v1278, %v1291
        %v1293 = vcombine.low %v1285, %v1292
        %v1294 = vcombine.low %v690, %v705
        %v1295 = vcombine.low %v712, %v713
        %v1296 = vcombine.low %v714, %v728
        %v1297 = vcombine.low %v743, %v750
        %v1299 = vunpack.c.l.s4 1966171168
        %v1300 = vunpack.c.0.s8 %v1299
        %v1301 = vlaneseq
        %v1302 = vshrl.u32 %v1301, 7
        %v1303 = vsub.s32 %v1300, %v1302
        %v1304 = vrot.slane %v1294, %v1303
        %v1306 = vunpack.c.l.s4 1966171168
        %v1307 = vunpack.c.0.s8 %v1306
        %v1308 = vlaneseq
        %v1309 = vshrl.u32 %v1308, 7
        %v1310 = vsub.s32 %v1307, %v1309
        %v1311 = vrot.slane %v1295, %v1310
        %v1313 = vunpack.c.l.s4 1966171168
        %v1314 = vunpack.c.0.s8 %v1313
        %v1315 = vlaneseq
        %v1316 = vshrl.u32 %v1315, 7
        %v1317 = vsub.s32 %v1314, %v1316
        %v1318 = vrot.slane %v1296, %v1317
        %v1320 = vunpack.c.l.s4 1966171168
        %v1321 = vunpack.c.0.s8 %v1320
        %v1322 = vlaneseq
        %v1323 = vshrl.u32 %v1322, 7
        %v1324 = vsub.s32 %v1321, %v1323
        %v1325 = vrot.slane %v1297, %v1324
        %v1326 = vcombine.low %v1304, %v1311
        %v1327 = vcombine.low %v1318, %v1325
        %v1329 = vunpack.c.l.s4 1966171168
        %v1330 = vunpack.c.0.s8 %v1329
        %v1331 = vlaneseq
        %v1332 = vshrl.u32 %v1331, 7
        %v1333 = vsub.s32 %v1330, %v1332
        %v1334 = vrot.slane %v1326, %v1333
        %v1336 = vunpack.c.l.s4 1966171168
        %v1337 = vunpack.c.0.s8 %v1336
        %v1338 = vlaneseq
        %v1339 = vshrl.u32 %v1338, 7
        %v1340 = vsub.s32 %v1337, %v1339
        %v1341 = vrot.slane %v1327, %v1340
        %v1342 = vcombine.low %v1334, %v1341
        %v1343 = vcombine.low %v751, %v752
        %v1344 = vcombine.low %v767, %v774
        %v1345 = vcombine.low %v775, %v776
        %v1346 = vcombine.low %v790, %v805
        %v1348 = vunpack.c.l.s4 1966171168
        %v1349 = vunpack.c.0.s8 %v1348
        %v1350 = vlaneseq
        %v1351 = vshrl.u32 %v1350, 7
        %v1352 = vsub.s32 %v1349, %v1351
        %v1353 = vrot.slane %v1343, %v1352
        %v1355 = vunpack.c.l.s4 1966171168
        %v1356 = vunpack.c.0.s8 %v1355
        %v1357 = vlaneseq
        %v1358 = vshrl.u32 %v1357, 7
        %v1359 = vsub.s32 %v1356, %v1358
        %v1360 = vrot.slane %v1344, %v1359
        %v1362 = vunpack.c.l.s4 1966171168
        %v1363 = vunpack.c.0.s8 %v1362
        %v1364 = vlaneseq
        %v1365 = vshrl.u32 %v1364, 7
        %v1366 = vsub.s32 %v1363, %v1365
        %v1367 = vrot.slane %v1345, %v1366
        %v1369 = vunpack.c.l.s4 1966171168
        %v1370 = vunpack.c.0.s8 %v1369
        %v1371 = vlaneseq
        %v1372 = vshrl.u32 %v1371, 7
        %v1373 = vsub.s32 %v1370, %v1372
        %v1374 = vrot.slane %v1346, %v1373
        %v1375 = vcombine.low %v1353, %v1360
        %v1376 = vcombine.low %v1367, %v1374
        %v1378 = vunpack.c.l.s4 1966171168
        %v1379 = vunpack.c.0.s8 %v1378
        %v1380 = vlaneseq
        %v1381 = vshrl.u32 %v1380, 7
        %v1382 = vsub.s32 %v1379, %v1381
        %v1383 = vrot.slane %v1375, %v1382
        %v1385 = vunpack.c.l.s4 1966171168
        %v1386 = vunpack.c.0.s8 %v1385
        %v1387 = vlaneseq
        %v1388 = vshrl.u32 %v1387, 7
        %v1389 = vsub.s32 %v1386, %v1388
        %v1390 = vrot.slane %v1376, %v1389
        %v1391 = vcombine.low %v1383, %v1390
        %v1392 = vcombine.low %v812, %v813
        %v1393 = vcombine.low %v814, %v829
        %v1394 = vcombine.low %v836, %v837
        %v1395 = vcombine.low %v838, %v852
        %v1397 = vunpack.c.l.s4 1966171168
        %v1398 = vunpack.c.0.s8 %v1397
        %v1399 = vlaneseq
        %v1400 = vshrl.u32 %v1399, 7
        %v1401 = vsub.s32 %v1398, %v1400
        %v1402 = vrot.slane %v1392, %v1401
        %v1404 = vunpack.c.l.s4 1966171168
        %v1405 = vunpack.c.0.s8 %v1404
        %v1406 = vlaneseq
        %v1407 = vshrl.u32 %v1406, 7
        %v1408 = vsub.s32 %v1405, %v1407
        %v1409 = vrot.slane %v1393, %v1408
        %v1411 = vunpack.c.l.s4 1966171168
        %v1412 = vunpack.c.0.s8 %v1411
        %v1413 = vlaneseq
        %v1414 = vshrl.u32 %v1413, 7
        %v1415 = vsub.s32 %v1412, %v1414
        %v1416 = vrot.slane %v1394, %v1415
        %v1418 = vunpack.c.l.s4 1966171168
        %v1419 = vunpack.c.0.s8 %v1418
        %v1420 = vlaneseq
        %v1421 = vshrl.u32 %v1420, 7
        %v1422 = vsub.s32 %v1419, %v1421
        %v1423 = vrot.slane %v1395, %v1422
        %v1424 = vcombine.low %v1402, %v1409
        %v1425 = vcombine.low %v1416, %v1423
        %v1427 = vunpack.c.l.s4 1966171168
        %v1428 = vunpack.c.0.s8 %v1427
        %v1429 = vlaneseq
        %v1430 = vshrl.u32 %v1429, 7
        %v1431 = vsub.s32 %v1428, %v1430
        %v1432 = vrot.slane %v1424, %v1431
        %v1434 = vunpack.c.l.s4 1966171168
        %v1435 = vunpack.c.0.s8 %v1434
        %v1436 = vlaneseq
        %v1437 = vshrl.u32 %v1436, 7
        %v1438 = vsub.s32 %v1435, %v1437
        %v1439 = vrot.slane %v1425, %v1438
        %v1440 = vcombine.low %v1432, %v1439
        %v1441 = vcombine.low %v867, %v874
        %v1442 = vcombine.low %v875, %v876
        %v1443 = vcombine.low %v891, %v898
        %v1444 = vcombine.low %v899, %v900
        %v1446 = vunpack.c.l.s4 1966171168
        %v1447 = vunpack.c.0.s8 %v1446
        %v1448 = vlaneseq
        %v1449 = vshrl.u32 %v1448, 7
        %v1450 = vsub.s32 %v1447, %v1449
        %v1451 = vrot.slane %v1441, %v1450
        %v1453 = vunpack.c.l.s4 1966171168
        %v1454 = vunpack.c.0.s8 %v1453
        %v1455 = vlaneseq
        %v1456 = vshrl.u32 %v1455, 7
        %v1457 = vsub.s32 %v1454, %v1456
        %v1458 = vrot.slane %v1442, %v1457
        %v1460 = vunpack.c.l.s4 1966171168
        %v1461 = vunpack.c.0.s8 %v1460
        %v1462 = vlaneseq
        %v1463 = vshrl.u32 %v1462, 7
        %v1464 = vsub.s32 %v1461, %v1463
        %v1465 = vrot.slane %v1443, %v1464
        %v1467 = vunpack.c.l.s4 1966171168
        %v1468 = vunpack.c.0.s8 %v1467
        %v1469 = vlaneseq
        %v1470 = vshrl.u32 %v1469, 7
        %v1471 = vsub.s32 %v1468, %v1470
        %v1472 = vrot.slane %v1444, %v1471
        %v1473 = vcombine.low %v1451, %v1458
        %v1474 = vcombine.low %v1465, %v1472
        %v1476 = vunpack.c.l.s4 1966171168
        %v1477 = vunpack.c.0.s8 %v1476
        %v1478 = vlaneseq
        %v1479 = vshrl.u32 %v1478, 7
        %v1480 = vsub.s32 %v1477, %v1479
        %v1481 = vrot.slane %v1473, %v1480
        %v1483 = vunpack.c.l.s4 1966171168
        %v1484 = vunpack.c.0.s8 %v1483
        %v1485 = vlaneseq
        %v1486 = vshrl.u32 %v1485, 7
        %v1487 = vsub.s32 %v1484, %v1486
        %v1488 = vrot.slane %v1474, %v1487
        %v1489 = vcombine.low %v1481, %v1488
        %v1490 = vcombine.low %v914, %v929
        %v1491 = vcombine.low %v936, %v937
        %v1492 = vcombine.low %v938, %v953
        %v1493 = vcombine.low %v960, %v961
        %v1495 = vunpack.c.l.s4 1966171168
        %v1496 = vunpack.c.0.s8 %v1495
        %v1497 = vlaneseq
        %v1498 = vshrl.u32 %v1497, 7
        %v1499 = vsub.s32 %v1496, %v1498
        %v1500 = vrot.slane %v1490, %v1499
        %v1502 = vunpack.c.l.s4 1966171168
        %v1503 = vunpack.c.0.s8 %v1502
        %v1504 = vlaneseq
        %v1505 = vshrl.u32 %v1504, 7
        %v1506 = vsub.s32 %v1503, %v1505
        %v1507 = vrot.slane %v1491, %v1506
        %v1509 = vunpack.c.l.s4 1966171168
        %v1510 = vunpack.c.0.s8 %v1509
        %v1511 = vlaneseq
        %v1512 = vshrl.u32 %v1511, 7
        %v1513 = vsub.s32 %v1510, %v1512
        %v1514 = vrot.slane %v1492, %v1513
        %v1516 = vunpack.c.l.s4 1966171168
        %v1517 = vunpack.c.0.s8 %v1516
        %v1518 = vlaneseq
        %v1519 = vshrl.u32 %v1518, 7
        %v1520 = vsub.s32 %v1517, %v1519
        %v1521 = vrot.slane %v1493, %v1520
        %v1522 = vcombine.low %v1500, %v1507
        %v1523 = vcombine.low %v1514, %v1521
        %v1525 = vunpack.c.l.s4 1966171168
        %v1526 = vunpack.c.0.s8 %v1525
        %v1527 = vlaneseq
        %v1528 = vshrl.u32 %v1527, 7
        %v1529 = vsub.s32 %v1526, %v1528
        %v1530 = vrot.slane %v1522, %v1529
        %v1532 = vunpack.c.l.s4 1966171168
        %v1533 = vunpack.c.0.s8 %v1532
        %v1534 = vlaneseq
        %v1535 = vshrl.u32 %v1534, 7
        %v1536 = vsub.s32 %v1533, %v1535
        %v1537 = vrot.slane %v1523, %v1536
        %v1538 = vcombine.low %v1530, %v1537
        %v1539 = vcombine.low %v962, %v976
        %v1541 = vunpack.c.l.s4 1966171168
        %v1542 = vunpack.c.0.s8 %v1541
        %v1543 = vlaneseq
        %v1544 = vshrl.u32 %v1543, 7
        %v1545 = vsub.s32 %v1542, %v1544
        %v1546 = vrot.slane %v1539, %v1545
        %v1548 = vunpack.c.l.s4 1966171168
        %v1549 = vunpack.c.0.s8 %v1548
        %v1550 = vlaneseq
        %v1551 = vshrl.u32 %v1550, 7
        %v1552 = vsub.s32 %v1549, %v1551
        %v1553 = vrot.slane %v1546, %v1552
        %v1582 = vunpack.c.l.b16 %v977
        %v1583 = vunpack.c.l.b16 %v978
        %v1584 = vunpack.c.l.b16 %v979
        %v1585 = vunpack.c.l.b16 %v980
        %v1586 = vunpack.c.l.b16 %v981
        %v1587 = vunpack.c.l.b16 %v982
        %v1588 = vunpack.c.l.b16 %v983
        %v1589 = vunpack.c.l.b16 %v984
        %v1590 = vunpack.c.l.b16 %v985
        %v1591 = vunpack.c.l.b16 %v986
        %v1592 = vunpack.c.l.b16 %v987
        %v1593 = vunpack.c.l.b16 %v988
        %v1594 = vunpack.c.l.b16 %v989
        %v1595 = vunpack.c.l.b16 %v990
        %v1596 = vunpack.c.l.b16 %v991
        %v1597 = vunpack.c.l.b16 %v992
        %v1598 = vpack.c.b16 %v1583, %v1582
        %v1599 = vpack.c.b16 %v1585, %v1584
        %v1600 = vpack.c.b16 %v1587, %v1586
        %v1601 = vpack.c.b16 %v1589, %v1588
        %v1602 = vpack.c.b16 %v1591, %v1590
        %v1603 = vpack.c.b16 %v1593, %v1592
        %v1604 = vpack.c.b16 %v1595, %v1594
        %v1605 = vpack.c.b16 %v1597, %v1596
        %1614 = vmatprep.subr.bf16.mxu0 0
        %1615 = vmatpush1.bf16.msra.mxu0 %v1598
        %1616 = vmatprep.subr.bf16.mxu0 0
        %1617 = vmatpush1.bf16.msra.mxu0 %v1599
        %1618 = vmatprep.subr.bf16.mxu0 0
        %1619 = vmatpush1.bf16.msra.mxu0 %v1600
        %1620 = vmatprep.subr.bf16.mxu0 0
        %1621 = vmatpush1.bf16.msra.mxu0 %v1601
        %1622 = vmatprep.subr.bf16.mxu0 0
        %1623 = vmatpush1.bf16.msra.mxu0 %v1602
        %1624 = vmatprep.subr.bf16.mxu0 0
        %1625 = vmatpush1.bf16.msra.mxu0 %v1603
        %1626 = vmatprep.subr.bf16.mxu0 0
        %1627 = vmatpush1.bf16.msra.mxu0 %v1604
        %1628 = vmatprep.subr.bf16.mxu0 0
        %1629 = vmatpush1.bf16.msra.mxu0 %v1605
        %1630 = vmatprep.subr.bf16.mxu0 0
        %1631 = vmatpush1.bf16.msra.mxu0 0
        %1632 = vmatprep.subr.bf16.mxu0 0
        %1633 = vmatpush1.bf16.msra.mxu0 0
        %1634 = vmatprep.subr.bf16.mxu0 0
        %1635 = vmatpush1.bf16.msra.mxu0 0
        %1636 = vmatprep.subr.bf16.mxu0 0
        %1637 = vmatpush1.bf16.msra.mxu0 0
        %1638 = vmatprep.subr.bf16.mxu0 0
        %1639 = vmatpush1.bf16.msra.mxu0 0
        %1640 = vmatprep.subr.bf16.mxu0 0
        %1641 = vmatpush1.bf16.msra.mxu0 0
        %1642 = vmatprep.subr.bf16.mxu0 0
        %1643 = vmatpush1.bf16.msra.mxu0 0
        %1644 = vmatprep.subr.bf16.mxu0 0
        %1645 = vmatpush1.bf16.msra.mxu0 0
        %1646 = vmatprep.mubr.bf16.mxu0 0
        %1647 = vmatmul.mubr.bf16.gmra.mrb[0].mxu0 %v1048
        %v1648 = vpop.f32.mrb[0].mxu0
        %v1649 = vadd.f32 %v998, %v1648
        %v1650 = vpop.f32.mrb[0].mxu0
        %v1651 = vpop.f32.mrb[0].mxu0
        %v1652 = vadd.f32 %v998, %v1651
        %v1653 = vpop.f32.mrb[0].mxu0
        %1654 = vmatprep.mubr.bf16.mxu0 0
        %1655 = vmatmul.mubr.bf16.gmra.mrb[0].mxu0 %v1097
        %v1656 = vpop.f32.mrb[0].mxu0
        %v1657 = vadd.f32 %v998, %v1656
        %v1658 = vpop.f32.mrb[0].mxu0
        %v1659 = vpop.f32.mrb[0].mxu0
        %v1660 = vadd.f32 %v998, %v1659
        %v1661 = vpop.f32.mrb[0].mxu0
        %1662 = vmatprep.mubr.bf16.mxu0 0
        %1663 = vmatmul.mubr.bf16.gmra.mrb[0].mxu0 %v1146
        %v1664 = vpop.f32.mrb[0].mxu0
        %v1665 = vadd.f32 %v998, %v1664
        %v1666 = vpop.f32.mrb[0].mxu0
        %v1667 = vpop.f32.mrb[0].mxu0
        %v1668 = vadd.f32 %v998, %v1667
        %v1669 = vpop.f32.mrb[0].mxu0
        %1670 = vmatprep.mubr.bf16.mxu0 0
        %1671 = vmatmul.mubr.bf16.gmra.mrb[0].mxu0 %v1195
        %v1672 = vpop.f32.mrb[0].mxu0
        %v1673 = vadd.f32 %v998, %v1672
        %v1674 = vpop.f32.mrb[0].mxu0
        %v1675 = vpop.f32.mrb[0].mxu0
        %v1676 = vadd.f32 %v998, %v1675
        %v1677 = vpop.f32.mrb[0].mxu0
        %1678 = vmatprep.mubr.bf16.mxu0 0
        %1679 = vmatmul.mubr.bf16.gmra.mrb[0].mxu0 %v1244
        %v1680 = vpop.f32.mrb[0].mxu0
        %v1681 = vadd.f32 %v998, %v1680
        %v1682 = vpop.f32.mrb[0].mxu0
        %v1683 = vpop.f32.mrb[0].mxu0
        %v1684 = vadd.f32 %v998, %v1683
        %v1685 = vpop.f32.mrb[0].mxu0
        %1686 = vmatprep.mubr.bf16.mxu0 0
        %1687 = vmatmul.mubr.bf16.gmra.mrb[0].mxu0 %v1293
        %v1688 = vpop.f32.mrb[0].mxu0
        %v1689 = vadd.f32 %v998, %v1688
        %v1690 = vpop.f32.mrb[0].mxu0
        %v1691 = vpop.f32.mrb[0].mxu0
        %v1692 = vadd.f32 %v998, %v1691
        %v1693 = vpop.f32.mrb[0].mxu0
        %1694 = vmatprep.mubr.bf16.mxu0 0
        %1695 = vmatmul.mubr.bf16.gmra.mrb[0].mxu0 %v1342
        %v1696 = vpop.f32.mrb[0].mxu0
        %v1697 = vadd.f32 %v998, %v1696
        %v1698 = vpop.f32.mrb[0].mxu0
        %v1699 = vpop.f32.mrb[0].mxu0
        %v1700 = vadd.f32 %v998, %v1699
        %v1701 = vpop.f32.mrb[0].mxu0
        %1702 = vmatprep.mubr.bf16.mxu0 0
        %1703 = vmatmul.mubr.bf16.gmra.mrb[0].mxu0 %v1391
        %v1704 = vpop.f32.mrb[0].mxu0
        %v1705 = vadd.f32 %v998, %v1704
        %v1706 = vpop.f32.mrb[0].mxu0
        %v1707 = vpop.f32.mrb[0].mxu0
        %v1708 = vadd.f32 %v998, %v1707
        %v1709 = vpop.f32.mrb[0].mxu0
        %1710 = vmatprep.mubr.bf16.mxu0 0
        %1711 = vmatmul.mubr.bf16.gmra.mrb[0].mxu0 %v1440
        %v1712 = vpop.f32.mrb[0].mxu0
        %v1713 = vadd.f32 %v998, %v1712
        %v1714 = vpop.f32.mrb[0].mxu0
        %v1715 = vpop.f32.mrb[0].mxu0
        %v1716 = vadd.f32 %v998, %v1715
        %v1717 = vpop.f32.mrb[0].mxu0
        %1718 = vmatprep.mubr.bf16.mxu0 0
        %1719 = vmatmul.mubr.bf16.gmra.mrb[0].mxu0 %v1489
        %v1720 = vpop.f32.mrb[0].mxu0
        %v1721 = vadd.f32 %v998, %v1720
        %v1722 = vpop.f32.mrb[0].mxu0
        %v1723 = vpop.f32.mrb[0].mxu0
        %v1724 = vadd.f32 %v998, %v1723
        %v1725 = vpop.f32.mrb[0].mxu0
        %1726 = vmatprep.mubr.bf16.mxu0 0
        %1727 = vmatmul.mubr.bf16.gmra.mrb[0].mxu0 %v1538
        %v1728 = vpop.f32.mrb[0].mxu0
        %v1729 = vadd.f32 %v998, %v1728
        %v1730 = vpop.f32.mrb[0].mxu0
        %v1731 = vpop.f32.mrb[0].mxu0
        %v1732 = vadd.f32 %v998, %v1731
        %v1733 = vpop.f32.mrb[0].mxu0
        %1734 = vmatprep.mubr.bf16.mxu0 0
        %1735 = vmatmul.mubr.bf16.gmra.mrb[0].mxu0 %v1553
        %v1736 = vpop.f32.mrb[0].mxu0
        %v1737 = vadd.f32 %v998, %v1736
        %v1738 = vpop.f32.mrb[0].mxu0
        %v1739 = vpop.f32.mrb[0].mxu0
        %v1740 = vpop.f32.mrb[0].mxu0
        %1741 = vdwg.mxu0
        %v1742 = vmax.f32 %v1649, 0.0
        %v1743 = vmax.f32 %v1652, 0.0
        %v1744 = vmax.f32 %v1657, 0.0
        %v1745 = vmax.f32 %v1660, 0.0
        %v1746 = vmax.f32 %v1665, 0.0
        %v1747 = vmax.f32 %v1668, 0.0
        %v1748 = vmax.f32 %v1673, 0.0
        %v1749 = vmax.f32 %v1676, 0.0
        %v1750 = vmax.f32 %v1681, 0.0
        %v1751 = vmax.f32 %v1684, 0.0
        %v1752 = vmax.f32 %v1689, 0.0
        %v1753 = vmax.f32 %v1692, 0.0
        %v1754 = vmax.f32 %v1697, 0.0
        %v1755 = vmax.f32 %v1700, 0.0
        %v1756 = vmax.f32 %v1705, 0.0
        %v1757 = vmax.f32 %v1708, 0.0
        %v1758 = vmax.f32 %v1713, 0.0
        %v1759 = vmax.f32 %v1716, 0.0
        %v1760 = vmax.f32 %v1721, 0.0
        %v1761 = vmax.f32 %v1724, 0.0
        %v1762 = vmax.f32 %v1729, 0.0
        %v1763 = vmax.f32 %v1732, 0.0
        %v1764 = vmax.f32 %v1737, 0.0
        %v1788 = vcombine.high %v1742, %v1742
        %v1790 = vunpack.c.l.s4 1983009808
        %v1791 = vunpack.c.0.s8 %v1790
        %v1792 = vlaneseq
        %v1793 = vshrl.u32 %v1792, 7
        %v1794 = vsub.s32 %v1791, %v1793
        %v1795 = vrot.slane %v1742, %v1794
        %v1797 = vunpack.c.l.s4 1983009808
        %v1798 = vunpack.c.0.s8 %v1797
        %v1799 = vlaneseq
        %v1800 = vshrl.u32 %v1799, 7
        %v1801 = vsub.s32 %v1798, %v1800
        %v1802 = vrot.slane %v1788, %v1801
        %v1803 = vcombine.high %v1795, %v1795
        %v1804 = vcombine.high %v1802, %v1802
        %v1805 = vcombine.high %v1743, %v1743
        %v1807 = vunpack.c.l.s4 1983009808
        %v1808 = vunpack.c.0.s8 %v1807
        %v1809 = vlaneseq
        %v1810 = vshrl.u32 %v1809, 7
        %v1811 = vsub.s32 %v1808, %v1810
        %v1812 = vrot.slane %v1743, %v1811
        %v1814 = vunpack.c.l.s4 1983009808
        %v1815 = vunpack.c.0.s8 %v1814
        %v1816 = vlaneseq
        %v1817 = vshrl.u32 %v1816, 7
        %v1818 = vsub.s32 %v1815, %v1817
        %v1819 = vrot.slane %v1805, %v1818
        %v1820 = vcombine.high %v1812, %v1812
        %v1821 = vcombine.high %v1819, %v1819
        %v1822 = vcombine.high %v1744, %v1744
        %v1824 = vunpack.c.l.s4 1983009808
        %v1825 = vunpack.c.0.s8 %v1824
        %v1826 = vlaneseq
        %v1827 = vshrl.u32 %v1826, 7
        %v1828 = vsub.s32 %v1825, %v1827
        %v1829 = vrot.slane %v1744, %v1828
        %v1831 = vunpack.c.l.s4 1983009808
        %v1832 = vunpack.c.0.s8 %v1831
        %v1833 = vlaneseq
        %v1834 = vshrl.u32 %v1833, 7
        %v1835 = vsub.s32 %v1832, %v1834
        %v1836 = vrot.slane %v1822, %v1835
        %v1837 = vcombine.high %v1829, %v1829
        %v1838 = vcombine.high %v1836, %v1836
        %v1839 = vcombine.high %v1745, %v1745
        %v1841 = vunpack.c.l.s4 1983009808
        %v1842 = vunpack.c.0.s8 %v1841
        %v1843 = vlaneseq
        %v1844 = vshrl.u32 %v1843, 7
        %v1845 = vsub.s32 %v1842, %v1844
        %v1846 = vrot.slane %v1745, %v1845
        %v1848 = vunpack.c.l.s4 1983009808
        %v1849 = vunpack.c.0.s8 %v1848
        %v1850 = vlaneseq
        %v1851 = vshrl.u32 %v1850, 7
        %v1852 = vsub.s32 %v1849, %v1851
        %v1853 = vrot.slane %v1839, %v1852
        %v1854 = vcombine.high %v1846, %v1846
        %v1855 = vcombine.high %v1853, %v1853
        %v1856 = vcombine.high %v1746, %v1746
        %v1858 = vunpack.c.l.s4 1983009808
        %v1859 = vunpack.c.0.s8 %v1858
        %v1860 = vlaneseq
        %v1861 = vshrl.u32 %v1860, 7
        %v1862 = vsub.s32 %v1859, %v1861
        %v1863 = vrot.slane %v1746, %v1862
        %v1865 = vunpack.c.l.s4 1983009808
        %v1866 = vunpack.c.0.s8 %v1865
        %v1867 = vlaneseq
        %v1868 = vshrl.u32 %v1867, 7
        %v1869 = vsub.s32 %v1866, %v1868
        %v1870 = vrot.slane %v1856, %v1869
        %v1871 = vcombine.high %v1863, %v1863
        %v1872 = vcombine.high %v1870, %v1870
        %v1873 = vcombine.high %v1747, %v1747
        %v1875 = vunpack.c.l.s4 1983009808
        %v1876 = vunpack.c.0.s8 %v1875
        %v1877 = vlaneseq
        %v1878 = vshrl.u32 %v1877, 7
        %v1879 = vsub.s32 %v1876, %v1878
        %v1880 = vrot.slane %v1747, %v1879
        %v1882 = vunpack.c.l.s4 1983009808
        %v1883 = vunpack.c.0.s8 %v1882
        %v1884 = vlaneseq
        %v1885 = vshrl.u32 %v1884, 7
        %v1886 = vsub.s32 %v1883, %v1885
        %v1887 = vrot.slane %v1873, %v1886
        %v1888 = vcombine.high %v1880, %v1880
        %v1889 = vcombine.high %v1887, %v1887
        %v1890 = vcombine.high %v1748, %v1748
        %v1892 = vunpack.c.l.s4 1983009808
        %v1893 = vunpack.c.0.s8 %v1892
        %v1894 = vlaneseq
        %v1895 = vshrl.u32 %v1894, 7
        %v1896 = vsub.s32 %v1893, %v1895
        %v1897 = vrot.slane %v1748, %v1896
        %v1899 = vunpack.c.l.s4 1983009808
        %v1900 = vunpack.c.0.s8 %v1899
        %v1901 = vlaneseq
        %v1902 = vshrl.u32 %v1901, 7
        %v1903 = vsub.s32 %v1900, %v1902
        %v1904 = vrot.slane %v1890, %v1903
        %v1905 = vcombine.high %v1897, %v1897
        %v1906 = vcombine.high %v1904, %v1904
        %v1907 = vcombine.high %v1749, %v1749
        %v1909 = vunpack.c.l.s4 1983009808
        %v1910 = vunpack.c.0.s8 %v1909
        %v1911 = vlaneseq
        %v1912 = vshrl.u32 %v1911, 7
        %v1913 = vsub.s32 %v1910, %v1912
        %v1914 = vrot.slane %v1749, %v1913
        %v1916 = vunpack.c.l.s4 1983009808
        %v1917 = vunpack.c.0.s8 %v1916
        %v1918 = vlaneseq
        %v1919 = vshrl.u32 %v1918, 7
        %v1920 = vsub.s32 %v1917, %v1919
        %v1921 = vrot.slane %v1907, %v1920
        %v1922 = vcombine.high %v1914, %v1914
        %v1923 = vcombine.high %v1921, %v1921
        %v1924 = vcombine.high %v1750, %v1750
        %v1926 = vunpack.c.l.s4 1983009808
        %v1927 = vunpack.c.0.s8 %v1926
        %v1928 = vlaneseq
        %v1929 = vshrl.u32 %v1928, 7
        %v1930 = vsub.s32 %v1927, %v1929
        %v1931 = vrot.slane %v1750, %v1930
        %v1933 = vunpack.c.l.s4 1983009808
        %v1934 = vunpack.c.0.s8 %v1933
        %v1935 = vlaneseq
        %v1936 = vshrl.u32 %v1935, 7
        %v1937 = vsub.s32 %v1934, %v1936
        %v1938 = vrot.slane %v1924, %v1937
        %v1939 = vcombine.high %v1931, %v1931
        %v1940 = vcombine.high %v1938, %v1938
        %v1941 = vcombine.high %v1751, %v1751
        %v1943 = vunpack.c.l.s4 1983009808
        %v1944 = vunpack.c.0.s8 %v1943
        %v1945 = vlaneseq
        %v1946 = vshrl.u32 %v1945, 7
        %v1947 = vsub.s32 %v1944, %v1946
        %v1948 = vrot.slane %v1751, %v1947
        %v1950 = vunpack.c.l.s4 1983009808
        %v1951 = vunpack.c.0.s8 %v1950
        %v1952 = vlaneseq
        %v1953 = vshrl.u32 %v1952, 7
        %v1954 = vsub.s32 %v1951, %v1953
        %v1955 = vrot.slane %v1941, %v1954
        %v1956 = vcombine.high %v1948, %v1948
        %v1957 = vcombine.high %v1955, %v1955
        %v1958 = vcombine.high %v1752, %v1752
        %v1960 = vunpack.c.l.s4 1983009808
        %v1961 = vunpack.c.0.s8 %v1960
        %v1962 = vlaneseq
        %v1963 = vshrl.u32 %v1962, 7
        %v1964 = vsub.s32 %v1961, %v1963
        %v1965 = vrot.slane %v1752, %v1964
        %v1967 = vunpack.c.l.s4 1983009808
        %v1968 = vunpack.c.0.s8 %v1967
        %v1969 = vlaneseq
        %v1970 = vshrl.u32 %v1969, 7
        %v1971 = vsub.s32 %v1968, %v1970
        %v1972 = vrot.slane %v1958, %v1971
        %v1973 = vcombine.high %v1965, %v1965
        %v1974 = vcombine.high %v1972, %v1972
        %v1975 = vcombine.high %v1753, %v1753
        %v1977 = vunpack.c.l.s4 1983009808
        %v1978 = vunpack.c.0.s8 %v1977
        %v1979 = vlaneseq
        %v1980 = vshrl.u32 %v1979, 7
        %v1981 = vsub.s32 %v1978, %v1980
        %v1982 = vrot.slane %v1753, %v1981
        %v1984 = vunpack.c.l.s4 1983009808
        %v1985 = vunpack.c.0.s8 %v1984
        %v1986 = vlaneseq
        %v1987 = vshrl.u32 %v1986, 7
        %v1988 = vsub.s32 %v1985, %v1987
        %v1989 = vrot.slane %v1975, %v1988
        %v1990 = vcombine.high %v1982, %v1982
        %v1991 = vcombine.high %v1989, %v1989
        %v1992 = vcombine.high %v1754, %v1754
        %v1994 = vunpack.c.l.s4 1983009808
        %v1995 = vunpack.c.0.s8 %v1994
        %v1996 = vlaneseq
        %v1997 = vshrl.u32 %v1996, 7
        %v1998 = vsub.s32 %v1995, %v1997
        %v1999 = vrot.slane %v1754, %v1998
        %v2001 = vunpack.c.l.s4 1983009808
        %v2002 = vunpack.c.0.s8 %v2001
        %v2003 = vlaneseq
        %v2004 = vshrl.u32 %v2003, 7
        %v2005 = vsub.s32 %v2002, %v2004
        %v2006 = vrot.slane %v1992, %v2005
        %v2007 = vcombine.high %v1999, %v1999
        %v2008 = vcombine.high %v2006, %v2006
        %v2009 = vcombine.high %v1755, %v1755
        %v2011 = vunpack.c.l.s4 1983009808
        %v2012 = vunpack.c.0.s8 %v2011
        %v2013 = vlaneseq
        %v2014 = vshrl.u32 %v2013, 7
        %v2015 = vsub.s32 %v2012, %v2014
        %v2016 = vrot.slane %v1755, %v2015
        %v2018 = vunpack.c.l.s4 1983009808
        %v2019 = vunpack.c.0.s8 %v2018
        %v2020 = vlaneseq
        %v2021 = vshrl.u32 %v2020, 7
        %v2022 = vsub.s32 %v2019, %v2021
        %v2023 = vrot.slane %v2009, %v2022
        %v2024 = vcombine.high %v2016, %v2016
        %v2025 = vcombine.high %v2023, %v2023
        %v2026 = vcombine.high %v1756, %v1756
        %v2028 = vunpack.c.l.s4 1983009808
        %v2029 = vunpack.c.0.s8 %v2028
        %v2030 = vlaneseq
        %v2031 = vshrl.u32 %v2030, 7
        %v2032 = vsub.s32 %v2029, %v2031
        %v2033 = vrot.slane %v1756, %v2032
        %v2035 = vunpack.c.l.s4 1983009808
        %v2036 = vunpack.c.0.s8 %v2035
        %v2037 = vlaneseq
        %v2038 = vshrl.u32 %v2037, 7
        %v2039 = vsub.s32 %v2036, %v2038
        %v2040 = vrot.slane %v2026, %v2039
        %v2041 = vcombine.high %v2033, %v2033
        %v2042 = vcombine.high %v2040, %v2040
        %v2043 = vcombine.high %v1757, %v1757
        %v2045 = vunpack.c.l.s4 1983009808
        %v2046 = vunpack.c.0.s8 %v2045
        %v2047 = vlaneseq
        %v2048 = vshrl.u32 %v2047, 7
        %v2049 = vsub.s32 %v2046, %v2048
        %v2050 = vrot.slane %v1757, %v2049
        %v2052 = vunpack.c.l.s4 1983009808
        %v2053 = vunpack.c.0.s8 %v2052
        %v2054 = vlaneseq
        %v2055 = vshrl.u32 %v2054, 7
        %v2056 = vsub.s32 %v2053, %v2055
        %v2057 = vrot.slane %v2043, %v2056
        %v2058 = vcombine.high %v2050, %v2050
        %v2059 = vcombine.high %v2057, %v2057
        %v2060 = vcombine.high %v1758, %v1758
        %v2062 = vunpack.c.l.s4 1983009808
        %v2063 = vunpack.c.0.s8 %v2062
        %v2064 = vlaneseq
        %v2065 = vshrl.u32 %v2064, 7
        %v2066 = vsub.s32 %v2063, %v2065
        %v2067 = vrot.slane %v1758, %v2066
        %v2069 = vunpack.c.l.s4 1983009808
        %v2070 = vunpack.c.0.s8 %v2069
        %v2071 = vlaneseq
        %v2072 = vshrl.u32 %v2071, 7
        %v2073 = vsub.s32 %v2070, %v2072
        %v2074 = vrot.slane %v2060, %v2073
        %v2075 = vcombine.high %v2067, %v2067
        %v2076 = vcombine.high %v2074, %v2074
        %v2077 = vcombine.high %v1759, %v1759
        %v2079 = vunpack.c.l.s4 1983009808
        %v2080 = vunpack.c.0.s8 %v2079
        %v2081 = vlaneseq
        %v2082 = vshrl.u32 %v2081, 7
        %v2083 = vsub.s32 %v2080, %v2082
        %v2084 = vrot.slane %v1759, %v2083
        %v2086 = vunpack.c.l.s4 1983009808
        %v2087 = vunpack.c.0.s8 %v2086
        %v2088 = vlaneseq
        %v2089 = vshrl.u32 %v2088, 7
        %v2090 = vsub.s32 %v2087, %v2089
        %v2091 = vrot.slane %v2077, %v2090
        %v2092 = vcombine.high %v2084, %v2084
        %v2093 = vcombine.high %v2091, %v2091
        %v2094 = vcombine.high %v1760, %v1760
        %v2096 = vunpack.c.l.s4 1983009808
        %v2097 = vunpack.c.0.s8 %v2096
        %v2098 = vlaneseq
        %v2099 = vshrl.u32 %v2098, 7
        %v2100 = vsub.s32 %v2097, %v2099
        %v2101 = vrot.slane %v1760, %v2100
        %v2103 = vunpack.c.l.s4 1983009808
        %v2104 = vunpack.c.0.s8 %v2103
        %v2105 = vlaneseq
        %v2106 = vshrl.u32 %v2105, 7
        %v2107 = vsub.s32 %v2104, %v2106
        %v2108 = vrot.slane %v2094, %v2107
        %v2109 = vcombine.high %v2101, %v2101
        %v2110 = vcombine.high %v2108, %v2108
        %v2111 = vcombine.high %v1761, %v1761
        %v2113 = vunpack.c.l.s4 1983009808
        %v2114 = vunpack.c.0.s8 %v2113
        %v2115 = vlaneseq
        %v2116 = vshrl.u32 %v2115, 7
        %v2117 = vsub.s32 %v2114, %v2116
        %v2118 = vrot.slane %v1761, %v2117
        %v2120 = vunpack.c.l.s4 1983009808
        %v2121 = vunpack.c.0.s8 %v2120
        %v2122 = vlaneseq
        %v2123 = vshrl.u32 %v2122, 7
        %v2124 = vsub.s32 %v2121, %v2123
        %v2125 = vrot.slane %v2111, %v2124
        %v2126 = vcombine.high %v2118, %v2118
        %v2127 = vcombine.high %v2125, %v2125
        %v2128 = vcombine.high %v1762, %v1762
        %v2130 = vunpack.c.l.s4 1983009808
        %v2131 = vunpack.c.0.s8 %v2130
        %v2132 = vlaneseq
        %v2133 = vshrl.u32 %v2132, 7
        %v2134 = vsub.s32 %v2131, %v2133
        %v2135 = vrot.slane %v1762, %v2134
        %v2137 = vunpack.c.l.s4 1983009808
        %v2138 = vunpack.c.0.s8 %v2137
        %v2139 = vlaneseq
        %v2140 = vshrl.u32 %v2139, 7
        %v2141 = vsub.s32 %v2138, %v2140
        %v2142 = vrot.slane %v2128, %v2141
        %v2143 = vcombine.high %v2135, %v2135
        %v2144 = vcombine.high %v2142, %v2142
        %v2145 = vcombine.high %v1763, %v1763
        %v2147 = vunpack.c.l.s4 1983009808
        %v2148 = vunpack.c.0.s8 %v2147
        %v2149 = vlaneseq
        %v2150 = vshrl.u32 %v2149, 7
        %v2151 = vsub.s32 %v2148, %v2150
        %v2152 = vrot.slane %v1763, %v2151
        %v2154 = vunpack.c.l.s4 1983009808
        %v2155 = vunpack.c.0.s8 %v2154
        %v2156 = vlaneseq
        %v2157 = vshrl.u32 %v2156, 7
        %v2158 = vsub.s32 %v2155, %v2157
        %v2159 = vrot.slane %v2145, %v2158
        %v2160 = vcombine.high %v2152, %v2152
        %v2161 = vcombine.high %v2159, %v2159
        %v2163 = vunpack.c.l.s4 1983009808
        %v2164 = vunpack.c.0.s8 %v2163
        %v2165 = vlaneseq
        %v2166 = vshrl.u32 %v2165, 7
        %v2167 = vsub.s32 %v2164, %v2166
        %v2168 = vrot.slane %v1764, %v2167
        %v2169 = vcombine.high %v2168, %v2168
        %v2170 = vstv %s293
        %v2171 = vadd.s32 %v2170, 1
        %v2172 = vadd.s32 %v2170, 2
        %v2173 = vadd.s32 %v2170, 3
        %v2174 = vadd.s32 %v2170, 4
        %v2175 = vadd.s32 %v2170, 5
        %v2176 = vadd.s32 %v2170, 6
        %v2177 = vadd.s32 %v2170, 7
        %v2178 = vadd.s32 %v2170, 8
        %v2179 = vadd.s32 %v2170, 9
        %v2180 = vlaneseq
        %v2181 = vshrl.u32 %v2180, 7
        %v2182 = vadd.s32 %v2181, 8
        %v2183 = vadd.s32 %v2181, 16
        %vm2184 = vcmp.ge.s32.totalorder %v2170, 1
        %vm2185 = vcmp.ge.s32.totalorder %v2171, 1
        %vm2186 = vcmp.ge.s32.totalorder %v2172, 1
        %vm2187 = vcmp.ge.s32.totalorder %v2173, 1
        %vm2188 = vcmp.ge.s32.totalorder %v2174, 1
        %vm2189 = vcmp.ge.s32.totalorder %v2175, 1
        %vm2190 = vcmp.ge.s32.totalorder %v2176, 1
        %vm2191 = vcmp.ge.s32.totalorder %v2177, 1
        %vm2192 = vcmp.ge.s32.totalorder %v2178, 1
        %vm2193 = vcmp.ge.s32.totalorder %v2179, 1
        %vm2194 = vcmp.le.s32.totalorder %v2170, 16
        %vm2195 = vcmp.le.s32.totalorder %v2171, 16
        %vm2196 = vcmp.le.s32.totalorder %v2172, 16
        %vm2197 = vcmp.le.s32.totalorder %v2173, 16
        %vm2198 = vcmp.le.s32.totalorder %v2174, 16
        %vm2199 = vcmp.le.s32.totalorder %v2175, 16
        %vm2200 = vcmp.le.s32.totalorder %v2176, 16
        %vm2201 = vcmp.le.s32.totalorder %v2177, 16
        %vm2202 = vcmp.le.s32.totalorder %v2178, 16
        %vm2203 = vcmp.le.s32.totalorder %v2179, 16
        %vm2204 = vmand %vm2184, %vm2194
        %vm2205 = vmand %vm2185, %vm2195
        %vm2206 = vmand %vm2186, %vm2196
        %vm2207 = vmand %vm2187, %vm2197
        %vm2208 = vmand %vm2188, %vm2198
        %vm2209 = vmand %vm2189, %vm2199
        %vm2210 = vmand %vm2190, %vm2200
        %vm2211 = vmand %vm2191, %vm2201
        %vm2212 = vmand %vm2192, %vm2202
        %vm2213 = vmand %vm2193, %vm2203
        %vm2214 = vcmp.ge.s32.totalorder %v2181, 1
        %vm2215 = vcmp.ge.s32.totalorder %v2182, 1
        %vm2216 = vcmp.ge.s32.totalorder %v2183, 1
        %vm2217 = vmand %vm2204, %vm2214
        %vm2218 = vmand %vm2204, %vm2215
        %vm2219 = vmand %vm2204, %vm2216
        %vm2220 = vmand %vm2205, %vm2214
        %vm2221 = vmand %vm2205, %vm2215
        %vm2222 = vmand %vm2205, %vm2216
        %vm2223 = vmand %vm2206, %vm2214
        %vm2224 = vmand %vm2206, %vm2215
        %vm2225 = vmand %vm2206, %vm2216
        %vm2226 = vmand %vm2207, %vm2214
        %vm2227 = vmand %vm2207, %vm2215
        %vm2228 = vmand %vm2207, %vm2216
        %vm2229 = vmand %vm2208, %vm2214
        %vm2230 = vmand %vm2208, %vm2215
        %vm2231 = vmand %vm2208, %vm2216
        %vm2232 = vmand %vm2209, %vm2214
        %vm2233 = vmand %vm2209, %vm2215
        %vm2234 = vmand %vm2209, %vm2216
        %vm2235 = vmand %vm2210, %vm2214
        %vm2236 = vmand %vm2210, %vm2215
        %vm2237 = vmand %vm2210, %vm2216
        %vm2238 = vmand %vm2211, %vm2214
        %vm2239 = vmand %vm2211, %vm2215
        %vm2240 = vmand %vm2211, %vm2216
        %vm2241 = vmand %vm2212, %vm2214
        %vm2242 = vmand %vm2212, %vm2215
        %vm2243 = vmand %vm2212, %vm2216
        %vm2244 = vmand %vm2213, %vm2214
        %vm2245 = vmand %vm2213, %vm2215
        %vm2246 = vmand %vm2213, %vm2216
        %vm2247 = vcmp.le.s32.totalorder %v2181, 16
        %vm2248 = vcmp.le.s32.totalorder %v2182, 16
        %vm2249 = vcmp.le.s32.totalorder %v2183, 16
        %vm2250 = vmand %vm2217, %vm2247
        %vm2251 = vmand %vm2218, %vm2248
        %vm2252 = vmand %vm2219, %vm2249
        %vm2253 = vmand %vm2220, %vm2247
        %vm2254 = vmand %vm2221, %vm2248
        %vm2255 = vmand %vm2222, %vm2249
        %vm2256 = vmand %vm2223, %vm2247
        %vm2257 = vmand %vm2224, %vm2248
        %vm2258 = vmand %vm2225, %vm2249
        %vm2259 = vmand %vm2226, %vm2247
        %vm2260 = vmand %vm2227, %vm2248
        %vm2261 = vmand %vm2228, %vm2249
        %vm2262 = vmand %vm2229, %vm2247
        %vm2263 = vmand %vm2230, %vm2248
        %vm2264 = vmand %vm2231, %vm2249
        %vm2265 = vmand %vm2232, %vm2247
        %vm2266 = vmand %vm2233, %vm2248
        %vm2267 = vmand %vm2234, %vm2249
        %vm2268 = vmand %vm2235, %vm2247
        %vm2269 = vmand %vm2236, %vm2248
        %vm2270 = vmand %vm2237, %vm2249
        %vm2271 = vmand %vm2238, %vm2247
        %vm2272 = vmand %vm2239, %vm2248
        %vm2273 = vmand %vm2240, %vm2249
        %vm2274 = vmand %vm2241, %vm2247
        %vm2275 = vmand %vm2242, %vm2248
        %vm2276 = vmand %vm2243, %vm2249
        %vm2277 = vmand %vm2244, %vm2247
        %vm2278 = vmand %vm2245, %vm2248
        %vm2279 = vmand %vm2246, %vm2249
        %v2280 = vcombine.low %v1795, %v1803
        %v2281 = vcombine.low %v1802, %v1804
        %v2283 = vunpack.c.l.s4 1983009808
        %v2284 = vunpack.c.0.s8 %v2283
        %v2285 = vlaneseq
        %v2286 = vshrl.u32 %v2285, 7
        %v2287 = vsub.s32 %v2284, %v2286
        %v2288 = vrot.slane %v2280, %v2287
        %v2290 = vunpack.c.l.s4 1983009808
        %v2291 = vunpack.c.0.s8 %v2290
        %v2292 = vlaneseq
        %v2293 = vshrl.u32 %v2292, 7
        %v2294 = vsub.s32 %v2291, %v2293
        %v2295 = vrot.slane %v2281, %v2294
        %v2296 = vcombine.low %v2288, %v2295
        %v2297 = vcombine.low %v1812, %v1820
        %v2298 = vcombine.low %v1819, %v1821
        %v2300 = vunpack.c.l.s4 1983009808
        %v2301 = vunpack.c.0.s8 %v2300
        %v2302 = vlaneseq
        %v2303 = vshrl.u32 %v2302, 7
        %v2304 = vsub.s32 %v2301, %v2303
        %v2305 = vrot.slane %v2297, %v2304
        %v2307 = vunpack.c.l.s4 1983009808
        %v2308 = vunpack.c.0.s8 %v2307
        %v2309 = vlaneseq
        %v2310 = vshrl.u32 %v2309, 7
        %v2311 = vsub.s32 %v2308, %v2310
        %v2312 = vrot.slane %v2298, %v2311
        %v2313 = vcombine.low %v2305, %v2312
        %v2315 = vunpack.c.l.s4 1983009808
        %v2316 = vunpack.c.0.s8 %v2315
        %v2317 = vlaneseq
        %v2318 = vshrl.u32 %v2317, 7
        %v2319 = vsub.s32 %v2316, %v2318
        %v2320 = vrot.slane %v1829, %v2319
        %v2321 = vcombine.low %v1837, %v1836
        %v2322 = vcombine.low %v1838, %v1846
        %v2324 = vunpack.c.l.s4 1983009808
        %v2325 = vunpack.c.0.s8 %v2324
        %v2326 = vlaneseq
        %v2327 = vshrl.u32 %v2326, 7
        %v2328 = vsub.s32 %v2325, %v2327
        %v2329 = vrot.slane %v2321, %v2328
        %v2331 = vunpack.c.l.s4 1983009808
        %v2332 = vunpack.c.0.s8 %v2331
        %v2333 = vlaneseq
        %v2334 = vshrl.u32 %v2333, 7
        %v2335 = vsub.s32 %v2332, %v2334
        %v2336 = vrot.slane %v2322, %v2335
        %v2337 = vcombine.low %v2329, %v2336
        %v2338 = vcombine.low %v1854, %v1853
        %v2339 = vcombine.low %v1855, %v1863
        %v2341 = vunpack.c.l.s4 1983009808
        %v2342 = vunpack.c.0.s8 %v2341
        %v2343 = vlaneseq
        %v2344 = vshrl.u32 %v2343, 7
        %v2345 = vsub.s32 %v2342, %v2344
        %v2346 = vrot.slane %v2338, %v2345
        %v2348 = vunpack.c.l.s4 1983009808
        %v2349 = vunpack.c.0.s8 %v2348
        %v2350 = vlaneseq
        %v2351 = vshrl.u32 %v2350, 7
        %v2352 = vsub.s32 %v2349, %v2351
        %v2353 = vrot.slane %v2339, %v2352
        %v2354 = vcombine.low %v2346, %v2353
        %v2356 = vunpack.c.l.s4 1983009808
        %v2357 = vunpack.c.0.s8 %v2356
        %v2358 = vlaneseq
        %v2359 = vshrl.u32 %v2358, 7
        %v2360 = vsub.s32 %v2357, %v2359
        %v2361 = vrot.slane %v1871, %v2360
        %v2362 = vcombine.low %v1870, %v1872
        %v2363 = vcombine.low %v1880, %v1888
        %v2365 = vunpack.c.l.s4 1983009808
        %v2366 = vunpack.c.0.s8 %v2365
        %v2367 = vlaneseq
        %v2368 = vshrl.u32 %v2367, 7
        %v2369 = vsub.s32 %v2366, %v2368
        %v2370 = vrot.slane %v2362, %v2369
        %v2372 = vunpack.c.l.s4 1983009808
        %v2373 = vunpack.c.0.s8 %v2372
        %v2374 = vlaneseq
        %v2375 = vshrl.u32 %v2374, 7
        %v2376 = vsub.s32 %v2373, %v2375
        %v2377 = vrot.slane %v2363, %v2376
        %v2378 = vcombine.low %v2370, %v2377
        %v2379 = vcombine.low %v1887, %v1889
        %v2380 = vcombine.low %v1897, %v1905
        %v2382 = vunpack.c.l.s4 1983009808
        %v2383 = vunpack.c.0.s8 %v2382
        %v2384 = vlaneseq
        %v2385 = vshrl.u32 %v2384, 7
        %v2386 = vsub.s32 %v2383, %v2385
        %v2387 = vrot.slane %v2379, %v2386
        %v2389 = vunpack.c.l.s4 1983009808
        %v2390 = vunpack.c.0.s8 %v2389
        %v2391 = vlaneseq
        %v2392 = vshrl.u32 %v2391, 7
        %v2393 = vsub.s32 %v2390, %v2392
        %v2394 = vrot.slane %v2380, %v2393
        %v2395 = vcombine.low %v2387, %v2394
        %v2397 = vunpack.c.l.s4 1983009808
        %v2398 = vunpack.c.0.s8 %v2397
        %v2399 = vlaneseq
        %v2400 = vshrl.u32 %v2399, 7
        %v2401 = vsub.s32 %v2398, %v2400
        %v2402 = vrot.slane %v1904, %v2401
        %v2403 = vcombine.low %v1906, %v1914
        %v2404 = vcombine.low %v1922, %v1921
        %v2406 = vunpack.c.l.s4 1983009808
        %v2407 = vunpack.c.0.s8 %v2406
        %v2408 = vlaneseq
        %v2409 = vshrl.u32 %v2408, 7
        %v2410 = vsub.s32 %v2407, %v2409
        %v2411 = vrot.slane %v2403, %v2410
        %v2413 = vunpack.c.l.s4 1983009808
        %v2414 = vunpack.c.0.s8 %v2413
        %v2415 = vlaneseq
        %v2416 = vshrl.u32 %v2415, 7
        %v2417 = vsub.s32 %v2414, %v2416
        %v2418 = vrot.slane %v2404, %v2417
        %v2419 = vcombine.low %v2411, %v2418
        %v2420 = vcombine.low %v1923, %v1931
        %v2421 = vcombine.low %v1939, %v1938
        %v2423 = vunpack.c.l.s4 1983009808
        %v2424 = vunpack.c.0.s8 %v2423
        %v2425 = vlaneseq
        %v2426 = vshrl.u32 %v2425, 7
        %v2427 = vsub.s32 %v2424, %v2426
        %v2428 = vrot.slane %v2420, %v2427
        %v2430 = vunpack.c.l.s4 1983009808
        %v2431 = vunpack.c.0.s8 %v2430
        %v2432 = vlaneseq
        %v2433 = vshrl.u32 %v2432, 7
        %v2434 = vsub.s32 %v2431, %v2433
        %v2435 = vrot.slane %v2421, %v2434
        %v2436 = vcombine.low %v2428, %v2435
        %v2438 = vunpack.c.l.s4 1983009808
        %v2439 = vunpack.c.0.s8 %v2438
        %v2440 = vlaneseq
        %v2441 = vshrl.u32 %v2440, 7
        %v2442 = vsub.s32 %v2439, %v2441
        %v2443 = vrot.slane %v1940, %v2442
        %v2444 = vcombine.low %v1948, %v1956
        %v2445 = vcombine.low %v1955, %v1957
        %v2447 = vunpack.c.l.s4 1983009808
        %v2448 = vunpack.c.0.s8 %v2447
        %v2449 = vlaneseq
        %v2450 = vshrl.u32 %v2449, 7
        %v2451 = vsub.s32 %v2448, %v2450
        %v2452 = vrot.slane %v2444, %v2451
        %v2454 = vunpack.c.l.s4 1983009808
        %v2455 = vunpack.c.0.s8 %v2454
        %v2456 = vlaneseq
        %v2457 = vshrl.u32 %v2456, 7
        %v2458 = vsub.s32 %v2455, %v2457
        %v2459 = vrot.slane %v2445, %v2458
        %v2460 = vcombine.low %v2452, %v2459
        %v2461 = vcombine.low %v1965, %v1973
        %v2462 = vcombine.low %v1972, %v1974
        %v2464 = vunpack.c.l.s4 1983009808
        %v2465 = vunpack.c.0.s8 %v2464
        %v2466 = vlaneseq
        %v2467 = vshrl.u32 %v2466, 7
        %v2468 = vsub.s32 %v2465, %v2467
        %v2469 = vrot.slane %v2461, %v2468
        %v2471 = vunpack.c.l.s4 1983009808
        %v2472 = vunpack.c.0.s8 %v2471
        %v2473 = vlaneseq
        %v2474 = vshrl.u32 %v2473, 7
        %v2475 = vsub.s32 %v2472, %v2474
        %v2476 = vrot.slane %v2462, %v2475
        %v2477 = vcombine.low %v2469, %v2476
        %v2479 = vunpack.c.l.s4 1983009808
        %v2480 = vunpack.c.0.s8 %v2479
        %v2481 = vlaneseq
        %v2482 = vshrl.u32 %v2481, 7
        %v2483 = vsub.s32 %v2480, %v2482
        %v2484 = vrot.slane %v1982, %v2483
        %v2485 = vcombine.low %v1990, %v1989
        %v2486 = vcombine.low %v1991, %v1999
        %v2488 = vunpack.c.l.s4 1983009808
        %v2489 = vunpack.c.0.s8 %v2488
        %v2490 = vlaneseq
        %v2491 = vshrl.u32 %v2490, 7
        %v2492 = vsub.s32 %v2489, %v2491
        %v2493 = vrot.slane %v2485, %v2492
        %v2495 = vunpack.c.l.s4 1983009808
        %v2496 = vunpack.c.0.s8 %v2495
        %v2497 = vlaneseq
        %v2498 = vshrl.u32 %v2497, 7
        %v2499 = vsub.s32 %v2496, %v2498
        %v2500 = vrot.slane %v2486, %v2499
        %v2501 = vcombine.low %v2493, %v2500
        %v2502 = vcombine.low %v2007, %v2006
        %v2503 = vcombine.low %v2008, %v2016
        %v2505 = vunpack.c.l.s4 1983009808
        %v2506 = vunpack.c.0.s8 %v2505
        %v2507 = vlaneseq
        %v2508 = vshrl.u32 %v2507, 7
        %v2509 = vsub.s32 %v2506, %v2508
        %v2510 = vrot.slane %v2502, %v2509
        %v2512 = vunpack.c.l.s4 1983009808
        %v2513 = vunpack.c.0.s8 %v2512
        %v2514 = vlaneseq
        %v2515 = vshrl.u32 %v2514, 7
        %v2516 = vsub.s32 %v2513, %v2515
        %v2517 = vrot.slane %v2503, %v2516
        %v2518 = vcombine.low %v2510, %v2517
        %v2520 = vunpack.c.l.s4 1983009808
        %v2521 = vunpack.c.0.s8 %v2520
        %v2522 = vlaneseq
        %v2523 = vshrl.u32 %v2522, 7
        %v2524 = vsub.s32 %v2521, %v2523
        %v2525 = vrot.slane %v2024, %v2524
        %v2526 = vcombine.low %v2023, %v2025
        %v2527 = vcombine.low %v2033, %v2041
        %v2529 = vunpack.c.l.s4 1983009808
        %v2530 = vunpack.c.0.s8 %v2529
        %v2531 = vlaneseq
        %v2532 = vshrl.u32 %v2531, 7
        %v2533 = vsub.s32 %v2530, %v2532
        %v2534 = vrot.slane %v2526, %v2533
        %v2536 = vunpack.c.l.s4 1983009808
        %v2537 = vunpack.c.0.s8 %v2536
        %v2538 = vlaneseq
        %v2539 = vshrl.u32 %v2538, 7
        %v2540 = vsub.s32 %v2537, %v2539
        %v2541 = vrot.slane %v2527, %v2540
        %v2542 = vcombine.low %v2534, %v2541
        %v2543 = vcombine.low %v2040, %v2042
        %v2544 = vcombine.low %v2050, %v2058
        %v2546 = vunpack.c.l.s4 1983009808
        %v2547 = vunpack.c.0.s8 %v2546
        %v2548 = vlaneseq
        %v2549 = vshrl.u32 %v2548, 7
        %v2550 = vsub.s32 %v2547, %v2549
        %v2551 = vrot.slane %v2543, %v2550
        %v2553 = vunpack.c.l.s4 1983009808
        %v2554 = vunpack.c.0.s8 %v2553
        %v2555 = vlaneseq
        %v2556 = vshrl.u32 %v2555, 7
        %v2557 = vsub.s32 %v2554, %v2556
        %v2558 = vrot.slane %v2544, %v2557
        %v2559 = vcombine.low %v2551, %v2558
        %v2561 = vunpack.c.l.s4 1983009808
        %v2562 = vunpack.c.0.s8 %v2561
        %v2563 = vlaneseq
        %v2564 = vshrl.u32 %v2563, 7
        %v2565 = vsub.s32 %v2562, %v2564
        %v2566 = vrot.slane %v2057, %v2565
        %v2567 = vcombine.low %v2059, %v2067
        %v2568 = vcombine.low %v2075, %v2074
        %v2570 = vunpack.c.l.s4 1983009808
        %v2571 = vunpack.c.0.s8 %v2570
        %v2572 = vlaneseq
        %v2573 = vshrl.u32 %v2572, 7
        %v2574 = vsub.s32 %v2571, %v2573
        %v2575 = vrot.slane %v2567, %v2574
        %v2577 = vunpack.c.l.s4 1983009808
        %v2578 = vunpack.c.0.s8 %v2577
        %v2579 = vlaneseq
        %v2580 = vshrl.u32 %v2579, 7
        %v2581 = vsub.s32 %v2578, %v2580
        %v2582 = vrot.slane %v2568, %v2581
        %v2583 = vcombine.low %v2575, %v2582
        %v2584 = vcombine.low %v2076, %v2084
        %v2585 = vcombine.low %v2092, %v2091
        %v2587 = vunpack.c.l.s4 1983009808
        %v2588 = vunpack.c.0.s8 %v2587
        %v2589 = vlaneseq
        %v2590 = vshrl.u32 %v2589, 7
        %v2591 = vsub.s32 %v2588, %v2590
        %v2592 = vrot.slane %v2584, %v2591
        %v2594 = vunpack.c.l.s4 1983009808
        %v2595 = vunpack.c.0.s8 %v2594
        %v2596 = vlaneseq
        %v2597 = vshrl.u32 %v2596, 7
        %v2598 = vsub.s32 %v2595, %v2597
        %v2599 = vrot.slane %v2585, %v2598
        %v2600 = vcombine.low %v2592, %v2599
        %v2602 = vunpack.c.l.s4 1983009808
        %v2603 = vunpack.c.0.s8 %v2602
        %v2604 = vlaneseq
        %v2605 = vshrl.u32 %v2604, 7
        %v2606 = vsub.s32 %v2603, %v2605
        %v2607 = vrot.slane %v2093, %v2606
        %v2608 = vcombine.low %v2101, %v2109
        %v2609 = vcombine.low %v2108, %v2110
        %v2611 = vunpack.c.l.s4 1983009808
        %v2612 = vunpack.c.0.s8 %v2611
        %v2613 = vlaneseq
        %v2614 = vshrl.u32 %v2613, 7
        %v2615 = vsub.s32 %v2612, %v2614
        %v2616 = vrot.slane %v2608, %v2615
        %v2618 = vunpack.c.l.s4 1983009808
        %v2619 = vunpack.c.0.s8 %v2618
        %v2620 = vlaneseq
        %v2621 = vshrl.u32 %v2620, 7
        %v2622 = vsub.s32 %v2619, %v2621
        %v2623 = vrot.slane %v2609, %v2622
        %v2624 = vcombine.low %v2616, %v2623
        %v2625 = vcombine.low %v2118, %v2126
        %v2626 = vcombine.low %v2125, %v2127
        %v2628 = vunpack.c.l.s4 1983009808
        %v2629 = vunpack.c.0.s8 %v2628
        %v2630 = vlaneseq
        %v2631 = vshrl.u32 %v2630, 7
        %v2632 = vsub.s32 %v2629, %v2631
        %v2633 = vrot.slane %v2625, %v2632
        %v2635 = vunpack.c.l.s4 1983009808
        %v2636 = vunpack.c.0.s8 %v2635
        %v2637 = vlaneseq
        %v2638 = vshrl.u32 %v2637, 7
        %v2639 = vsub.s32 %v2636, %v2638
        %v2640 = vrot.slane %v2626, %v2639
        %v2641 = vcombine.low %v2633, %v2640
        %v2643 = vunpack.c.l.s4 1983009808
        %v2644 = vunpack.c.0.s8 %v2643
        %v2645 = vlaneseq
        %v2646 = vshrl.u32 %v2645, 7
        %v2647 = vsub.s32 %v2644, %v2646
        %v2648 = vrot.slane %v2135, %v2647
        %v2649 = vcombine.low %v2143, %v2142
        %v2650 = vcombine.low %v2144, %v2152
        %v2652 = vunpack.c.l.s4 1983009808
        %v2653 = vunpack.c.0.s8 %v2652
        %v2654 = vlaneseq
        %v2655 = vshrl.u32 %v2654, 7
        %v2656 = vsub.s32 %v2653, %v2655
        %v2657 = vrot.slane %v2649, %v2656
        %v2659 = vunpack.c.l.s4 1983009808
        %v2660 = vunpack.c.0.s8 %v2659
        %v2661 = vlaneseq
        %v2662 = vshrl.u32 %v2661, 7
        %v2663 = vsub.s32 %v2660, %v2662
        %v2664 = vrot.slane %v2650, %v2663
        %v2665 = vcombine.low %v2657, %v2664
        %v2666 = vcombine.low %v2160, %v2159
        %v2667 = vcombine.low %v2161, %v2168
        %v2669 = vunpack.c.l.s4 1983009808
        %v2670 = vunpack.c.0.s8 %v2669
        %v2671 = vlaneseq
        %v2672 = vshrl.u32 %v2671, 7
        %v2673 = vsub.s32 %v2670, %v2672
        %v2674 = vrot.slane %v2666, %v2673
        %v2676 = vunpack.c.l.s4 1983009808
        %v2677 = vunpack.c.0.s8 %v2676
        %v2678 = vlaneseq
        %v2679 = vshrl.u32 %v2678, 7
        %v2680 = vsub.s32 %v2677, %v2679
        %v2681 = vrot.slane %v2667, %v2680
        %v2682 = vcombine.low %v2674, %v2681
        %v2684 = vunpack.c.l.s4 1983009808
        %v2685 = vunpack.c.0.s8 %v2684
        %v2686 = vlaneseq
        %v2687 = vshrl.u32 %v2686, 7
        %v2688 = vsub.s32 %v2685, %v2687
        %v2689 = vrot.slane %v2169, %v2688
        %v2720 = vsel %vm2250, %v2296, 0.0
        %v2721 = vsel %vm2251, %v2313, 0.0
        %v2722 = vsel %vm2252, %v2320, 0.0
        %v2723 = vsel %vm2253, %v2337, 0.0
        %v2724 = vsel %vm2254, %v2354, 0.0
        %v2725 = vsel %vm2255, %v2361, 0.0
        %v2726 = vsel %vm2256, %v2378, 0.0
        %v2727 = vsel %vm2257, %v2395, 0.0
        %v2728 = vsel %vm2258, %v2402, 0.0
        %v2729 = vsel %vm2259, %v2419, 0.0
        %v2730 = vsel %vm2260, %v2436, 0.0
        %v2731 = vsel %vm2261, %v2443, 0.0
        %v2732 = vsel %vm2262, %v2460, 0.0
        %v2733 = vsel %vm2263, %v2477, 0.0
        %v2734 = vsel %vm2264, %v2484, 0.0
        %v2735 = vsel %vm2265, %v2501, 0.0
        %v2736 = vsel %vm2266, %v2518, 0.0
        %v2737 = vsel %vm2267, %v2525, 0.0
        %v2738 = vsel %vm2268, %v2542, 0.0
        %v2739 = vsel %vm2269, %v2559, 0.0
        %v2740 = vsel %vm2270, %v2566, 0.0
        %v2741 = vsel %vm2271, %v2583, 0.0
        %v2742 = vsel %vm2272, %v2600, 0.0
        %v2743 = vsel %vm2273, %v2607, 0.0
        %v2744 = vsel %vm2274, %v2624, 0.0
        %v2745 = vsel %vm2275, %v2641, 0.0
        %v2746 = vsel %vm2276, %v2648, 0.0
        %v2747 = vsel %vm2277, %v2665, 0.0
        %v2748 = vsel %vm2278, %v2682, 0.0
        %v2749 = vsel %vm2279, %v2689, 0.0
        %v2750 = vpack.c.bf16 %v2721, %v2720
        %v2751 = vpack.c.bf16 %v2722, %v2722
        %v2752 = vpack.c.bf16 %v2724, %v2723
        %v2753 = vpack.c.bf16 %v2725, %v2725
        %v2754 = vpack.c.bf16 %v2727, %v2726
        %v2755 = vpack.c.bf16 %v2728, %v2728
        %v2756 = vpack.c.bf16 %v2730, %v2729
        %v2757 = vpack.c.bf16 %v2731, %v2731
        %v2758 = vpack.c.bf16 %v2733, %v2732
        %v2759 = vpack.c.bf16 %v2734, %v2734
        %v2760 = vpack.c.bf16 %v2736, %v2735
        %v2761 = vpack.c.bf16 %v2737, %v2737
        %v2762 = vpack.c.bf16 %v2739, %v2738
        %v2763 = vpack.c.bf16 %v2740, %v2740
        %v2764 = vpack.c.bf16 %v2742, %v2741
        %v2765 = vpack.c.bf16 %v2743, %v2743
        %v2766 = vpack.c.bf16 %v2745, %v2744
        %v2767 = vpack.c.bf16 %v2746, %v2746
        %v2768 = vpack.c.bf16 %v2748, %v2747
        %v2769 = vpack.c.bf16 %v2749, %v2749
        %vm2770 = vsmask.f32 7424
        %v2772 = vshrl.u32 %v2750, 16
        %v2774 = vshll.u32 %v2750, 16
        %v2776 = vrot.slane %v2774, 1
        %v2777 = vor.u32 %v2772, %v2776
        %v2779 = vshll.u32 %v2751, 16
        %v2781 = vrot.slane %v2779, 1
        %v2782 = vsel %vm2770, %v2777, %v2781
        %v2784 = vshrl.u32 %v2752, 16
        %v2786 = vshll.u32 %v2752, 16
        %v2788 = vrot.slane %v2786, 1
        %v2789 = vor.u32 %v2784, %v2788
        %v2791 = vshll.u32 %v2753, 16
        %v2793 = vrot.slane %v2791, 1
        %v2794 = vsel %vm2770, %v2789, %v2793
        %v2796 = vshrl.u32 %v2754, 16
        %v2798 = vshll.u32 %v2754, 16
        %v2800 = vrot.slane %v2798, 1
        %v2801 = vor.u32 %v2796, %v2800
        %v2803 = vshll.u32 %v2755, 16
        %v2805 = vrot.slane %v2803, 1
        %v2806 = vsel %vm2770, %v2801, %v2805
        %v2808 = vshrl.u32 %v2756, 16
        %v2810 = vshll.u32 %v2756, 16
        %v2812 = vrot.slane %v2810, 1
        %v2813 = vor.u32 %v2808, %v2812
        %v2815 = vshll.u32 %v2757, 16
        %v2817 = vrot.slane %v2815, 1
        %v2818 = vsel %vm2770, %v2813, %v2817
        %v2820 = vshrl.u32 %v2758, 16
        %v2822 = vshll.u32 %v2758, 16
        %v2824 = vrot.slane %v2822, 1
        %v2825 = vor.u32 %v2820, %v2824
        %v2827 = vshll.u32 %v2759, 16
        %v2829 = vrot.slane %v2827, 1
        %v2830 = vsel %vm2770, %v2825, %v2829
        %v2832 = vshrl.u32 %v2760, 16
        %v2834 = vshll.u32 %v2760, 16
        %v2836 = vrot.slane %v2834, 1
        %v2837 = vor.u32 %v2832, %v2836
        %v2839 = vshll.u32 %v2761, 16
        %v2841 = vrot.slane %v2839, 1
        %v2842 = vsel %vm2770, %v2837, %v2841
        %v2844 = vshrl.u32 %v2762, 16
        %v2846 = vshll.u32 %v2762, 16
        %v2848 = vrot.slane %v2846, 1
        %v2849 = vor.u32 %v2844, %v2848
        %v2851 = vshll.u32 %v2763, 16
        %v2853 = vrot.slane %v2851, 1
        %v2854 = vsel %vm2770, %v2849, %v2853
        %v2856 = vshrl.u32 %v2764, 16
        %v2858 = vshll.u32 %v2764, 16
        %v2860 = vrot.slane %v2858, 1
        %v2861 = vor.u32 %v2856, %v2860
        %v2863 = vshll.u32 %v2765, 16
        %v2865 = vrot.slane %v2863, 1
        %v2866 = vsel %vm2770, %v2861, %v2865
        %v2868 = vshrl.u32 %v2766, 16
        %v2870 = vshll.u32 %v2766, 16
        %v2872 = vrot.slane %v2870, 1
        %v2873 = vor.u32 %v2868, %v2872
        %v2875 = vshll.u32 %v2767, 16
        %v2877 = vrot.slane %v2875, 1
        %v2878 = vsel %vm2770, %v2873, %v2877
        %v2880 = vshrl.u32 %v2768, 16
        %v2882 = vshll.u32 %v2768, 16
        %v2884 = vrot.slane %v2882, 1
        %v2885 = vor.u32 %v2880, %v2884
        %v2887 = vshll.u32 %v2769, 16
        %v2889 = vrot.slane %v2887, 1
        %v2890 = vsel %vm2770, %v2885, %v2889
        %2891 = vrot.lane.b32.xlu0 %v2782, 32
        %v2892 = vpop.permute.xlu0 %2891
        %2893 = vrot.lane.b32.xlu0 %v2794, 32
        %v2894 = vpop.permute.xlu0 %2893
        %2895 = vrot.lane.b32.xlu0 %v2806, 32
        %v2896 = vpop.permute.xlu0 %2895
        %2897 = vrot.lane.b32.xlu0 %v2818, 32
        %v2898 = vpop.permute.xlu0 %2897
        %2899 = vrot.lane.b32.xlu0 %v2830, 32
        %v2900 = vpop.permute.xlu0 %2899
        %2901 = vrot.lane.b32.xlu0 %v2842, 32
        %v2902 = vpop.permute.xlu0 %2901
        %2903 = vrot.lane.b32.xlu0 %v2854, 32
        %v2904 = vpop.permute.xlu0 %2903
        %2905 = vrot.lane.b32.xlu0 %v2866, 32
        %v2906 = vpop.permute.xlu0 %2905
        %2907 = vrot.lane.b32.xlu0 %v2878, 32
        %v2908 = vpop.permute.xlu0 %2907
        %2909 = vrot.lane.b32.xlu0 %v2890, 32
        %v2910 = vpop.permute.xlu0 %2909
        %vm2931 = vcmask 1046528
        %v2932 = vrot.slane %v2750, 1
        %v2933 = vrot.slane %v2751, 1
        %v2934 = vsel %vm2931, %v2932, %v2933
        %v2935 = vrot.slane %v2752, 1
        %v2936 = vrot.slane %v2753, 1
        %v2937 = vsel %vm2931, %v2935, %v2936
        %v2938 = vrot.slane %v2754, 1
        %v2939 = vrot.slane %v2755, 1
        %v2940 = vsel %vm2931, %v2938, %v2939
        %v2941 = vrot.slane %v2756, 1
        %v2942 = vrot.slane %v2757, 1
        %v2943 = vsel %vm2931, %v2941, %v2942
        %v2944 = vrot.slane %v2758, 1
        %v2945 = vrot.slane %v2759, 1
        %v2946 = vsel %vm2931, %v2944, %v2945
        %v2947 = vrot.slane %v2760, 1
        %v2948 = vrot.slane %v2761, 1
        %v2949 = vsel %vm2931, %v2947, %v2948
        %v2950 = vrot.slane %v2762, 1
        %v2951 = vrot.slane %v2763, 1
        %v2952 = vsel %vm2931, %v2950, %v2951
        %v2953 = vrot.slane %v2764, 1
        %v2954 = vrot.slane %v2765, 1
        %v2955 = vsel %vm2931, %v2953, %v2954
        %v2956 = vrot.slane %v2766, 1
        %v2957 = vrot.slane %v2767, 1
        %v2958 = vsel %vm2931, %v2956, %v2957
        %v2959 = vrot.slane %v2768, 1
        %v2960 = vrot.slane %v2769, 1
        %v2961 = vsel %vm2931, %v2959, %v2960
        %2962 = vrot.lane.b32.xlu0 %v2934, 64
        %v2963 = vpop.permute.xlu0 %2962
        %2964 = vrot.lane.b32.xlu0 %v2937, 64
        %v2965 = vpop.permute.xlu0 %2964
        %2966 = vrot.lane.b32.xlu0 %v2940, 64
        %v2967 = vpop.permute.xlu0 %2966
        %2968 = vrot.lane.b32.xlu0 %v2943, 64
        %v2969 = vpop.permute.xlu0 %2968
        %2970 = vrot.lane.b32.xlu0 %v2946, 64
        %v2971 = vpop.permute.xlu0 %2970
        %2972 = vrot.lane.b32.xlu0 %v2949, 64
        %v2973 = vpop.permute.xlu0 %2972
        %2974 = vrot.lane.b32.xlu0 %v2952, 64
        %v2975 = vpop.permute.xlu0 %2974
        %2976 = vrot.lane.b32.xlu0 %v2955, 64
        %v2977 = vpop.permute.xlu0 %2976
        %2978 = vrot.lane.b32.xlu0 %v2958, 64
        %v2979 = vpop.permute.xlu0 %2978
        %2980 = vrot.lane.b32.xlu0 %v2961, 64
        %v2981 = vpop.permute.xlu0 %2980
        %vm2982 = vcmask 261120
        %v2984 = vsel %vm2982, %v2750, %v2892
        %v2986 = vsel %vm2982, %v2752, %v2894
        %v2988 = vsel %vm2982, %v2754, %v2896
        %v2990 = vsel %vm2982, %v2756, %v2898
        %v2992 = vsel %vm2982, %v2758, %v2900
        %v2994 = vsel %vm2982, %v2760, %v2902
        %v2996 = vsel %vm2982, %v2762, %v2904
        %v2998 = vsel %vm2982, %v2764, %v2906
        %v3000 = vsel %vm2982, %v2766, %v2908
        %v3002 = vsel %vm2982, %v2768, %v2910
        %vm3003 = vcmask 523264
        %v3005 = vsel %vm3003, %v2984, %v2963
        %v3007 = vsel %vm3003, %v2986, %v2965
        %v3009 = vsel %vm3003, %v2988, %v2967
        %v3011 = vsel %vm3003, %v2990, %v2969
        %v3013 = vsel %vm3003, %v2992, %v2971
        %v3015 = vsel %vm3003, %v2994, %v2973
        %v3017 = vsel %vm3003, %v2996, %v2975
        %v3019 = vsel %vm3003, %v2998, %v2977
        %v3021 = vsel %vm3003, %v3000, %v2979
        %v3023 = vsel %vm3003, %v3002, %v2981
        %3032 = vrot.lane.b32.xlu0 %v3007, 96
        %v3033 = vpop.permute.xlu0 %3032
        %3034 = vrot.lane.b32.xlu0 %v3009, 96
        %v3035 = vpop.permute.xlu0 %3034
        %3036 = vrot.lane.b32.xlu0 %v3011, 96
        %v3037 = vpop.permute.xlu0 %3036
        %3038 = vrot.lane.b32.xlu0 %v3013, 96
        %v3039 = vpop.permute.xlu0 %3038
        %3040 = vrot.lane.b32.xlu0 %v3015, 96
        %v3041 = vpop.permute.xlu0 %3040
        %3042 = vrot.lane.b32.xlu0 %v3017, 96
        %v3043 = vpop.permute.xlu0 %3042
        %3044 = vrot.lane.b32.xlu0 %v3019, 96
        %v3045 = vpop.permute.xlu0 %3044
        %3046 = vrot.lane.b32.xlu0 %v3021, 96
        %v3047 = vpop.permute.xlu0 %3046
        %3049 = vrot.lane.b32.xlu0 %v3009, 64
        %v3050 = vpop.permute.xlu0 %3049
        %3051 = vrot.lane.b32.xlu0 %v3011, 64
        %v3052 = vpop.permute.xlu0 %3051
        %3053 = vrot.lane.b32.xlu0 %v3013, 64
        %v3054 = vpop.permute.xlu0 %3053
        %3055 = vrot.lane.b32.xlu0 %v3015, 64
        %v3056 = vpop.permute.xlu0 %3055
        %3057 = vrot.lane.b32.xlu0 %v3017, 64
        %v3058 = vpop.permute.xlu0 %3057
        %3059 = vrot.lane.b32.xlu0 %v3019, 64
        %v3060 = vpop.permute.xlu0 %3059
        %3061 = vrot.lane.b32.xlu0 %v3021, 64
        %v3062 = vpop.permute.xlu0 %3061
        %3063 = vrot.lane.b32.xlu0 %v3023, 64
        %v3064 = vpop.permute.xlu0 %3063
        %vm3065 = vcmask 785408
        %v3067 = vsel %vm3065, %v3005, %v3033
        %v3070 = vsel %vm3065, %v3007, %v3035
        %v3073 = vsel %vm3065, %v3009, %v3037
        %v3076 = vsel %vm3065, %v3011, %v3039
        %v3079 = vsel %vm3065, %v3013, %v3041
        %v3082 = vsel %vm3065, %v3015, %v3043
        %v3085 = vsel %vm3065, %v3017, %v3045
        %v3088 = vsel %vm3065, %v3019, %v3047
        %v3091 = vsel %vm3003, %v3033, %v3050
        %v3094 = vsel %vm3003, %v3035, %v3052
        %v3097 = vsel %vm3003, %v3037, %v3054
        %v3100 = vsel %vm3003, %v3039, %v3056
        %v3103 = vsel %vm3003, %v3041, %v3058
        %v3106 = vsel %vm3003, %v3043, %v3060
        %v3109 = vsel %vm3003, %v3045, %v3062
        %v3112 = vsel %vm3003, %v3047, %v3064
        %v3114 = vld [vmem:[%s3] sm:$0xf]
        %v3115 = vld [vmem:[%s3 + $0x4] sm:$0xf]
        %v3116 = vld [vmem:[%s3 + $0x8] sm:$0xf]
        %v3117 = vld [vmem:[%s3 + $0xc] sm:$0xf]
        %v3118 = vld [vmem:[%s3 + $0x10] sm:$0xf]
        %v3119 = vld [vmem:[%s3 + $0x14] sm:$0xf]
        %v3120 = vld [vmem:[%s3 + $0x18] sm:$0xf]
        %v3121 = vld [vmem:[%s3 + $0x1c] sm:$0xf]
        %v3122 = vld [vmem:[%s3 + $0x20] sm:$0xf]
        %v3123 = vld [vmem:[%s3 + $0x24] sm:$0xf]
        %v3124 = vld [vmem:[%s3 + $0x28] sm:$0xf]
        %v3125 = vld [vmem:[%s3 + $0x2c] sm:$0xf]
        %v3126 = vld [vmem:[%s3 + $0x30] sm:$0xf]
        %v3127 = vld [vmem:[%s3 + $0x34] sm:$0xf]
        %v3128 = vld [vmem:[%s3 + $0x38] sm:$0xf]
        %v3129 = vld [vmem:[%s3 + $0x3c] sm:$0xf]
        %v3130 = vld [vmem:[%s3 + $0x40] sm:$0xf]
        %v3131 = vld [vmem:[%s3 + $0x44] sm:$0xf]
        %v3132 = vld [vmem:[%s3 + $0x48] sm:$0xf]
        %v3133 = vld [vmem:[%s3 + $0x4c] sm:$0xf]
        %v3134 = vld [vmem:[%s3 + $0x50] sm:$0xf]
        %v3135 = vld [vmem:[%s3 + $0x54] sm:$0xf]
        %v3136 = vld [vmem:[%s3 + $0x58] sm:$0xf]
        %v3137 = vld [vmem:[%s3 + $0x5c] sm:$0xf]
        %v3138 = vld [vmem:[%s3 + $0x60] sm:$0xf]
        %v3139 = vld [vmem:[%s3 + $0x64] sm:$0xf]
        %v3140 = vld [vmem:[%s3 + $0x68] sm:$0xf]
        %v3141 = vld [vmem:[%s3 + $0x6c] sm:$0xf]
        %v3142 = vld [vmem:[%s3 + $0x70] sm:$0xf]
        %v3143 = vld [vmem:[%s3 + $0x74] sm:$0xf]
        %v3144 = vld [vmem:[%s3 + $0x78] sm:$0xf]
        %v3145 = vld [vmem:[%s3 + $0x7c] sm:$0xf]
        %v3146 = vld [vmem:[%s3 + $0x80] sm:$0xf]
        %v3147 = vld [vmem:[%s3 + $0x84] sm:$0xf]
        %v3148 = vld [vmem:[%s3 + $0x88] sm:$0xf]
        %v3149 = vld [vmem:[%s3 + $0x8c] sm:$0xf]
        %v3150 = vld [vmem:[%s4] sm:$0x1]
        %v3152 = vlaneseq
        %v3153 = vshrl.u32 %v3152, 7
        %v3154 = vsub.s32 0, %v3153
        %v3155 = vrot.slane %v3150, %v3154
        %v3193 = vunpack.c.l.b16 %v3114
        %v3194 = vunpack.c.l.b16 %v3115
        %v3195 = vunpack.c.l.b16 %v3116
        %v3196 = vunpack.c.l.b16 %v3117
        %v3197 = vunpack.c.l.b16 %v3118
        %v3198 = vunpack.c.l.b16 %v3119
        %v3199 = vunpack.c.l.b16 %v3120
        %v3200 = vunpack.c.l.b16 %v3121
        %v3201 = vunpack.c.l.b16 %v3122
        %v3202 = vunpack.c.l.b16 %v3123
        %v3203 = vunpack.c.l.b16 %v3124
        %v3204 = vunpack.c.l.b16 %v3125
        %v3205 = vunpack.c.l.b16 %v3126
        %v3206 = vunpack.c.l.b16 %v3127
        %v3207 = vunpack.c.l.b16 %v3128
        %v3208 = vunpack.c.l.b16 %v3129
        %v3209 = vunpack.c.l.b16 %v3130
        %v3210 = vunpack.c.l.b16 %v3131
        %v3211 = vunpack.c.l.b16 %v3132
        %v3212 = vunpack.c.l.b16 %v3133
        %v3213 = vunpack.c.l.b16 %v3134
        %v3214 = vunpack.c.l.b16 %v3135
        %v3215 = vunpack.c.l.b16 %v3136
        %v3216 = vunpack.c.l.b16 %v3137
        %v3217 = vunpack.c.l.b16 %v3138
        %v3218 = vunpack.c.l.b16 %v3139
        %v3219 = vunpack.c.l.b16 %v3140
        %v3220 = vunpack.c.l.b16 %v3141
        %v3221 = vunpack.c.l.b16 %v3142
        %v3222 = vunpack.c.l.b16 %v3143
        %v3223 = vunpack.c.l.b16 %v3144
        %v3224 = vunpack.c.l.b16 %v3145
        %v3225 = vunpack.c.l.b16 %v3146
        %v3226 = vunpack.c.l.b16 %v3147
        %v3227 = vunpack.c.l.b16 %v3148
        %v3228 = vunpack.c.l.b16 %v3149
        %v3229 = vpack.c.b16 %v3194, %v3193
        %v3230 = vpack.c.b16 %v3196, %v3195
        %v3231 = vpack.c.b16 %v3198, %v3197
        %v3232 = vpack.c.b16 %v3200, %v3199
        %v3233 = vpack.c.b16 %v3202, %v3201
        %v3234 = vpack.c.b16 %v3204, %v3203
        %v3235 = vpack.c.b16 %v3206, %v3205
        %v3236 = vpack.c.b16 %v3208, %v3207
        %v3237 = vpack.c.b16 %v3210, %v3209
        %v3238 = vpack.c.b16 %v3212, %v3211
        %v3239 = vpack.c.b16 %v3214, %v3213
        %v3240 = vpack.c.b16 %v3216, %v3215
        %v3241 = vpack.c.b16 %v3218, %v3217
        %v3242 = vpack.c.b16 %v3220, %v3219
        %v3243 = vpack.c.b16 %v3222, %v3221
        %v3244 = vpack.c.b16 %v3224, %v3223
        %v3245 = vpack.c.b16 %v3226, %v3225
        %v3246 = vpack.c.b16 %v3228, %v3227
        %v3265 = vsel %vm2982, %v3050, 0
        %v3267 = vsel %vm2982, %v3052, 0
        %v3269 = vsel %vm2982, %v3054, 0
        %v3271 = vsel %vm2982, %v3056, 0
        %v3273 = vsel %vm2982, %v3058, 0
        %v3275 = vsel %vm2982, %v3060, 0
        %v3277 = vsel %vm2982, %v3062, 0
        %v3279 = vsel %vm2982, %v3064, 0
        %3281 = vmatprep.subr.bf16.mxu0 0
        %3282 = vmatpush1.bf16.msra.mxu0 %v3229
        %3283 = vmatprep.subr.bf16.mxu0 0
        %3284 = vmatpush1.bf16.msra.mxu0 %v3230
        %3285 = vmatprep.subr.bf16.mxu0 0
        %3286 = vmatpush1.bf16.msra.mxu0 %v3231
        %3287 = vmatprep.subr.bf16.mxu0 0
        %3288 = vmatpush1.bf16.msra.mxu0 %v3232
        %3289 = vmatprep.subr.bf16.mxu0 0
        %3290 = vmatpush1.bf16.msra.mxu0 %v3233
        %3291 = vmatprep.subr.bf16.mxu0 0
        %3292 = vmatpush1.bf16.msra.mxu0 %v3234
        %3293 = vmatprep.subr.bf16.mxu0 0
        %3294 = vmatpush1.bf16.msra.mxu0 %v3235
        %3295 = vmatprep.subr.bf16.mxu0 0
        %3296 = vmatpush1.bf16.msra.mxu0 %v3236
        %3297 = vmatprep.subr.bf16.mxu0 0
        %3298 = vmatpush1.bf16.msra.mxu0 %v3237
        %3299 = vmatprep.subr.bf16.mxu0 0
        %3300 = vmatpush1.bf16.msra.mxu0 %v3238
        %3301 = vmatprep.subr.bf16.mxu0 0
        %3302 = vmatpush1.bf16.msra.mxu0 %v3239
        %3303 = vmatprep.subr.bf16.mxu0 0
        %3304 = vmatpush1.bf16.msra.mxu0 %v3240
        %3305 = vmatprep.subr.bf16.mxu0 0
        %3306 = vmatpush1.bf16.msra.mxu0 %v3241
        %3307 = vmatprep.subr.bf16.mxu0 0
        %3308 = vmatpush1.bf16.msra.mxu0 %v3242
        %3309 = vmatprep.subr.bf16.mxu0 0
        %3310 = vmatpush1.bf16.msra.mxu0 %v3243
        %3311 = vmatprep.subr.bf16.mxu0 0
        %3312 = vmatpush1.bf16.msra.mxu0 %v3244
        %3313 = vmatprep.mubr.bf16.mxu0 %v3091
        %3314 = vmatmul.mubr.bf16.gmra.mrb[0].mxu0 %v3067
        %v3315 = vpop.f32.mrb[0].mxu0
        %v3316 = vadd.f32 %v3155, %v3315
        %v3317 = vpop.f32.mrb[0].mxu0
        %v3318 = vpop.f32.mrb[0].mxu0
        %v3319 = vadd.f32 %v3155, %v3318
        %v3320 = vpop.f32.mrb[0].mxu0
        %3321 = vmatprep.mubr.bf16.mxu0 %v3094
        %3322 = vmatmul.mubr.bf16.gmra.mrb[0].mxu0 %v3070
        %v3323 = vpop.f32.mrb[0].mxu0
        %v3324 = vadd.f32 %v3155, %v3323
        %v3325 = vpop.f32.mrb[0].mxu0
        %v3326 = vpop.f32.mrb[0].mxu0
        %v3327 = vadd.f32 %v3155, %v3326
        %v3328 = vpop.f32.mrb[0].mxu0
        %3329 = vmatprep.mubr.bf16.mxu0 %v3097
        %3330 = vmatmul.mubr.bf16.gmra.mrb[0].mxu0 %v3073
        %v3331 = vpop.f32.mrb[0].mxu0
        %v3332 = vadd.f32 %v3155, %v3331
        %v3333 = vpop.f32.mrb[0].mxu0
        %v3334 = vpop.f32.mrb[0].mxu0
        %v3335 = vadd.f32 %v3155, %v3334
        %v3336 = vpop.f32.mrb[0].mxu0
        %3337 = vmatprep.mubr.bf16.mxu0 %v3100
        %3338 = vmatmul.mubr.bf16.gmra.mrb[0].mxu0 %v3076
        %v3339 = vpop.f32.mrb[0].mxu0
        %v3340 = vadd.f32 %v3155, %v3339
        %v3341 = vpop.f32.mrb[0].mxu0
        %v3342 = vpop.f32.mrb[0].mxu0
        %v3343 = vadd.f32 %v3155, %v3342
        %v3344 = vpop.f32.mrb[0].mxu0
        %3345 = vmatprep.mubr.bf16.mxu0 %v3103
        %3346 = vmatmul.mubr.bf16.gmra.mrb[0].mxu0 %v3079
        %v3347 = vpop.f32.mrb[0].mxu0
        %v3348 = vadd.f32 %v3155, %v3347
        %v3349 = vpop.f32.mrb[0].mxu0
        %v3350 = vpop.f32.mrb[0].mxu0
        %v3351 = vadd.f32 %v3155, %v3350
        %v3352 = vpop.f32.mrb[0].mxu0
        %3353 = vmatprep.mubr.bf16.mxu0 %v3106
        %3354 = vmatmul.mubr.bf16.gmra.mrb[0].mxu0 %v3082
        %v3355 = vpop.f32.mrb[0].mxu0
        %v3356 = vadd.f32 %v3155, %v3355
        %v3357 = vpop.f32.mrb[0].mxu0
        %v3358 = vpop.f32.mrb[0].mxu0
        %v3359 = vadd.f32 %v3155, %v3358
        %v3360 = vpop.f32.mrb[0].mxu0
        %3361 = vmatprep.mubr.bf16.mxu0 %v3109
        %3362 = vmatmul.mubr.bf16.gmra.mrb[0].mxu0 %v3085
        %v3363 = vpop.f32.mrb[0].mxu0
        %v3364 = vadd.f32 %v3155, %v3363
        %v3365 = vpop.f32.mrb[0].mxu0
        %v3366 = vpop.f32.mrb[0].mxu0
        %v3367 = vadd.f32 %v3155, %v3366
        %v3368 = vpop.f32.mrb[0].mxu0
        %3369 = vmatprep.mubr.bf16.mxu0 %v3112
        %3370 = vmatmul.mubr.bf16.gmra.mrb[0].mxu0 %v3088
        %v3371 = vpop.f32.mrb[0].mxu0
        %v3372 = vadd.f32 %v3155, %v3371
        %v3373 = vpop.f32.mrb[0].mxu0
        %v3374 = vpop.f32.mrb[0].mxu0
        %v3375 = vadd.f32 %v3155, %v3374
        %v3376 = vpop.f32.mrb[0].mxu0
        %3377 = vdwg.mxu0
        %3378 = vmatprep.subr.bf16.mxu0 0
        %3379 = vmatpush1.bf16.msra.mxu0 %v3245
        %3380 = vmatprep.subr.bf16.mxu0 0
        %3381 = vmatpush1.bf16.msra.mxu0 %v3246
        %3382 = vmatprep.subr.bf16.mxu0 0
        %3383 = vmatpush1.bf16.msra.mxu0 0
        %3384 = vmatprep.subr.bf16.mxu0 0
        %3385 = vmatpush1.bf16.msra.mxu0 0
        %3386 = vmatprep.subr.bf16.mxu0 0
        %3387 = vmatpush1.bf16.msra.mxu0 0
        %3388 = vmatprep.subr.bf16.mxu0 0
        %3389 = vmatpush1.bf16.msra.mxu0 0
        %3390 = vmatprep.subr.bf16.mxu0 0
        %3391 = vmatpush1.bf16.msra.mxu0 0
        %3392 = vmatprep.subr.bf16.mxu0 0
        %3393 = vmatpush1.bf16.msra.mxu0 0
        %3394 = vmatprep.subr.bf16.mxu0 0
        %3395 = vmatpush1.bf16.msra.mxu0 0
        %3396 = vmatprep.subr.bf16.mxu0 0
        %3397 = vmatpush1.bf16.msra.mxu0 0
        %3398 = vmatprep.subr.bf16.mxu0 0
        %3399 = vmatpush1.bf16.msra.mxu0 0
        %3400 = vmatprep.subr.bf16.mxu0 0
        %3401 = vmatpush1.bf16.msra.mxu0 0
        %3402 = vmatprep.subr.bf16.mxu0 0
        %3403 = vmatpush1.bf16.msra.mxu0 0
        %3404 = vmatprep.subr.bf16.mxu0 0
        %3405 = vmatpush1.bf16.msra.mxu0 0
        %3406 = vmatprep.subr.bf16.mxu0 0
        %3407 = vmatpush1.bf16.msra.mxu0 0
        %3408 = vmatprep.subr.bf16.mxu0 0
        %3409 = vmatpush1.bf16.msra.mxu0 0
        %3410 = vmatprep.mubr.bf16.mxu0 0
        %3411 = vmatmul.mubr.bf16.gmra.mrb[0].mxu0 %v3265
        %v3412 = vpop.f32.mrb[0].mxu0
        %v3413 = vadd.f32 %v3316, %v3412
        %v3414 = vpop.f32.mrb[0].mxu0
        %v3415 = vpop.f32.mrb[0].mxu0
        %v3416 = vadd.f32 %v3319, %v3415
        %v3417 = vpop.f32.mrb[0].mxu0
        %3418 = vmatprep.mubr.bf16.mxu0 0
        %3419 = vmatmul.mubr.bf16.gmra.mrb[0].mxu0 %v3267
        %v3420 = vpop.f32.mrb[0].mxu0
        %v3421 = vadd.f32 %v3324, %v3420
        %v3422 = vpop.f32.mrb[0].mxu0
        %v3423 = vpop.f32.mrb[0].mxu0
        %v3424 = vadd.f32 %v3327, %v3423
        %v3425 = vpop.f32.mrb[0].mxu0
        %3426 = vmatprep.mubr.bf16.mxu0 0
        %3427 = vmatmul.mubr.bf16.gmra.mrb[0].mxu0 %v3269
        %v3428 = vpop.f32.mrb[0].mxu0
        %v3429 = vadd.f32 %v3332, %v3428
        %v3430 = vpop.f32.mrb[0].mxu0
        %v3431 = vpop.f32.mrb[0].mxu0
        %v3432 = vadd.f32 %v3335, %v3431
        %v3433 = vpop.f32.mrb[0].mxu0
        %3434 = vmatprep.mubr.bf16.mxu0 0
        %3435 = vmatmul.mubr.bf16.gmra.mrb[0].mxu0 %v3271
        %v3436 = vpop.f32.mrb[0].mxu0
        %v3437 = vadd.f32 %v3340, %v3436
        %v3438 = vpop.f32.mrb[0].mxu0
        %v3439 = vpop.f32.mrb[0].mxu0
        %v3440 = vadd.f32 %v3343, %v3439
        %v3441 = vpop.f32.mrb[0].mxu0
        %3442 = vmatprep.mubr.bf16.mxu0 0
        %3443 = vmatmul.mubr.bf16.gmra.mrb[0].mxu0 %v3273
        %v3444 = vpop.f32.mrb[0].mxu0
        %v3445 = vadd.f32 %v3348, %v3444
        %v3446 = vpop.f32.mrb[0].mxu0
        %v3447 = vpop.f32.mrb[0].mxu0
        %v3448 = vadd.f32 %v3351, %v3447
        %v3449 = vpop.f32.mrb[0].mxu0
        %3450 = vmatprep.mubr.bf16.mxu0 0
        %3451 = vmatmul.mubr.bf16.gmra.mrb[0].mxu0 %v3275
        %v3452 = vpop.f32.mrb[0].mxu0
        %v3453 = vadd.f32 %v3356, %v3452
        %v3454 = vpop.f32.mrb[0].mxu0
        %v3455 = vpop.f32.mrb[0].mxu0
        %v3456 = vadd.f32 %v3359, %v3455
        %v3457 = vpop.f32.mrb[0].mxu0
        %3458 = vmatprep.mubr.bf16.mxu0 0
        %3459 = vmatmul.mubr.bf16.gmra.mrb[0].mxu0 %v3277
        %v3460 = vpop.f32.mrb[0].mxu0
        %v3461 = vadd.f32 %v3364, %v3460
        %v3462 = vpop.f32.mrb[0].mxu0
        %v3463 = vpop.f32.mrb[0].mxu0
        %v3464 = vadd.f32 %v3367, %v3463
        %v3465 = vpop.f32.mrb[0].mxu0
        %3466 = vmatprep.mubr.bf16.mxu0 0
        %3467 = vmatmul.mubr.bf16.gmra.mrb[0].mxu0 %v3279
        %v3468 = vpop.f32.mrb[0].mxu0
        %v3469 = vadd.f32 %v3372, %v3468
        %v3470 = vpop.f32.mrb[0].mxu0
        %v3471 = vpop.f32.mrb[0].mxu0
        %v3472 = vadd.f32 %v3375, %v3471
        %v3473 = vpop.f32.mrb[0].mxu0
        %3474 = vdwg.mxu0
        %v3475 = vmax.f32 %v3413, 0.0
        %v3476 = vmax.f32 %v3416, 0.0
        %v3477 = vmax.f32 %v3421, 0.0
        %v3478 = vmax.f32 %v3424, 0.0
        %v3479 = vmax.f32 %v3429, 0.0
        %v3480 = vmax.f32 %v3432, 0.0
        %v3481 = vmax.f32 %v3437, 0.0
        %v3482 = vmax.f32 %v3440, 0.0
        %v3483 = vmax.f32 %v3445, 0.0
        %v3484 = vmax.f32 %v3448, 0.0
        %v3485 = vmax.f32 %v3453, 0.0
        %v3486 = vmax.f32 %v3456, 0.0
        %v3487 = vmax.f32 %v3461, 0.0
        %v3488 = vmax.f32 %v3464, 0.0
        %v3489 = vmax.f32 %v3469, 0.0
        %v3490 = vmax.f32 %v3472, 0.0
        %v3491 = vpack.c.bf16 %v3476, %v3475
        %v3492 = vpack.c.bf16 %v3478, %v3477
        %v3493 = vpack.c.bf16 %v3480, %v3479
        %v3494 = vpack.c.bf16 %v3482, %v3481
        %v3495 = vpack.c.bf16 %v3484, %v3483
        %v3496 = vpack.c.bf16 %v3486, %v3485
        %v3497 = vpack.c.bf16 %v3488, %v3487
        %v3498 = vpack.c.bf16 %v3490, %v3489
        %v3499 = vld [vmem:[%s5] sm:$0xf]
        %v3500 = vld [vmem:[%s5 + $0x4] sm:$0xf]
        %v3501 = vld [vmem:[%s5 + $0x8] sm:$0xf]
        %v3502 = vld [vmem:[%s5 + $0xc] sm:$0xf]
        %v3503 = vunpack.c.l.bf16 %v300
        %v3504 = vunpack.c.l.bf16 %v301
        %v3505 = vunpack.c.l.bf16 %v302
        %v3506 = vunpack.c.l.bf16 %v303
        %v3507 = vunpack.c.l.bf16 %v304
        %v3508 = vunpack.c.l.bf16 %v305
        %v3509 = vunpack.c.l.bf16 %v306
        %v3510 = vunpack.c.l.bf16 %v307
        %v3511 = vunpack.c.l.bf16 %v308
        %v3512 = vunpack.c.l.bf16 %v309
        %v3513 = vunpack.c.l.bf16 %v310
        %v3514 = vunpack.c.l.bf16 %v311
        %v3515 = vunpack.c.l.bf16 %v312
        %v3516 = vunpack.c.l.bf16 %v313
        %v3517 = vunpack.c.l.bf16 %v314
        %v3518 = vunpack.c.l.bf16 %v315
        %v3519 = vunpack.c.l.bf16 %v316
        %v3520 = vunpack.c.l.bf16 %v317
        %v3521 = vunpack.c.l.bf16 %v318
        %v3522 = vunpack.c.l.bf16 %v319
        %v3523 = vunpack.c.l.bf16 %v320
        %v3524 = vunpack.c.l.bf16 %v321
        %v3525 = vunpack.c.l.bf16 %v322
        %v3526 = vunpack.c.l.bf16 %v323
        %vm3551 = vcmask 1046528
        %v3552 = vrot.slane %v3503, 1
        %v3553 = vrot.slane %v3504, 1
        %v3554 = vsel %vm3551, %v3552, %v3553
        %v3555 = vrot.slane %v3505, 1
        %v3556 = vsel %vm3551, %v3553, %v3555
        %v3557 = vrot.slane %v3506, 1
        %v3558 = vrot.slane %v3507, 1
        %v3559 = vsel %vm3551, %v3557, %v3558
        %v3560 = vrot.slane %v3508, 1
        %v3561 = vsel %vm3551, %v3558, %v3560
        %v3562 = vrot.slane %v3509, 1
        %v3563 = vrot.slane %v3510, 1
        %v3564 = vsel %vm3551, %v3562, %v3563
        %v3565 = vrot.slane %v3511, 1
        %v3566 = vsel %vm3551, %v3563, %v3565
        %v3567 = vrot.slane %v3512, 1
        %v3568 = vrot.slane %v3513, 1
        %v3569 = vsel %vm3551, %v3567, %v3568
        %v3570 = vrot.slane %v3514, 1
        %v3571 = vsel %vm3551, %v3568, %v3570
        %v3572 = vrot.slane %v3515, 1
        %v3573 = vrot.slane %v3516, 1
        %v3574 = vsel %vm3551, %v3572, %v3573
        %v3575 = vrot.slane %v3517, 1
        %v3576 = vsel %vm3551, %v3573, %v3575
        %v3577 = vrot.slane %v3518, 1
        %v3578 = vrot.slane %v3519, 1
        %v3579 = vsel %vm3551, %v3577, %v3578
        %v3580 = vrot.slane %v3520, 1
        %v3581 = vsel %vm3551, %v3578, %v3580
        %v3582 = vrot.slane %v3521, 1
        %v3583 = vrot.slane %v3522, 1
        %v3584 = vsel %vm3551, %v3582, %v3583
        %v3585 = vrot.slane %v3523, 1
        %v3586 = vsel %vm3551, %v3583, %v3585
        %v3587 = vrot.slane %v3524, 1
        %v3588 = vrot.slane %v3525, 1
        %v3589 = vsel %vm3551, %v3587, %v3588
        %v3590 = vrot.slane %v3526, 1
        %v3591 = vsel %vm3551, %v3588, %v3590
        %v3608 = vld [vmem:[%s6] sm:$0x1]
        %v3610 = vlaneseq
        %v3611 = vshrl.u32 %v3610, 7
        %v3612 = vsub.s32 0, %v3611
        %v3613 = vrot.slane %v3608, %v3612
        %v3619 = vunpack.c.l.b16 %v3499
        %v3620 = vunpack.c.l.b16 %v3500
        %v3621 = vunpack.c.l.b16 %v3501
        %v3622 = vunpack.c.l.b16 %v3502
        %v3623 = vpack.c.b16 %v3620, %v3619
        %v3624 = vpack.c.b16 %v3622, %v3621
        %v3628 = vsel %vm2982, %v3491, 0
        %v3631 = vsel %vm2982, %v3492, 0
        %v3634 = vsel %vm2982, %v3493, 0
        %v3637 = vsel %vm2982, %v3494, 0
        %v3640 = vsel %vm2982, %v3495, 0
        %v3643 = vsel %vm2982, %v3496, 0
        %v3646 = vsel %vm2982, %v3497, 0
        %v3649 = vsel %vm2982, %v3498, 0
        %3651 = vmatprep.subr.bf16.mxu0 0
        %3652 = vmatpush1.bf16.msra.mxu0 %v3623
        %3653 = vmatprep.subr.bf16.mxu0 0
        %3654 = vmatpush1.bf16.msra.mxu0 %v3624
        %3655 = vmatprep.subr.bf16.mxu0 0
        %3656 = vmatpush1.bf16.msra.mxu0 0
        %3657 = vmatprep.subr.bf16.mxu0 0
        %3658 = vmatpush1.bf16.msra.mxu0 0
        %3659 = vmatprep.subr.bf16.mxu0 0
        %3660 = vmatpush1.bf16.msra.mxu0 0
        %3661 = vmatprep.subr.bf16.mxu0 0
        %3662 = vmatpush1.bf16.msra.mxu0 0
        %3663 = vmatprep.subr.bf16.mxu0 0
        %3664 = vmatpush1.bf16.msra.mxu0 0
        %3665 = vmatprep.subr.bf16.mxu0 0
        %3666 = vmatpush1.bf16.msra.mxu0 0
        %3667 = vmatprep.subr.bf16.mxu0 0
        %3668 = vmatpush1.bf16.msra.mxu0 0
        %3669 = vmatprep.subr.bf16.mxu0 0
        %3670 = vmatpush1.bf16.msra.mxu0 0
        %3671 = vmatprep.subr.bf16.mxu0 0
        %3672 = vmatpush1.bf16.msra.mxu0 0
        %3673 = vmatprep.subr.bf16.mxu0 0
        %3674 = vmatpush1.bf16.msra.mxu0 0
        %3675 = vmatprep.subr.bf16.mxu0 0
        %3676 = vmatpush1.bf16.msra.mxu0 0
        %3677 = vmatprep.subr.bf16.mxu0 0
        %3678 = vmatpush1.bf16.msra.mxu0 0
        %3679 = vmatprep.subr.bf16.mxu0 0
        %3680 = vmatpush1.bf16.msra.mxu0 0
        %3681 = vmatprep.subr.bf16.mxu0 0
        %3682 = vmatpush1.bf16.msra.mxu0 0
        %3683 = vmatprep.mubr.bf16.mxu0 0
        %3684 = vmatmul.mubr.bf16.gmra.mrb[0].mxu0 %v3628
        %v3685 = vpop.f32.mrb[0].mxu0
        %v3686 = vadd.f32 %v3613, %v3685
        %v3687 = vpop.f32.mrb[0].mxu0
        %v3688 = vpop.f32.mrb[0].mxu0
        %v3689 = vadd.f32 %v3613, %v3688
        %v3690 = vpop.f32.mrb[0].mxu0
        %3691 = vmatprep.mubr.bf16.mxu0 0
        %3692 = vmatmul.mubr.bf16.gmra.mrb[0].mxu0 %v3631
        %v3693 = vpop.f32.mrb[0].mxu0
        %v3694 = vadd.f32 %v3613, %v3693
        %v3695 = vpop.f32.mrb[0].mxu0
        %v3696 = vpop.f32.mrb[0].mxu0
        %v3697 = vadd.f32 %v3613, %v3696
        %v3698 = vpop.f32.mrb[0].mxu0
        %3699 = vmatprep.mubr.bf16.mxu0 0
        %3700 = vmatmul.mubr.bf16.gmra.mrb[0].mxu0 %v3634
        %v3701 = vpop.f32.mrb[0].mxu0
        %v3702 = vadd.f32 %v3613, %v3701
        %v3703 = vpop.f32.mrb[0].mxu0
        %v3704 = vpop.f32.mrb[0].mxu0
        %v3705 = vadd.f32 %v3613, %v3704
        %v3706 = vpop.f32.mrb[0].mxu0
        %3707 = vmatprep.mubr.bf16.mxu0 0
        %3708 = vmatmul.mubr.bf16.gmra.mrb[0].mxu0 %v3637
        %v3709 = vpop.f32.mrb[0].mxu0
        %v3710 = vadd.f32 %v3613, %v3709
        %v3711 = vpop.f32.mrb[0].mxu0
        %v3712 = vpop.f32.mrb[0].mxu0
        %v3713 = vadd.f32 %v3613, %v3712
        %v3714 = vpop.f32.mrb[0].mxu0
        %3715 = vmatprep.mubr.bf16.mxu0 0
        %3716 = vmatmul.mubr.bf16.gmra.mrb[0].mxu0 %v3640
        %v3717 = vpop.f32.mrb[0].mxu0
        %v3718 = vadd.f32 %v3613, %v3717
        %v3719 = vpop.f32.mrb[0].mxu0
        %v3720 = vpop.f32.mrb[0].mxu0
        %v3721 = vadd.f32 %v3613, %v3720
        %v3722 = vpop.f32.mrb[0].mxu0
        %3723 = vmatprep.mubr.bf16.mxu0 0
        %3724 = vmatmul.mubr.bf16.gmra.mrb[0].mxu0 %v3643
        %v3725 = vpop.f32.mrb[0].mxu0
        %v3726 = vadd.f32 %v3613, %v3725
        %v3727 = vpop.f32.mrb[0].mxu0
        %v3728 = vpop.f32.mrb[0].mxu0
        %v3729 = vadd.f32 %v3613, %v3728
        %v3730 = vpop.f32.mrb[0].mxu0
        %3731 = vmatprep.mubr.bf16.mxu0 0
        %3732 = vmatmul.mubr.bf16.gmra.mrb[0].mxu0 %v3646
        %v3733 = vpop.f32.mrb[0].mxu0
        %v3734 = vadd.f32 %v3613, %v3733
        %v3735 = vpop.f32.mrb[0].mxu0
        %v3736 = vpop.f32.mrb[0].mxu0
        %v3737 = vadd.f32 %v3613, %v3736
        %v3738 = vpop.f32.mrb[0].mxu0
        %3739 = vmatprep.mubr.bf16.mxu0 0
        %3740 = vmatmul.mubr.bf16.gmra.mrb[0].mxu0 %v3649
        %v3741 = vpop.f32.mrb[0].mxu0
        %v3742 = vadd.f32 %v3613, %v3741
        %v3743 = vpop.f32.mrb[0].mxu0
        %v3744 = vpop.f32.mrb[0].mxu0
        %v3745 = vadd.f32 %v3613, %v3744
        %v3746 = vpop.f32.mrb[0].mxu0
        %3747 = vdwg.mxu0
        %v3748 = vadd.f32 %v3686, %v3554
        %v3749 = vadd.f32 %v3689, %v3556
        %v3750 = vadd.f32 %v3694, %v3559
        %v3751 = vadd.f32 %v3697, %v3561
        %v3752 = vadd.f32 %v3702, %v3564
        %v3753 = vadd.f32 %v3705, %v3566
        %v3754 = vadd.f32 %v3710, %v3569
        %v3755 = vadd.f32 %v3713, %v3571
        %v3756 = vadd.f32 %v3718, %v3574
        %v3757 = vadd.f32 %v3721, %v3576
        %v3758 = vadd.f32 %v3726, %v3579
        %v3759 = vadd.f32 %v3729, %v3581
        %v3760 = vadd.f32 %v3734, %v3584
        %v3761 = vadd.f32 %v3737, %v3586
        %v3762 = vadd.f32 %v3742, %v3589
        %v3763 = vadd.f32 %v3745, %v3591
        %v3764 = vmax.f32 %v3748, 0.0
        %v3765 = vmax.f32 %v3749, 0.0
        %v3766 = vmax.f32 %v3750, 0.0
        %v3767 = vmax.f32 %v3751, 0.0
        %v3768 = vmax.f32 %v3752, 0.0
        %v3769 = vmax.f32 %v3753, 0.0
        %v3770 = vmax.f32 %v3754, 0.0
        %v3771 = vmax.f32 %v3755, 0.0
        %v3772 = vmax.f32 %v3756, 0.0
        %v3773 = vmax.f32 %v3757, 0.0
        %v3774 = vmax.f32 %v3758, 0.0
        %v3775 = vmax.f32 %v3759, 0.0
        %v3776 = vmax.f32 %v3760, 0.0
        %v3777 = vmax.f32 %v3761, 0.0
        %v3778 = vmax.f32 %v3762, 0.0
        %v3779 = vmax.f32 %v3763, 0.0
        %v3780 = vpack.c.bf16 %v3765, %v3764
        %v3781 = vpack.c.bf16 %v3767, %v3766
        %v3782 = vpack.c.bf16 %v3769, %v3768
        %v3783 = vpack.c.bf16 %v3771, %v3770
        %v3784 = vpack.c.bf16 %v3773, %v3772
        %v3785 = vpack.c.bf16 %v3775, %v3774
        %v3786 = vpack.c.bf16 %v3777, %v3776
        %v3787 = vpack.c.bf16 %v3779, %v3778
        %v3796 = vunpack.c.l.b16 %v3780
        %v3797 = vunpack.c.h.b16 %v3780
        %v3798 = vunpack.c.l.b16 %v3781
        %v3799 = vunpack.c.h.b16 %v3781
        %v3800 = vunpack.c.l.b16 %v3782
        %v3801 = vunpack.c.h.b16 %v3782
        %v3802 = vunpack.c.l.b16 %v3783
        %v3803 = vunpack.c.h.b16 %v3783
        %v3804 = vunpack.c.l.b16 %v3784
        %v3805 = vunpack.c.h.b16 %v3784
        %v3806 = vunpack.c.l.b16 %v3785
        %v3807 = vunpack.c.h.b16 %v3785
        %v3808 = vunpack.c.l.b16 %v3786
        %v3809 = vunpack.c.h.b16 %v3786
        %v3810 = vunpack.c.l.b16 %v3787
        %v3811 = vunpack.c.h.b16 %v3787
        %v3812 = vpack.c.b16 %v3796, %v3796
        %v3813 = vpack.c.b16 %v3797, %v3797
        %v3814 = vpack.c.b16 %v3798, %v3798
        %v3815 = vpack.c.b16 %v3799, %v3799
        %v3816 = vpack.c.b16 %v3800, %v3800
        %v3817 = vpack.c.b16 %v3801, %v3801
        %v3818 = vpack.c.b16 %v3802, %v3802
        %v3819 = vpack.c.b16 %v3803, %v3803
        %v3820 = vpack.c.b16 %v3804, %v3804
        %v3821 = vpack.c.b16 %v3805, %v3805
        %v3822 = vpack.c.b16 %v3806, %v3806
        %v3823 = vpack.c.b16 %v3807, %v3807
        %v3824 = vpack.c.b16 %v3808, %v3808
        %v3825 = vpack.c.b16 %v3809, %v3809
        %v3826 = vpack.c.b16 %v3810, %v3810
        %v3827 = vpack.c.b16 %v3811, %v3811
        %3844 = vst [vmem:[%s285] sm:$0xf] %v3812
        %3845 = vst [vmem:[%s285 + $0x4] sm:$0xf] %v3813
        %3846 = vst [vmem:[%s285 + $0x8] sm:$0xf] %v3814
        %3847 = vst [vmem:[%s285 + $0xc] sm:$0xf] %v3815
        %3848 = vst [vmem:[%s285 + $0x10] sm:$0xf] %v3816
        %3849 = vst [vmem:[%s285 + $0x14] sm:$0xf] %v3817
        %3850 = vst [vmem:[%s285 + $0x18] sm:$0xf] %v3818
        %3851 = vst [vmem:[%s285 + $0x1c] sm:$0xf] %v3819
        %3852 = vst [vmem:[%s285 + $0x20] sm:$0xf] %v3820
        %3853 = vst [vmem:[%s285 + $0x24] sm:$0xf] %v3821
        %3854 = vst [vmem:[%s285 + $0x28] sm:$0xf] %v3822
        %3855 = vst [vmem:[%s285 + $0x2c] sm:$0xf] %v3823
        %3856 = vst [vmem:[%s285 + $0x30] sm:$0xf] %v3824
        %3857 = vst [vmem:[%s285 + $0x34] sm:$0xf] %v3825
        %3858 = vst [vmem:[%s285 + $0x38] sm:$0xf] %v3826
        %3859 = vst [vmem:[%s285 + $0x3c] sm:$0xf] %v3827
        %s3860 = sand.u32 %s195, 1
        %s3861 = scalar_lea.sflag [#allocation3], %s3860
        %s3862 = sand.u32 %s195, 1
        %s3863 = smul.addr %s3862, 64
        %s3864 = scalar_lea.vmem [#allocation2], %s3863
        // Predicated region
        $region49: #{bottleneck_forward.1} parent=47 // pred_check
          %p3865 = pneg %p205
        $region50: #{bottleneck_forward.1} parent=47 // pred_check_branch
          %3867 = sbr.rel (%p3865) target = $region52
        $region51: #{bottleneck_forward.1} parent=47 // pred_region
          %s3868 = smul.u32 8, %s26
          %s3870 = ssub.s32 1024, 1024
          %3871 = vsyncadd %s3861, %s3870
          %s3872 = smul.addr %s3868, 2
          %s3873 = smul.addr %s25, 32
          %s3874 = sadd.s32 %s3872, %s3873
          %s3875 = smul.addr %s3874, 64
          %s3876 = scalar_lea.hbm %s7, %s3875
          %s3877 = sshll.u32 %s3864, 4
          %s3878 = int_to_ptr.vmem [resolvable:$true] %s3877
          %3883 = dma.vmem_to_hbm [thread:$0]  %s3878, 1024, %s3876, %s3861, 64, 64, 4
        $region52: #{bottleneck_forward.1} parent=47 // pred_fallthru
          _
      $region48: #{bottleneck_forward.1} parent=5 // pred_fallthru
        _
      %p3884 = scmp.le.s32.totalorder 2, %s16
      // Predicated region
      $region53: #{bottleneck_forward.1} parent=5 // pred_check
        %p3885 = pneg %p3884
      $region54: #{bottleneck_forward.1} parent=5 // pred_check_branch
        %3887 = sbr.rel (%p3885) target = $region56
      $region55: #{bottleneck_forward.1} parent=5 // pred_region
        %s3888 = ssub.s32 %s16, 2
        // Predicated region
        $region57: #{bottleneck_forward.1} parent=55 // pred_check
          %p3889 = pneg %p211
        $region58: #{bottleneck_forward.1} parent=55 // pred_check_branch
          %3891 = sbr.rel (%p3889) target = $region60
        $region59: #{bottleneck_forward.1} parent=55 // pred_region
          %s3892 = sand.u32 %s196, 1
          %s3893 = scalar_lea.sflag [#allocation3], %s3892
          %s3894 = sand.u32 %s196, 1
          %s3895 = smul.addr %s3894, 64
          %s3896 = scalar_lea.vmem [#allocation2], %s3895
          %3897 = dma.done %s3893, 1024
        $region60: #{bottleneck_forward.1} parent=55 // pred_fallthru
          _
      $region56: #{bottleneck_forward.1} parent=5 // pred_fallthru
        _
    $region6: #{bottleneck_forward.1} parent=1 // loop_footer
      %s20 = sadd.s32 1, %s16
    $region7: #{bottleneck_forward.1} parent=1 // loop_footer_branch
      %15 = sbr.rel target = $region3
    $region8: #{bottleneck_forward.1} parent=1 // loop_exit
      _
    %3898 = vsyncpa [#allocation3], 1
    %s3899 = scalar_lea.sflag [#allocation3], 1
    %3900 = vsyncpa %s3899, 1

</llo_original>
